<compile_context>
chip_gen: v7x
topology: tpu7x:2x2x1
jax: 0.10.0
libtpu: 0.0.40
codegen_flags: <defaults>
</compile_context>

<pallas_src>
import jax
import jax.numpy as jnp
from jax.experimental import pallas as pl
from jax.experimental.pallas import tpu as pltpu

_TB = 128  # batch rows per grid step (multiple of 8; >=128 fills the MXU M dim)


def _next_char_kernel(idx_ref, emb_ref, w1_ref, b1_ref, w2_ref, b2_ref, o_ref):
    """Fused forward for one (TB, ...) batch tile.

    idx_ref: (TB, BS)   int32 token ids
    emb_ref: (V, E)     bf16  embedding table (VMEM resident)
    w1_ref:  (BS*E, H)  bf16  lin1 weight, (in, out) layout
    b1_ref:  (1, H)     f32
    w2_ref:  (H, V)     bf16  lin2 weight, (in, out) layout
    b2_ref:  (1, V)     f32
    o_ref:   (TB, V)    f32   logits
    """
    tb, bs = idx_ref.shape
    v, e = emb_ref.shape
    h_dim = w1_ref.shape[1]

    idx = idx_ref[...]                                             # (TB, BS) int32
    emb = emb_ref[...]                                             # (V, E)  bf16
    vocab_iota = jax.lax.broadcasted_iota(jnp.int32, (tb, v), 1)   # (TB, V)

    # Fused embedding gather + flatten + lin1.  For each token slot t:
    #   x_t  = onehot_t @ emb                 (exact gather on the MXU)
    #   acc += x_t @ W1[t*E:(t+1)*E, :]
    # which equals flatten(emb[idx]) @ W1 without any in-kernel reshape.
    # TODO(synk): for large vocab_size, replace the VMEM-resident one-hot gather
    # with a scalar-prefetch / DMA gather of the needed embedding rows.
    acc = jnp.zeros((tb, h_dim), jnp.float32)
    for t in range(bs):  # static unroll, block_size is small
        onehot_t = (idx[:, t:t + 1] == vocab_iota).astype(jnp.bfloat16)   # (TB, V)
        x_t = jnp.dot(onehot_t, emb, preferred_element_type=jnp.float32)  # (TB, E)
        acc = acc + jnp.dot(x_t.astype(jnp.bfloat16),
                            w1_ref[t * e:(t + 1) * e, :],
                            preferred_element_type=jnp.float32)           # (TB, H)

    hidden = jnp.sin(acc + b1_ref[...])                                   # f32
    logits = jnp.dot(hidden.astype(jnp.bfloat16), w2_ref[...],
                     preferred_element_type=jnp.float32)
    o_ref[...] = (logits + b2_ref[...]).astype(o_ref.dtype)


def next_char_forward(x_idx, kparams):
    """Forward pass equivalent to NextChar.forward.

    x_idx:   (B, block_size) int32 token indices.
    kparams: output of prepare_inference_params (bf16 weights, (in,out) layout).
    """
    emb, w1, b1, w2, b2 = (kparams["emb"], kparams["w1"], kparams["b1"],
                           kparams["w2"], kparams["b2"])
    B, bs = x_idx.shape
    V, E = emb.shape
    F, H = w1.shape
    assert F == bs * E

    # Pad batch to a multiple of the tile (pad rows use token 0; sliced off).
    pad = (-B) % _TB
    if pad:
        x_idx = jnp.pad(x_idx, ((0, pad), (0, 0)))
    Bp = B + pad
    grid = (Bp // _TB,)

    flops = 2 * Bp * (bs * V * E + bs * E * H + H * V)
    bytes_accessed = (Bp * bs * 4 + Bp * V * 4          # idx in, logits out
                      + (V * E + F * H + H * V) * 2     # bf16 weights (resident)
                      + (H + V) * 4)                    # f32 biases

    out = pl.pallas_call(
        _next_char_kernel,
        out_shape=jax.ShapeDtypeStruct((Bp, V), jnp.float32),
        grid_spec=pl.GridSpec(
            grid=grid,
            in_specs=[
                pl.BlockSpec((_TB, bs), lambda i: (i, 0)),   # token ids (batch-tiled)
                pl.BlockSpec((V, E), lambda i: (0, 0)),      # emb  (VMEM resident)
                pl.BlockSpec((F, H), lambda i: (0, 0)),      # w1   (VMEM resident)
                pl.BlockSpec((1, H), lambda i: (0, 0)),      # b1   (VMEM resident)
                pl.BlockSpec((H, V), lambda i: (0, 0)),      # w2   (VMEM resident)
                pl.BlockSpec((1, V), lambda i: (0, 0)),      # b2   (VMEM resident)
            ],
            out_specs=pl.BlockSpec((_TB, V), lambda i: (i, 0)),
        ),
        compiler_params=pltpu.CompilerParams(
            dimension_semantics=("parallel",)),
        cost_estimate=pl.CostEstimate(
            flops=flops, transcendentals=Bp * H, bytes_accessed=bytes_accessed),
    )(x_idx, emb, w1, b1, w2, b2)
    return out[:B] if pad else out


def make_params(key, block_size, vocab_size, emb_dim, hidden_size):
    """Canonical f32 params. Linear weights stored in (in, out) layout so no
    per-call transpose is needed (hoisted from the forward)."""
    k_emb, k_w1, k_b1, k_w2, k_b2 = jax.random.split(key, 5)
    fan1 = block_size * emb_dim
    lim1 = 1.0 / jnp.sqrt(fan1)
    lim2 = 1.0 / jnp.sqrt(hidden_size)
    return {
        "emb": jax.random.normal(k_emb, (vocab_size, emb_dim), jnp.float32),
        "w1": jax.random.uniform(k_w1, (fan1, hidden_size), jnp.float32, -lim1, lim1),
        "b1": jax.random.uniform(k_b1, (hidden_size,), jnp.float32, -lim1, lim1),
        "w2": jax.random.uniform(k_w2, (hidden_size, vocab_size), jnp.float32, -lim2, lim2),
        "b2": jax.random.uniform(k_b2, (vocab_size,), jnp.float32, -lim2, lim2),
    }


def prepare_inference_params(params):
    """One-time weight prep: bf16 MXU inputs, 2-D f32 biases."""
    return {
        "emb": params["emb"].astype(jnp.bfloat16),
        "w1": params["w1"].astype(jnp.bfloat16),
        "b1": params["b1"].reshape(1, -1).astype(jnp.float32),
        "w2": params["w2"].astype(jnp.bfloat16),
        "b2": params["b2"].reshape(1, -1).astype(jnp.float32),
    }


if __name__ == "__main__":
    # Small, TPU-tile-friendly shapes consistent with the module.
    block_size = 8
    vocab_size = 128
    emb_dim = 16          # block_size * emb_dim = 128 (MXU-friendly K)
    hidden_size = 128
    batch = 256           # two grid steps of TB=128

    key = jax.random.PRNGKey(0)
    k_params, k_idx = jax.random.split(key)
    params = make_params(k_params, block_size, vocab_size, emb_dim, hidden_size)
    kparams = prepare_inference_params(params)   # one-time layout/dtype prep
    x_idx = jax.random.randint(k_idx, (batch, block_size), 0, vocab_size,
                               dtype=jnp.int32)

    fwd = jax.jit(next_char_forward)
    out = jax.block_until_ready(fwd(x_idx, kparams))

    # f32 reference (same math as NextChar.forward); bf16 MXU inputs give ~1e-2
    # level differences, so use a widened tolerance.
    x_emb = jnp.take(params["emb"], x_idx, axis=0).reshape(batch, -1)
    ref = jnp.sin(x_emb @ params["w1"] + params["b1"]) @ params["w2"] + params["b2"]

    assert out.shape == (batch, vocab_size)
    max_err = float(jnp.max(jnp.abs(out - ref)))
    assert jnp.allclose(out, ref, atol=3e-2, rtol=3e-2), max_err

    print("KERNEL_OK")
</pallas_src>

<mosaic_0001>
module attributes {stable_mosaic.version = 11 : i64} {
  func.func @_next_char_kernel(%arg0: i32, %arg1: memref<128x8xi32, #tpu.memory_space<vmem>>, %arg2: memref<128x16xbf16, #tpu.memory_space<vmem>>, %arg3: memref<128x128xbf16, #tpu.memory_space<vmem>>, %arg4: memref<1x128xf32, #tpu.memory_space<vmem>>, %arg5: memref<128x128xbf16, #tpu.memory_space<vmem>>, %arg6: memref<1x128xf32, #tpu.memory_space<vmem>>, %arg7: memref<128x128xf32, #tpu.memory_space<vmem>>) attributes {dimension_semantics = [#tpu.dimension_semantics<parallel>], iteration_bounds = array<i64: 2>, scalar_prefetch = 0 : i64, scratch_operands = 0 : i64, tpu.core_type = #tpu.core_type<tc>, window_params = [{transform_indices = @transform_0, window_bounds = array<i64: 128, 8>}, {pipeline_mode = #tpu.pipeline_mode<synchronous>, transform_indices = @transform_1, window_bounds = array<i64: 128, 16>}, {pipeline_mode = #tpu.pipeline_mode<synchronous>, transform_indices = @transform_2, window_bounds = array<i64: 128, 128>}, {pipeline_mode = #tpu.pipeline_mode<synchronous>, transform_indices = @transform_3, window_bounds = array<i64: 1, 128>}, {pipeline_mode = #tpu.pipeline_mode<synchronous>, transform_indices = @transform_4, window_bounds = array<i64: 128, 128>}, {pipeline_mode = #tpu.pipeline_mode<synchronous>, transform_indices = @transform_5, window_bounds = array<i64: 1, 128>}, {transform_indices = @transform_6, window_bounds = array<i64: 128, 128>}]} {
    %c0 = arith.constant 0 : index
    %c0_0 = arith.constant 0 : index
    %0 = vector.load %arg1[%c0, %c0_0] : memref<128x8xi32, #tpu.memory_space<vmem>>, vector<128x8xi32>
    %c0_1 = arith.constant 0 : index
    %c0_2 = arith.constant 0 : index
    %1 = vector.load %arg2[%c0_1, %c0_2] : memref<128x16xbf16, #tpu.memory_space<vmem>>, vector<128x16xbf16>
    %2 = tpu.iota {dimensions = array<i32: 1>} : vector<128x128xi32>
    %cst = arith.constant 0.000000e+00 : f32
    %3 = vector.broadcast %cst : f32 to vector<128x128xf32>
    %4 = vector.extract_strided_slice %0 {offsets = [0, 0], sizes = [128, 1], strides = [1, 1]} : vector<128x8xi32> to vector<128x1xi32>
    %5 = vector.broadcast %4 : vector<128x1xi32> to vector<128x128xi32>
    %6 = arith.cmpi eq, %5, %2 : vector<128x128xi32>
    %7 = arith.extui %6 : vector<128x128xi1> to vector<128x128xi32>
    %8 = arith.sitofp %7 : vector<128x128xi32> to vector<128x128xf32>
    %9 = arith.truncf %8 : vector<128x128xf32> to vector<128x128xbf16>
    %cst_3 = arith.constant dense<0.000000e+00> : vector<128x16xf32>
    %10 = tpu.matmul %9, %1, %cst_3 {dimension_numbers = #tpu.dot_dimension_numbers<[1], [0], [0], [1], [0, 0, 1, 1], [], []>} : vector<128x128xbf16>, vector<128x16xbf16>, vector<128x16xf32> -> vector<128x16xf32>
    %11 = arith.truncf %10 : vector<128x16xf32> to vector<128x16xbf16>
    %c0_4 = arith.constant 0 : index
    %c0_5 = arith.constant 0 : index
    %12 = vector.load %arg3[%c0_4, %c0_5] : memref<128x128xbf16, #tpu.memory_space<vmem>>, vector<16x128xbf16>
    %cst_6 = arith.constant dense<0.000000e+00> : vector<128x128xf32>
    %13 = tpu.matmul %11, %12, %cst_6 {dimension_numbers = #tpu.dot_dimension_numbers<[1], [0], [0], [1], [0, 0, 1, 1], [], []>} : vector<128x16xbf16>, vector<16x128xbf16>, vector<128x128xf32> -> vector<128x128xf32>
    %14 = arith.addf %3, %13 : vector<128x128xf32>
    %15 = vector.extract_strided_slice %0 {offsets = [0, 1], sizes = [128, 1], strides = [1, 1]} : vector<128x8xi32> to vector<128x1xi32>
    %16 = vector.broadcast %15 : vector<128x1xi32> to vector<128x128xi32>
    %17 = arith.cmpi eq, %16, %2 : vector<128x128xi32>
    %18 = arith.extui %17 : vector<128x128xi1> to vector<128x128xi32>
    %19 = arith.sitofp %18 : vector<128x128xi32> to vector<128x128xf32>
    %20 = arith.truncf %19 : vector<128x128xf32> to vector<128x128xbf16>
    %cst_7 = arith.constant dense<0.000000e+00> : vector<128x16xf32>
    %21 = tpu.matmul %20, %1, %cst_7 {dimension_numbers = #tpu.dot_dimension_numbers<[1], [0], [0], [1], [0, 0, 1, 1], [], []>} : vector<128x128xbf16>, vector<128x16xbf16>, vector<128x16xf32> -> vector<128x16xf32>
    %22 = arith.truncf %21 : vector<128x16xf32> to vector<128x16xbf16>
    %c16 = arith.constant 16 : index
    %c0_8 = arith.constant 0 : index
    %23 = vector.load %arg3[%c16, %c0_8] : memref<128x128xbf16, #tpu.memory_space<vmem>>, vector<16x128xbf16>
    %cst_9 = arith.constant dense<0.000000e+00> : vector<128x128xf32>
    %24 = tpu.matmul %22, %23, %cst_9 {dimension_numbers = #tpu.dot_dimension_numbers<[1], [0], [0], [1], [0, 0, 1, 1], [], []>} : vector<128x16xbf16>, vector<16x128xbf16>, vector<128x128xf32> -> vector<128x128xf32>
    %25 = arith.addf %14, %24 : vector<128x128xf32>
    %26 = vector.extract_strided_slice %0 {offsets = [0, 2], sizes = [128, 1], strides = [1, 1]} : vector<128x8xi32> to vector<128x1xi32>
    %27 = vector.broadcast %26 : vector<128x1xi32> to vector<128x128xi32>
    %28 = arith.cmpi eq, %27, %2 : vector<128x128xi32>
    %29 = arith.extui %28 : vector<128x128xi1> to vector<128x128xi32>
    %30 = arith.sitofp %29 : vector<128x128xi32> to vector<128x128xf32>
    %31 = arith.truncf %30 : vector<128x128xf32> to vector<128x128xbf16>
    %cst_10 = arith.constant dense<0.000000e+00> : vector<128x16xf32>
    %32 = tpu.matmul %31, %1, %cst_10 {dimension_numbers = #tpu.dot_dimension_numbers<[1], [0], [0], [1], [0, 0, 1, 1], [], []>} : vector<128x128xbf16>, vector<128x16xbf16>, vector<128x16xf32> -> vector<128x16xf32>
    %33 = arith.truncf %32 : vector<128x16xf32> to vector<128x16xbf16>
    %c32 = arith.constant 32 : index
    %c0_11 = arith.constant 0 : index
    %34 = vector.load %arg3[%c32, %c0_11] : memref<128x128xbf16, #tpu.memory_space<vmem>>, vector<16x128xbf16>
    %cst_12 = arith.constant dense<0.000000e+00> : vector<128x128xf32>
    %35 = tpu.matmul %33, %34, %cst_12 {dimension_numbers = #tpu.dot_dimension_numbers<[1], [0], [0], [1], [0, 0, 1, 1], [], []>} : vector<128x16xbf16>, vector<16x128xbf16>, vector<128x128xf32> -> vector<128x128xf32>
    %36 = arith.addf %25, %35 : vector<128x128xf32>
    %37 = vector.extract_strided_slice %0 {offsets = [0, 3], sizes = [128, 1], strides = [1, 1]} : vector<128x8xi32> to vector<128x1xi32>
    %38 = vector.broadcast %37 : vector<128x1xi32> to vector<128x128xi32>
    %39 = arith.cmpi eq, %38, %2 : vector<128x128xi32>
    %40 = arith.extui %39 : vector<128x128xi1> to vector<128x128xi32>
    %41 = arith.sitofp %40 : vector<128x128xi32> to vector<128x128xf32>
    %42 = arith.truncf %41 : vector<128x128xf32> to vector<128x128xbf16>
    %cst_13 = arith.constant dense<0.000000e+00> : vector<128x16xf32>
    %43 = tpu.matmul %42, %1, %cst_13 {dimension_numbers = #tpu.dot_dimension_numbers<[1], [0], [0], [1], [0, 0, 1, 1], [], []>} : vector<128x128xbf16>, vector<128x16xbf16>, vector<128x16xf32> -> vector<128x16xf32>
    %44 = arith.truncf %43 : vector<128x16xf32> to vector<128x16xbf16>
    %c48 = arith.constant 48 : index
    %c0_14 = arith.constant 0 : index
    %45 = vector.load %arg3[%c48, %c0_14] : memref<128x128xbf16, #tpu.memory_space<vmem>>, vector<16x128xbf16>
    %cst_15 = arith.constant dense<0.000000e+00> : vector<128x128xf32>
    %46 = tpu.matmul %44, %45, %cst_15 {dimension_numbers = #tpu.dot_dimension_numbers<[1], [0], [0], [1], [0, 0, 1, 1], [], []>} : vector<128x16xbf16>, vector<16x128xbf16>, vector<128x128xf32> -> vector<128x128xf32>
    %47 = arith.addf %36, %46 : vector<128x128xf32>
    %48 = vector.extract_strided_slice %0 {offsets = [0, 4], sizes = [128, 1], strides = [1, 1]} : vector<128x8xi32> to vector<128x1xi32>
    %49 = vector.broadcast %48 : vector<128x1xi32> to vector<128x128xi32>
    %50 = arith.cmpi eq, %49, %2 : vector<128x128xi32>
    %51 = arith.extui %50 : vector<128x128xi1> to vector<128x128xi32>
    %52 = arith.sitofp %51 : vector<128x128xi32> to vector<128x128xf32>
    %53 = arith.truncf %52 : vector<128x128xf32> to vector<128x128xbf16>
    %cst_16 = arith.constant dense<0.000000e+00> : vector<128x16xf32>
    %54 = tpu.matmul %53, %1, %cst_16 {dimension_numbers = #tpu.dot_dimension_numbers<[1], [0], [0], [1], [0, 0, 1, 1], [], []>} : vector<128x128xbf16>, vector<128x16xbf16>, vector<128x16xf32> -> vector<128x16xf32>
    %55 = arith.truncf %54 : vector<128x16xf32> to vector<128x16xbf16>
    %c64 = arith.constant 64 : index
    %c0_17 = arith.constant 0 : index
    %56 = vector.load %arg3[%c64, %c0_17] : memref<128x128xbf16, #tpu.memory_space<vmem>>, vector<16x128xbf16>
    %cst_18 = arith.constant dense<0.000000e+00> : vector<128x128xf32>
    %57 = tpu.matmul %55, %56, %cst_18 {dimension_numbers = #tpu.dot_dimension_numbers<[1], [0], [0], [1], [0, 0, 1, 1], [], []>} : vector<128x16xbf16>, vector<16x128xbf16>, vector<128x128xf32> -> vector<128x128xf32>
    %58 = arith.addf %47, %57 : vector<128x128xf32>
    %59 = vector.extract_strided_slice %0 {offsets = [0, 5], sizes = [128, 1], strides = [1, 1]} : vector<128x8xi32> to vector<128x1xi32>
    %60 = vector.broadcast %59 : vector<128x1xi32> to vector<128x128xi32>
    %61 = arith.cmpi eq, %60, %2 : vector<128x128xi32>
    %62 = arith.extui %61 : vector<128x128xi1> to vector<128x128xi32>
    %63 = arith.sitofp %62 : vector<128x128xi32> to vector<128x128xf32>
    %64 = arith.truncf %63 : vector<128x128xf32> to vector<128x128xbf16>
    %cst_19 = arith.constant dense<0.000000e+00> : vector<128x16xf32>
    %65 = tpu.matmul %64, %1, %cst_19 {dimension_numbers = #tpu.dot_dimension_numbers<[1], [0], [0], [1], [0, 0, 1, 1], [], []>} : vector<128x128xbf16>, vector<128x16xbf16>, vector<128x16xf32> -> vector<128x16xf32>
    %66 = arith.truncf %65 : vector<128x16xf32> to vector<128x16xbf16>
    %c80 = arith.constant 80 : index
    %c0_20 = arith.constant 0 : index
    %67 = vector.load %arg3[%c80, %c0_20] : memref<128x128xbf16, #tpu.memory_space<vmem>>, vector<16x128xbf16>
    %cst_21 = arith.constant dense<0.000000e+00> : vector<128x128xf32>
    %68 = tpu.matmul %66, %67, %cst_21 {dimension_numbers = #tpu.dot_dimension_numbers<[1], [0], [0], [1], [0, 0, 1, 1], [], []>} : vector<128x16xbf16>, vector<16x128xbf16>, vector<128x128xf32> -> vector<128x128xf32>
    %69 = arith.addf %58, %68 : vector<128x128xf32>
    %70 = vector.extract_strided_slice %0 {offsets = [0, 6], sizes = [128, 1], strides = [1, 1]} : vector<128x8xi32> to vector<128x1xi32>
    %71 = vector.broadcast %70 : vector<128x1xi32> to vector<128x128xi32>
    %72 = arith.cmpi eq, %71, %2 : vector<128x128xi32>
    %73 = arith.extui %72 : vector<128x128xi1> to vector<128x128xi32>
    %74 = arith.sitofp %73 : vector<128x128xi32> to vector<128x128xf32>
    %75 = arith.truncf %74 : vector<128x128xf32> to vector<128x128xbf16>
    %cst_22 = arith.constant dense<0.000000e+00> : vector<128x16xf32>
    %76 = tpu.matmul %75, %1, %cst_22 {dimension_numbers = #tpu.dot_dimension_numbers<[1], [0], [0], [1], [0, 0, 1, 1], [], []>} : vector<128x128xbf16>, vector<128x16xbf16>, vector<128x16xf32> -> vector<128x16xf32>
    %77 = arith.truncf %76 : vector<128x16xf32> to vector<128x16xbf16>
    %c96 = arith.constant 96 : index
    %c0_23 = arith.constant 0 : index
    %78 = vector.load %arg3[%c96, %c0_23] : memref<128x128xbf16, #tpu.memory_space<vmem>>, vector<16x128xbf16>
    %cst_24 = arith.constant dense<0.000000e+00> : vector<128x128xf32>
    %79 = tpu.matmul %77, %78, %cst_24 {dimension_numbers = #tpu.dot_dimension_numbers<[1], [0], [0], [1], [0, 0, 1, 1], [], []>} : vector<128x16xbf16>, vector<16x128xbf16>, vector<128x128xf32> -> vector<128x128xf32>
    %80 = arith.addf %69, %79 : vector<128x128xf32>
    %81 = vector.extract_strided_slice %0 {offsets = [0, 7], sizes = [128, 1], strides = [1, 1]} : vector<128x8xi32> to vector<128x1xi32>
    %82 = vector.broadcast %81 : vector<128x1xi32> to vector<128x128xi32>
    %83 = arith.cmpi eq, %82, %2 : vector<128x128xi32>
    %84 = arith.extui %83 : vector<128x128xi1> to vector<128x128xi32>
    %85 = arith.sitofp %84 : vector<128x128xi32> to vector<128x128xf32>
    %86 = arith.truncf %85 : vector<128x128xf32> to vector<128x128xbf16>
    %cst_25 = arith.constant dense<0.000000e+00> : vector<128x16xf32>
    %87 = tpu.matmul %86, %1, %cst_25 {dimension_numbers = #tpu.dot_dimension_numbers<[1], [0], [0], [1], [0, 0, 1, 1], [], []>} : vector<128x128xbf16>, vector<128x16xbf16>, vector<128x16xf32> -> vector<128x16xf32>
    %88 = arith.truncf %87 : vector<128x16xf32> to vector<128x16xbf16>
    %c112 = arith.constant 112 : index
    %c0_26 = arith.constant 0 : index
    %89 = vector.load %arg3[%c112, %c0_26] : memref<128x128xbf16, #tpu.memory_space<vmem>>, vector<16x128xbf16>
    %cst_27 = arith.constant dense<0.000000e+00> : vector<128x128xf32>
    %90 = tpu.matmul %88, %89, %cst_27 {dimension_numbers = #tpu.dot_dimension_numbers<[1], [0], [0], [1], [0, 0, 1, 1], [], []>} : vector<128x16xbf16>, vector<16x128xbf16>, vector<128x128xf32> -> vector<128x128xf32>
    %91 = arith.addf %80, %90 : vector<128x128xf32>
    %c0_28 = arith.constant 0 : index
    %c0_29 = arith.constant 0 : index
    %92 = vector.load %arg4[%c0_28, %c0_29] : memref<1x128xf32, #tpu.memory_space<vmem>>, vector<1x128xf32>
    %93 = vector.broadcast %92 : vector<1x128xf32> to vector<128x128xf32>
    %94 = arith.addf %91, %93 : vector<128x128xf32>
    %95 = math.sin %94 : vector<128x128xf32>
    %96 = arith.truncf %95 : vector<128x128xf32> to vector<128x128xbf16>
    %c0_30 = arith.constant 0 : index
    %c0_31 = arith.constant 0 : index
    %97 = vector.load %arg5[%c0_30, %c0_31] : memref<128x128xbf16, #tpu.memory_space<vmem>>, vector<128x128xbf16>
    %cst_32 = arith.constant dense<0.000000e+00> : vector<128x128xf32>
    %98 = tpu.matmul %96, %97, %cst_32 {dimension_numbers = #tpu.dot_dimension_numbers<[1], [0], [0], [1], [0, 0, 1, 1], [], []>} : vector<128x128xbf16>, vector<128x128xbf16>, vector<128x128xf32> -> vector<128x128xf32>
    %c0_33 = arith.constant 0 : index
    %c0_34 = arith.constant 0 : index
    %99 = vector.load %arg6[%c0_33, %c0_34] : memref<1x128xf32, #tpu.memory_space<vmem>>, vector<1x128xf32>
    %100 = vector.broadcast %99 : vector<1x128xf32> to vector<128x128xf32>
    %101 = arith.addf %98, %100 : vector<128x128xf32>
    %c0_35 = arith.constant 0 : index
    %c0_36 = arith.constant 0 : index
    %102 = vector.load %arg7[%c0_35, %c0_36] : memref<128x128xf32, #tpu.memory_space<vmem>>, vector<128x128xf32>
    tpu.vector_store %arg7[%c0_35, %c0_36], %101 {strides = array<i32>} : memref<128x128xf32, #tpu.memory_space<vmem>>, vector<128x128xf32>,
    return
  }
  func.func @transform_0(%arg0: i32) -> (i32, i32) {
    %c0_i32 = arith.constant 0 : i32
    %c0_i32_0 = arith.constant 0 : i32
    return %arg0, %c0_i32 : i32, i32
  }
  func.func @transform_1(%arg0: i32) -> (i32, i32) {
    %c0_i32 = arith.constant 0 : i32
    %c0_i32_0 = arith.constant 0 : i32
    %c0_i32_1 = arith.constant 0 : i32
    return %c0_i32, %c0_i32_0 : i32, i32
  }
  func.func @transform_2(%arg0: i32) -> (i32, i32) {
    %c0_i32 = arith.constant 0 : i32
    %c0_i32_0 = arith.constant 0 : i32
    %c0_i32_1 = arith.constant 0 : i32
    return %c0_i32, %c0_i32_0 : i32, i32
  }
  func.func @transform_3(%arg0: i32) -> (i32, i32) {
    %c0_i32 = arith.constant 0 : i32
    %c0_i32_0 = arith.constant 0 : i32
    %c0_i32_1 = arith.constant 0 : i32
    return %c0_i32, %c0_i32_0 : i32, i32
  }
  func.func @transform_4(%arg0: i32) -> (i32, i32) {
    %c0_i32 = arith.constant 0 : i32
    %c0_i32_0 = arith.constant 0 : i32
    %c0_i32_1 = arith.constant 0 : i32
    return %c0_i32, %c0_i32_0 : i32, i32
  }
  func.func @transform_5(%arg0: i32) -> (i32, i32) {
    %c0_i32 = arith.constant 0 : i32
    %c0_i32_0 = arith.constant 0 : i32
    %c0_i32_1 = arith.constant 0 : i32
    return %c0_i32, %c0_i32_0 : i32, i32
  }
  func.func @transform_6(%arg0: i32) -> (i32, i32) {
    %c0_i32 = arith.constant 0 : i32
    %c0_i32_0 = arith.constant 0 : i32
    return %arg0, %c0_i32 : i32, i32
  }
}

</mosaic_0001>

<llo_original>
// kernel: next_char_forward.1
$region0: #{next_char_forward.1}
  #allocation0 [shape = 'u32[]', space=smem, size = 0x4, offset = 0x4, fixed_abs, tag = 'smem constant byte address 0x4 - core index']
  #allocation1 [shape = 'u32[144,128]{1,0:T(1,128)}', space=vmem, size = 0x12000, scoped, tag = 'internal scratch']
  %s0 = inlined_call_operand.vmem [shape: s32[256,8], index: 0, kind: input, shape index: {}]
  %s1 = inlined_call_operand.vmem [shape: bf16[128,16], index: 1, kind: input, shape index: {}]
  %s2 = inlined_call_operand.vmem [shape: bf16[128,128], index: 2, kind: input, shape index: {}]
  %s3 = inlined_call_operand.vmem [shape: f32[1,128], index: 3, kind: input, shape index: {}]
  %s4 = inlined_call_operand.vmem [shape: bf16[128,128], index: 4, kind: input, shape index: {}]
  %s5 = inlined_call_operand.vmem [shape: f32[1,128], index: 5, kind: input, shape index: {}]
  %s6 = inlined_call_operand.hbm [shape: f32[256,128], index: 6, kind: output, shape index: {}]
  %s7 = sld [smem:[#allocation0]]
  $region57: #{next_char_forward.1} parent=0
    _
  %s9 = ssub.s32 1, %s7
  %s10 = scalar_select 0, %s9, %s7
  $region1: #{next_char_forward.1} parent=0
    #allocation2 [shape = 'u8[131072]{0}', space=vmem, size = 0x20000, scoped, tag = 'output window, operand 0']
    #allocation3 [shape = 's32[2]{0}', space=sflag, size = 0x8, scoped, tag = 'scoped memory for next_char_forward.1']
    %11 = vsyncpa [#allocation3], 0
    %s12 = scalar_lea.sflag [#allocation3], 1
    %13 = vsyncpa %s12, 0
    loop: start=0, step=1, limit=4
    $region2: #{next_char_forward.1} parent=1 // loop_pre_header
      _
    $region3: #{next_char_forward.1} parent=1 // loop_header
      %s15 = sphi 0, %s19
      %p16 = scmp.ge.s32.totalorder %s15, 4
      %s25 = sphi 0, %s27
      %s28 = sphi 0, %s25
      %s29 = sphi 0, %s28
      %s45 = sphi 0, %s29
      %s49 = sphi 0, %s49
      %s51 = sphi 0, %s49
      %s52 = sphi 0, %s51
      %s66 = sphi 0, %s52
      %s70 = sphi 0, %s70
      %s72 = sphi 0, %s70
      %s73 = sphi 0, %s72
      %s87 = sphi 0, %s73
      %s91 = sphi 0, %s91
      %s93 = sphi 0, %s91
      %s94 = sphi 0, %s93
      %s108 = sphi 0, %s94
      %s112 = sphi 0, %s112
      %s114 = sphi 0, %s112
      %s115 = sphi 0, %s114
      %s129 = sphi 0, %s115
      %s133 = sphi 0, %s133
      %s135 = sphi 0, %s133
      %s136 = sphi 0, %s135
      %s150 = sphi 0, %s136
      %s156 = sphi 0, %s158
      %s159 = sphi 0, %s156
      %s160 = sphi 0, %s159
      %s176 = sphi 0, %s160
    $region4: #{next_char_forward.1} parent=1 // loop_header_branch
      %18 = sbr.rel (%p16) target = $region8
    $region5: #{next_char_forward.1} parent=1 // loop_body
      %s20 = ssub.s32 %s15, 1
      %s21 = ssub.s32 %s15, 2
      %s22 = sadd.s32 %s15, 1
      %s23 = ssub.s32 %s15, %s22
      %p24 = scmp.eq.s32.totalorder %s23, 0
      %s26 = sadd.s32 %s25, 1
      %s27 = scalar_select %p24, %s25, %s26
      %p30 = pneg %p24
      %p31 = scmp.eq.s32.totalorder %s15, 1
      %p32 = por %p30, %p31
      %p33 = scmp.ne.s32.totalorder %s25, %s28
      %p34 = scmp.eq.s32.totalorder %s15, 0
      %p35 = por %p33, %p34
      %p36 = scmp.ne.s32.totalorder %s25, %s28
      %p37 = scmp.eq.s32.totalorder %s20, 1
      %p38 = por %p36, %p37
      %p39 = scmp.ne.s32.totalorder %s28, %s29
      %p40 = scmp.eq.s32.totalorder %s20, 0
      %p41 = por %p39, %p40
      %p42 = scmp.ne.s32.totalorder %s28, %s29
      %p43 = scmp.eq.s32.totalorder %s21, 1
      %p44 = por %p42, %p43
      %p46 = scmp.ne.s32.totalorder %s29, %s45
      %p47 = scmp.eq.s32.totalorder %s21, 0
      %p48 = por %p46, %p47
      %s50 = sadd.s32 %s49, 1
      %p53 = scmp.eq.s32.totalorder %s15, 1
      %p54 = scmp.ne.s32.totalorder %s49, %s51
      %p55 = scmp.eq.s32.totalorder %s15, 0
      %p56 = por %p54, %p55
      %p57 = scmp.ne.s32.totalorder %s49, %s51
      %p58 = scmp.eq.s32.totalorder %s20, 1
      %p59 = por %p57, %p58
      %p60 = scmp.ne.s32.totalorder %s51, %s52
      %p61 = scmp.eq.s32.totalorder %s20, 0
      %p62 = por %p60, %p61
      %p63 = scmp.ne.s32.totalorder %s51, %s52
      %p64 = scmp.eq.s32.totalorder %s21, 1
      %p65 = por %p63, %p64
      %p67 = scmp.ne.s32.totalorder %s52, %s66
      %p68 = scmp.eq.s32.totalorder %s21, 0
      %p69 = por %p67, %p68
      %s71 = sadd.s32 %s70, 1
      %p74 = scmp.eq.s32.totalorder %s15, 1
      %p75 = scmp.ne.s32.totalorder %s70, %s72
      %p76 = scmp.eq.s32.totalorder %s15, 0
      %p77 = por %p75, %p76
      %p78 = scmp.ne.s32.totalorder %s70, %s72
      %p79 = scmp.eq.s32.totalorder %s20, 1
      %p80 = por %p78, %p79
      %p81 = scmp.ne.s32.totalorder %s72, %s73
      %p82 = scmp.eq.s32.totalorder %s20, 0
      %p83 = por %p81, %p82
      %p84 = scmp.ne.s32.totalorder %s72, %s73
      %p85 = scmp.eq.s32.totalorder %s21, 1
      %p86 = por %p84, %p85
      %p88 = scmp.ne.s32.totalorder %s73, %s87
      %p89 = scmp.eq.s32.totalorder %s21, 0
      %p90 = por %p88, %p89
      %s92 = sadd.s32 %s91, 1
      %p95 = scmp.eq.s32.totalorder %s15, 1
      %p96 = scmp.ne.s32.totalorder %s91, %s93
      %p97 = scmp.eq.s32.totalorder %s15, 0
      %p98 = por %p96, %p97
      %p99 = scmp.ne.s32.totalorder %s91, %s93
      %p100 = scmp.eq.s32.totalorder %s20, 1
      %p101 = por %p99, %p100
      %p102 = scmp.ne.s32.totalorder %s93, %s94
      %p103 = scmp.eq.s32.totalorder %s20, 0
      %p104 = por %p102, %p103
      %p105 = scmp.ne.s32.totalorder %s93, %s94
      %p106 = scmp.eq.s32.totalorder %s21, 1
      %p107 = por %p105, %p106
      %p109 = scmp.ne.s32.totalorder %s94, %s108
      %p110 = scmp.eq.s32.totalorder %s21, 0
      %p111 = por %p109, %p110
      %s113 = sadd.s32 %s112, 1
      %p116 = scmp.eq.s32.totalorder %s15, 1
      %p117 = scmp.ne.s32.totalorder %s112, %s114
      %p118 = scmp.eq.s32.totalorder %s15, 0
      %p119 = por %p117, %p118
      %p120 = scmp.ne.s32.totalorder %s112, %s114
      %p121 = scmp.eq.s32.totalorder %s20, 1
      %p122 = por %p120, %p121
      %p123 = scmp.ne.s32.totalorder %s114, %s115
      %p124 = scmp.eq.s32.totalorder %s20, 0
      %p125 = por %p123, %p124
      %p126 = scmp.ne.s32.totalorder %s114, %s115
      %p127 = scmp.eq.s32.totalorder %s21, 1
      %p128 = por %p126, %p127
      %p130 = scmp.ne.s32.totalorder %s115, %s129
      %p131 = scmp.eq.s32.totalorder %s21, 0
      %p132 = por %p130, %p131
      %s134 = sadd.s32 %s133, 1
      %p137 = scmp.eq.s32.totalorder %s15, 1
      %p138 = scmp.ne.s32.totalorder %s133, %s135
      %p139 = scmp.eq.s32.totalorder %s15, 0
      %p140 = por %p138, %p139
      %p141 = scmp.ne.s32.totalorder %s133, %s135
      %p142 = scmp.eq.s32.totalorder %s20, 1
      %p143 = por %p141, %p142
      %p144 = scmp.ne.s32.totalorder %s135, %s136
      %p145 = scmp.eq.s32.totalorder %s20, 0
      %p146 = por %p144, %p145
      %p147 = scmp.ne.s32.totalorder %s135, %s136
      %p148 = scmp.eq.s32.totalorder %s21, 1
      %p149 = por %p147, %p148
      %p151 = scmp.ne.s32.totalorder %s136, %s150
      %p152 = scmp.eq.s32.totalorder %s21, 0
      %p153 = por %p151, %p152
      %s154 = ssub.s32 %s15, %s22
      %p155 = scmp.eq.s32.totalorder %s154, 0
      %s157 = sadd.s32 %s156, 1
      %s158 = scalar_select %p155, %s156, %s157
      %p161 = pneg %p155
      %p162 = scmp.eq.s32.totalorder %s15, 1
      %p163 = por %p161, %p162
      %p164 = scmp.ne.s32.totalorder %s156, %s159
      %p165 = scmp.eq.s32.totalorder %s15, 0
      %p166 = por %p164, %p165
      %p167 = scmp.ne.s32.totalorder %s156, %s159
      %p168 = scmp.eq.s32.totalorder %s20, 1
      %p169 = por %p167, %p168
      %p170 = scmp.ne.s32.totalorder %s159, %s160
      %p171 = scmp.eq.s32.totalorder %s20, 0
      %p172 = por %p170, %p171
      %p173 = scmp.ne.s32.totalorder %s159, %s160
      %p174 = scmp.eq.s32.totalorder %s21, 1
      %p175 = por %p173, %p174
      %p177 = scmp.ne.s32.totalorder %s160, %s176
      %p178 = scmp.eq.s32.totalorder %s21, 0
      %p179 = por %p177, %p178
      %p180 = scmp.le.s32.totalorder 1, %s15
      %p181 = scmp.lt.s32.totalorder %s15, 3
      %p182 = pnand %p180, %p181
      %p183 = pneg %p182
      // Predicated region
      $region9: #{next_char_forward.1} parent=5 // pred_check
        _
      $region10: #{next_char_forward.1} parent=5 // pred_check_branch
        %185 = sbr.rel (%p182) target = $region12
      $region11: #{next_char_forward.1} parent=5 // pred_region
        %s186 = ssub.s32 %s15, 1
        // Predicated region
        $region13: #{next_char_forward.1} parent=11 // pred_check
          %p187 = pneg %p62
        $region14: #{next_char_forward.1} parent=11 // pred_check_branch
          %189 = sbr.rel (%p187) target = $region16
        $region15: #{next_char_forward.1} parent=11 // pred_region
          _
        $region16: #{next_char_forward.1} parent=11 // pred_fallthru
          _
        // Predicated region
        $region17: #{next_char_forward.1} parent=11 // pred_check
          %p190 = pneg %p83
        $region18: #{next_char_forward.1} parent=11 // pred_check_branch
          %192 = sbr.rel (%p190) target = $region20
        $region19: #{next_char_forward.1} parent=11 // pred_region
          _
        $region20: #{next_char_forward.1} parent=11 // pred_fallthru
          _
        // Predicated region
        $region21: #{next_char_forward.1} parent=11 // pred_check
          %p193 = pneg %p104
        $region22: #{next_char_forward.1} parent=11 // pred_check_branch
          %195 = sbr.rel (%p193) target = $region24
        $region23: #{next_char_forward.1} parent=11 // pred_region
          _
        $region24: #{next_char_forward.1} parent=11 // pred_fallthru
          _
        // Predicated region
        $region25: #{next_char_forward.1} parent=11 // pred_check
          %p196 = pneg %p125
        $region26: #{next_char_forward.1} parent=11 // pred_check_branch
          %198 = sbr.rel (%p196) target = $region28
        $region27: #{next_char_forward.1} parent=11 // pred_region
          _
        $region28: #{next_char_forward.1} parent=11 // pred_fallthru
          _
        // Predicated region
        $region29: #{next_char_forward.1} parent=11 // pred_check
          %p199 = pneg %p146
        $region30: #{next_char_forward.1} parent=11 // pred_check_branch
          %201 = sbr.rel (%p199) target = $region32
        $region31: #{next_char_forward.1} parent=11 // pred_region
          _
        $region32: #{next_char_forward.1} parent=11 // pred_fallthru
          _
      $region12: #{next_char_forward.1} parent=5 // pred_fallthru
        _
      %p202 = scmp.lt.s32.totalorder %s15, 2
      // Predicated region
      $region33: #{next_char_forward.1} parent=5 // pred_check
        %p203 = pneg %p202
      $region34: #{next_char_forward.1} parent=5 // pred_check_branch
        %205 = sbr.rel (%p203) target = $region36
      $region35: #{next_char_forward.1} parent=5 // pred_region
        // Predicated region
        $region37: #{next_char_forward.1} parent=35 // pred_check
          %p206 = pneg %p35
        $region38: #{next_char_forward.1} parent=35 // pred_check_branch
          %208 = sbr.rel (%p206) target = $region40
        $region39: #{next_char_forward.1} parent=35 // pred_region
          %s209 = smul.u32 16, %s15
          %p210 = scmp.lt.s32.totalorder %s209, 31
          %s211 = scalar_select %p210, %s209, 31
          %s212 = smul.addr %s211, 8
          %s213 = scalar_lea.vmem %s0, %s212
          %s214 = smul.u32 16, %s15
        $region40: #{next_char_forward.1} parent=35 // pred_fallthru
          _
      $region36: #{next_char_forward.1} parent=5 // pred_fallthru
        _
      %p215 = scmp.le.s32.totalorder 1, %s15
      %p216 = scmp.lt.s32.totalorder %s15, 3
      %p217 = pnand %p215, %p216
      %p218 = pneg %p217
      // Predicated region
      $region41: #{next_char_forward.1} parent=5 // pred_check
        _
      $region42: #{next_char_forward.1} parent=5 // pred_check_branch
        %220 = sbr.rel (%p217) target = $region44
      $region43: #{next_char_forward.1} parent=5 // pred_region
        %s221 = ssub.s32 %s15, 1
        %s222 = smul.u32 16, %s20
        %p223 = scmp.lt.s32.totalorder %s222, 31
        %s224 = scalar_select %p223, %s222, 31
        %s225 = smul.addr %s224, 8
        %s226 = scalar_lea.vmem %s0, %s225
        %p227 = pneg %p41
        %p228 = pneg %p38
        %p229 = pneg %p62
        %p230 = pneg %p59
        %p231 = pneg %p83
        %p232 = pneg %p80
        %p233 = pneg %p104
        %p234 = pneg %p101
        %p235 = pneg %p125
        %p236 = pneg %p122
        %p237 = pneg %p146
        %p238 = pneg %p143
        %p239 = pneg %p172
        %p240 = pneg %p169
        %s241 = sand.u32 %s159, 1
        %s242 = scalar_lea.sflag [#allocation3], %s241
        %s243 = sand.u32 %s159, 1
        %s244 = smul.addr %s243, 128
        %s245 = scalar_lea.vmem [#allocation2], %s244
        %s246 = smul.u32 16, %s20
        %p247 = scmp.lt.s32.totalorder %s246, 31
        %s248 = scalar_select %p247, %s246, 31
        %s249 = smul.addr %s248, 8
        %s250 = scalar_lea.vmem %s0, %s249
        %s251 = smul.u32 16, %s20
        %s252 = smul.u32 16, %s20
        %v254 = vld [vmem:[%s250] sm:$0xff]
        %v255 = vld [vmem:[%s250 + $0x8] sm:$0xff]
        %v256 = vld [vmem:[%s250 + $0x10] sm:$0xff]
        %v257 = vld [vmem:[%s250 + $0x18] sm:$0xff]
        %v258 = vld [vmem:[%s250 + $0x20] sm:$0xff]
        %v259 = vld [vmem:[%s250 + $0x28] sm:$0xff]
        %v260 = vld [vmem:[%s250 + $0x30] sm:$0xff]
        %v261 = vld [vmem:[%s250 + $0x38] sm:$0xff]
        %v262 = vld [vmem:[%s250 + $0x40] sm:$0xff]
        %v263 = vld [vmem:[%s250 + $0x48] sm:$0xff]
        %v264 = vld [vmem:[%s250 + $0x50] sm:$0xff]
        %v265 = vld [vmem:[%s250 + $0x58] sm:$0xff]
        %v266 = vld [vmem:[%s250 + $0x60] sm:$0xff]
        %v267 = vld [vmem:[%s250 + $0x68] sm:$0xff]
        %v268 = vld [vmem:[%s250 + $0x70] sm:$0xff]
        %v269 = vld [vmem:[%s250 + $0x78] sm:$0xff]
        %v270 = vld [vmem:[%s1] sm:$0xf]
        %v271 = vld [vmem:[%s1 + $0x4] sm:$0xf]
        %v272 = vld [vmem:[%s1 + $0x8] sm:$0xf]
        %v273 = vld [vmem:[%s1 + $0xc] sm:$0xf]
        %v274 = vld [vmem:[%s1 + $0x10] sm:$0xf]
        %v275 = vld [vmem:[%s1 + $0x14] sm:$0xf]
        %v276 = vld [vmem:[%s1 + $0x18] sm:$0xf]
        %v277 = vld [vmem:[%s1 + $0x1c] sm:$0xf]
        %v278 = vld [vmem:[%s1 + $0x20] sm:$0xf]
        %v279 = vld [vmem:[%s1 + $0x24] sm:$0xf]
        %v280 = vld [vmem:[%s1 + $0x28] sm:$0xf]
        %v281 = vld [vmem:[%s1 + $0x2c] sm:$0xf]
        %v282 = vld [vmem:[%s1 + $0x30] sm:$0xf]
        %v283 = vld [vmem:[%s1 + $0x34] sm:$0xf]
        %v284 = vld [vmem:[%s1 + $0x38] sm:$0xf]
        %v285 = vld [vmem:[%s1 + $0x3c] sm:$0xf]
        %v286 = vlaneseq
        %v287 = vand.u32 %v286, 127
        %288 = vset.pattern.permute.xlu0 0
        %289 = vperm.xlu0 %288, %v254
        %v290 = vpop.permute.xlu0 %289
        %291 = vset.pattern.permute.xlu0 0
        %292 = vperm.xlu0 %291, %v255
        %v293 = vpop.permute.xlu0 %292
        %294 = vset.pattern.permute.xlu0 0
        %295 = vperm.xlu0 %294, %v256
        %v296 = vpop.permute.xlu0 %295
        %297 = vset.pattern.permute.xlu0 0
        %298 = vperm.xlu0 %297, %v257
        %v299 = vpop.permute.xlu0 %298
        %300 = vset.pattern.permute.xlu0 0
        %301 = vperm.xlu0 %300, %v258
        %v302 = vpop.permute.xlu0 %301
        %303 = vset.pattern.permute.xlu0 0
        %304 = vperm.xlu0 %303, %v259
        %v305 = vpop.permute.xlu0 %304
        %306 = vset.pattern.permute.xlu0 0
        %307 = vperm.xlu0 %306, %v260
        %v308 = vpop.permute.xlu0 %307
        %309 = vset.pattern.permute.xlu0 0
        %310 = vperm.xlu0 %309, %v261
        %v311 = vpop.permute.xlu0 %310
        %312 = vset.pattern.permute.xlu0 0
        %313 = vperm.xlu0 %312, %v262
        %v314 = vpop.permute.xlu0 %313
        %315 = vset.pattern.permute.xlu0 0
        %316 = vperm.xlu0 %315, %v263
        %v317 = vpop.permute.xlu0 %316
        %318 = vset.pattern.permute.xlu0 0
        %319 = vperm.xlu0 %318, %v264
        %v320 = vpop.permute.xlu0 %319
        %321 = vset.pattern.permute.xlu0 0
        %322 = vperm.xlu0 %321, %v265
        %v323 = vpop.permute.xlu0 %322
        %324 = vset.pattern.permute.xlu0 0
        %325 = vperm.xlu0 %324, %v266
        %v326 = vpop.permute.xlu0 %325
        %327 = vset.pattern.permute.xlu0 0
        %328 = vperm.xlu0 %327, %v267
        %v329 = vpop.permute.xlu0 %328
        %330 = vset.pattern.permute.xlu0 0
        %331 = vperm.xlu0 %330, %v268
        %v332 = vpop.permute.xlu0 %331
        %333 = vset.pattern.permute.xlu0 0
        %334 = vperm.xlu0 %333, %v269
        %v335 = vpop.permute.xlu0 %334
        %vm336 = vcmp.eq.s32.totalorder %v290, %v287
        %vm337 = vcmp.eq.s32.totalorder %v293, %v287
        %vm338 = vcmp.eq.s32.totalorder %v296, %v287
        %vm339 = vcmp.eq.s32.totalorder %v299, %v287
        %vm340 = vcmp.eq.s32.totalorder %v302, %v287
        %vm341 = vcmp.eq.s32.totalorder %v305, %v287
        %vm342 = vcmp.eq.s32.totalorder %v308, %v287
        %vm343 = vcmp.eq.s32.totalorder %v311, %v287
        %vm344 = vcmp.eq.s32.totalorder %v314, %v287
        %vm345 = vcmp.eq.s32.totalorder %v317, %v287
        %vm346 = vcmp.eq.s32.totalorder %v320, %v287
        %vm347 = vcmp.eq.s32.totalorder %v323, %v287
        %vm348 = vcmp.eq.s32.totalorder %v326, %v287
        %vm349 = vcmp.eq.s32.totalorder %v329, %v287
        %vm350 = vcmp.eq.s32.totalorder %v332, %v287
        %vm351 = vcmp.eq.s32.totalorder %v335, %v287
        %v352 = vsel %vm336, 1, 0
        %v353 = vsel %vm337, 1, 0
        %v354 = vsel %vm338, 1, 0
        %v355 = vsel %vm339, 1, 0
        %v356 = vsel %vm340, 1, 0
        %v357 = vsel %vm341, 1, 0
        %v358 = vsel %vm342, 1, 0
        %v359 = vsel %vm343, 1, 0
        %v360 = vsel %vm344, 1, 0
        %v361 = vsel %vm345, 1, 0
        %v362 = vsel %vm346, 1, 0
        %v363 = vsel %vm347, 1, 0
        %v364 = vsel %vm348, 1, 0
        %v365 = vsel %vm349, 1, 0
        %v366 = vsel %vm350, 1, 0
        %v367 = vsel %vm351, 1, 0
        %v368 = vcvt.s32.f32 %v352
        %v369 = vcvt.s32.f32 %v353
        %v370 = vcvt.s32.f32 %v354
        %v371 = vcvt.s32.f32 %v355
        %v372 = vcvt.s32.f32 %v356
        %v373 = vcvt.s32.f32 %v357
        %v374 = vcvt.s32.f32 %v358
        %v375 = vcvt.s32.f32 %v359
        %v376 = vcvt.s32.f32 %v360
        %v377 = vcvt.s32.f32 %v361
        %v378 = vcvt.s32.f32 %v362
        %v379 = vcvt.s32.f32 %v363
        %v380 = vcvt.s32.f32 %v364
        %v381 = vcvt.s32.f32 %v365
        %v382 = vcvt.s32.f32 %v366
        %v383 = vcvt.s32.f32 %v367
        %v384 = vpack.c.bf16 %v369, %v368
        %v385 = vpack.c.bf16 %v371, %v370
        %v386 = vpack.c.bf16 %v373, %v372
        %v387 = vpack.c.bf16 %v375, %v374
        %v388 = vpack.c.bf16 %v377, %v376
        %v389 = vpack.c.bf16 %v379, %v378
        %v390 = vpack.c.bf16 %v381, %v380
        %v391 = vpack.c.bf16 %v383, %v382
        %v408 = vunpack.c.l.b16 %v270
        %v409 = vunpack.c.l.b16 %v271
        %v410 = vunpack.c.l.b16 %v272
        %v411 = vunpack.c.l.b16 %v273
        %v412 = vunpack.c.l.b16 %v274
        %v413 = vunpack.c.l.b16 %v275
        %v414 = vunpack.c.l.b16 %v276
        %v415 = vunpack.c.l.b16 %v277
        %v416 = vunpack.c.l.b16 %v278
        %v417 = vunpack.c.l.b16 %v279
        %v418 = vunpack.c.l.b16 %v280
        %v419 = vunpack.c.l.b16 %v281
        %v420 = vunpack.c.l.b16 %v282
        %v421 = vunpack.c.l.b16 %v283
        %v422 = vunpack.c.l.b16 %v284
        %v423 = vunpack.c.l.b16 %v285
        %v424 = vpack.c.b16 %v409, %v408
        %v425 = vpack.c.b16 %v411, %v410
        %v426 = vpack.c.b16 %v413, %v412
        %v427 = vpack.c.b16 %v415, %v414
        %v428 = vpack.c.b16 %v417, %v416
        %v429 = vpack.c.b16 %v419, %v418
        %v430 = vpack.c.b16 %v421, %v420
        %v431 = vpack.c.b16 %v423, %v422
        %440 = vmatprep.subr.bf16.mxu0 0
        %441 = vmatpush1.bf16.msra.mxu0 %v424
        %442 = vmatprep.subr.bf16.mxu0 0
        %443 = vmatpush1.bf16.msra.mxu0 %v425
        %444 = vmatprep.subr.bf16.mxu0 0
        %445 = vmatpush1.bf16.msra.mxu0 %v426
        %446 = vmatprep.subr.bf16.mxu0 0
        %447 = vmatpush1.bf16.msra.mxu0 %v427
        %448 = vmatprep.subr.bf16.mxu0 0
        %449 = vmatpush1.bf16.msra.mxu0 %v428
        %450 = vmatprep.subr.bf16.mxu0 0
        %451 = vmatpush1.bf16.msra.mxu0 %v429
        %452 = vmatprep.subr.bf16.mxu0 0
        %453 = vmatpush1.bf16.msra.mxu0 %v430
        %454 = vmatprep.subr.bf16.mxu0 0
        %455 = vmatpush1.bf16.msra.mxu0 %v431
        %456 = vmatprep.subr.bf16.mxu0 0
        %457 = vmatpush1.bf16.msra.mxu0 0
        %458 = vmatprep.subr.bf16.mxu0 0
        %459 = vmatpush1.bf16.msra.mxu0 0
        %460 = vmatprep.subr.bf16.mxu0 0
        %461 = vmatpush1.bf16.msra.mxu0 0
        %462 = vmatprep.subr.bf16.mxu0 0
        %463 = vmatpush1.bf16.msra.mxu0 0
        %464 = vmatprep.subr.bf16.mxu0 0
        %465 = vmatpush1.bf16.msra.mxu0 0
        %466 = vmatprep.subr.bf16.mxu0 0
        %467 = vmatpush1.bf16.msra.mxu0 0
        %468 = vmatprep.subr.bf16.mxu0 0
        %469 = vmatpush1.bf16.msra.mxu0 0
        %470 = vmatprep.subr.bf16.mxu0 0
        %471 = vmatpush1.bf16.msra.mxu0 0
        %472 = vmatprep.mubr.bf16.mxu0 0
        %473 = vmatmul.mubr.bf16.gmra.mrb[0].mxu0 %v384
        %v474 = vpop.f32.mrb[0].mxu0
        %v475 = vadd.f32 0.0, %v474
        %v476 = vpop.f32.mrb[0].mxu0
        %v477 = vpop.f32.mrb[0].mxu0
        %v478 = vadd.f32 0.0, %v477
        %v479 = vpop.f32.mrb[0].mxu0
        %480 = vmatprep.mubr.bf16.mxu0 0
        %481 = vmatmul.mubr.bf16.gmra.mrb[0].mxu0 %v385
        %v482 = vpop.f32.mrb[0].mxu0
        %v483 = vadd.f32 0.0, %v482
        %v484 = vpop.f32.mrb[0].mxu0
        %v485 = vpop.f32.mrb[0].mxu0
        %v486 = vadd.f32 0.0, %v485
        %v487 = vpop.f32.mrb[0].mxu0
        %488 = vmatprep.mubr.bf16.mxu0 0
        %489 = vmatmul.mubr.bf16.gmra.mrb[0].mxu0 %v386
        %v490 = vpop.f32.mrb[0].mxu0
        %v491 = vadd.f32 0.0, %v490
        %v492 = vpop.f32.mrb[0].mxu0
        %v493 = vpop.f32.mrb[0].mxu0
        %v494 = vadd.f32 0.0, %v493
        %v495 = vpop.f32.mrb[0].mxu0
        %496 = vmatprep.mubr.bf16.mxu0 0
        %497 = vmatmul.mubr.bf16.gmra.mrb[0].mxu0 %v387
        %v498 = vpop.f32.mrb[0].mxu0
        %v499 = vadd.f32 0.0, %v498
        %v500 = vpop.f32.mrb[0].mxu0
        %v501 = vpop.f32.mrb[0].mxu0
        %v502 = vadd.f32 0.0, %v501
        %v503 = vpop.f32.mrb[0].mxu0
        %504 = vmatprep.mubr.bf16.mxu0 0
        %505 = vmatmul.mubr.bf16.gmra.mrb[0].mxu0 %v388
        %v506 = vpop.f32.mrb[0].mxu0
        %v507 = vadd.f32 0.0, %v506
        %v508 = vpop.f32.mrb[0].mxu0
        %v509 = vpop.f32.mrb[0].mxu0
        %v510 = vadd.f32 0.0, %v509
        %v511 = vpop.f32.mrb[0].mxu0
        %512 = vmatprep.mubr.bf16.mxu0 0
        %513 = vmatmul.mubr.bf16.gmra.mrb[0].mxu0 %v389
        %v514 = vpop.f32.mrb[0].mxu0
        %v515 = vadd.f32 0.0, %v514
        %v516 = vpop.f32.mrb[0].mxu0
        %v517 = vpop.f32.mrb[0].mxu0
        %v518 = vadd.f32 0.0, %v517
        %v519 = vpop.f32.mrb[0].mxu0
        %520 = vmatprep.mubr.bf16.mxu0 0
        %521 = vmatmul.mubr.bf16.gmra.mrb[0].mxu0 %v390
        %v522 = vpop.f32.mrb[0].mxu0
        %v523 = vadd.f32 0.0, %v522
        %v524 = vpop.f32.mrb[0].mxu0
        %v525 = vpop.f32.mrb[0].mxu0
        %v526 = vadd.f32 0.0, %v525
        %v527 = vpop.f32.mrb[0].mxu0
        %528 = vmatprep.mubr.bf16.mxu0 0
        %529 = vmatmul.mubr.bf16.gmra.mrb[0].mxu0 %v391
        %v530 = vpop.f32.mrb[0].mxu0
        %v531 = vadd.f32 0.0, %v530
        %v532 = vpop.f32.mrb[0].mxu0
        %v533 = vpop.f32.mrb[0].mxu0
        %v534 = vadd.f32 0.0, %v533
        %v535 = vpop.f32.mrb[0].mxu0
        %536 = vdwg.mxu0
        %v537 = vpack.c.bf16 %v478, %v475
        %v538 = vpack.c.bf16 %v486, %v483
        %v539 = vpack.c.bf16 %v494, %v491
        %v540 = vpack.c.bf16 %v502, %v499
        %v541 = vpack.c.bf16 %v510, %v507
        %v542 = vpack.c.bf16 %v518, %v515
        %v543 = vpack.c.bf16 %v526, %v523
        %v544 = vpack.c.bf16 %v534, %v531
        %v545 = vld [vmem:[%s2] sm:$0xf]
        %v546 = vld [vmem:[%s2 + $0x4] sm:$0xf]
        %547 = vset.pattern.permute.xlu0 1
        %548 = vperm.xlu0 %547, %v254
        %v549 = vpop.permute.xlu0 %548
        %550 = vset.pattern.permute.xlu0 1
        %551 = vperm.xlu0 %550, %v255
        %v552 = vpop.permute.xlu0 %551
        %553 = vset.pattern.permute.xlu0 1
        %554 = vperm.xlu0 %553, %v256
        %v555 = vpop.permute.xlu0 %554
        %556 = vset.pattern.permute.xlu0 1
        %557 = vperm.xlu0 %556, %v257
        %v558 = vpop.permute.xlu0 %557
        %559 = vset.pattern.permute.xlu0 1
        %560 = vperm.xlu0 %559, %v258
        %v561 = vpop.permute.xlu0 %560
        %562 = vset.pattern.permute.xlu0 1
        %563 = vperm.xlu0 %562, %v259
        %v564 = vpop.permute.xlu0 %563
        %565 = vset.pattern.permute.xlu0 1
        %566 = vperm.xlu0 %565, %v260
        %v567 = vpop.permute.xlu0 %566
        %568 = vset.pattern.permute.xlu0 1
        %569 = vperm.xlu0 %568, %v261
        %v570 = vpop.permute.xlu0 %569
        %571 = vset.pattern.permute.xlu0 1
        %572 = vperm.xlu0 %571, %v262
        %v573 = vpop.permute.xlu0 %572
        %574 = vset.pattern.permute.xlu0 1
        %575 = vperm.xlu0 %574, %v263
        %v576 = vpop.permute.xlu0 %575
        %577 = vset.pattern.permute.xlu0 1
        %578 = vperm.xlu0 %577, %v264
        %v579 = vpop.permute.xlu0 %578
        %580 = vset.pattern.permute.xlu0 1
        %581 = vperm.xlu0 %580, %v265
        %v582 = vpop.permute.xlu0 %581
        %583 = vset.pattern.permute.xlu0 1
        %584 = vperm.xlu0 %583, %v266
        %v585 = vpop.permute.xlu0 %584
        %586 = vset.pattern.permute.xlu0 1
        %587 = vperm.xlu0 %586, %v267
        %v588 = vpop.permute.xlu0 %587
        %589 = vset.pattern.permute.xlu0 1
        %590 = vperm.xlu0 %589, %v268
        %v591 = vpop.permute.xlu0 %590
        %592 = vset.pattern.permute.xlu0 1
        %593 = vperm.xlu0 %592, %v269
        %v594 = vpop.permute.xlu0 %593
        %vm595 = vcmp.eq.s32.totalorder %v549, %v287
        %vm596 = vcmp.eq.s32.totalorder %v552, %v287
        %vm597 = vcmp.eq.s32.totalorder %v555, %v287
        %vm598 = vcmp.eq.s32.totalorder %v558, %v287
        %vm599 = vcmp.eq.s32.totalorder %v561, %v287
        %vm600 = vcmp.eq.s32.totalorder %v564, %v287
        %vm601 = vcmp.eq.s32.totalorder %v567, %v287
        %vm602 = vcmp.eq.s32.totalorder %v570, %v287
        %vm603 = vcmp.eq.s32.totalorder %v573, %v287
        %vm604 = vcmp.eq.s32.totalorder %v576, %v287
        %vm605 = vcmp.eq.s32.totalorder %v579, %v287
        %vm606 = vcmp.eq.s32.totalorder %v582, %v287
        %vm607 = vcmp.eq.s32.totalorder %v585, %v287
        %vm608 = vcmp.eq.s32.totalorder %v588, %v287
        %vm609 = vcmp.eq.s32.totalorder %v591, %v287
        %vm610 = vcmp.eq.s32.totalorder %v594, %v287
        %v611 = vsel %vm595, 1, 0
        %v612 = vsel %vm596, 1, 0
        %v613 = vsel %vm597, 1, 0
        %v614 = vsel %vm598, 1, 0
        %v615 = vsel %vm599, 1, 0
        %v616 = vsel %vm600, 1, 0
        %v617 = vsel %vm601, 1, 0
        %v618 = vsel %vm602, 1, 0
        %v619 = vsel %vm603, 1, 0
        %v620 = vsel %vm604, 1, 0
        %v621 = vsel %vm605, 1, 0
        %v622 = vsel %vm606, 1, 0
        %v623 = vsel %vm607, 1, 0
        %v624 = vsel %vm608, 1, 0
        %v625 = vsel %vm609, 1, 0
        %v626 = vsel %vm610, 1, 0
        %v627 = vcvt.s32.f32 %v611
        %v628 = vcvt.s32.f32 %v612
        %v629 = vcvt.s32.f32 %v613
        %v630 = vcvt.s32.f32 %v614
        %v631 = vcvt.s32.f32 %v615
        %v632 = vcvt.s32.f32 %v616
        %v633 = vcvt.s32.f32 %v617
        %v634 = vcvt.s32.f32 %v618
        %v635 = vcvt.s32.f32 %v619
        %v636 = vcvt.s32.f32 %v620
        %v637 = vcvt.s32.f32 %v621
        %v638 = vcvt.s32.f32 %v622
        %v639 = vcvt.s32.f32 %v623
        %v640 = vcvt.s32.f32 %v624
        %v641 = vcvt.s32.f32 %v625
        %v642 = vcvt.s32.f32 %v626
        %v643 = vpack.c.bf16 %v628, %v627
        %v644 = vpack.c.bf16 %v630, %v629
        %v645 = vpack.c.bf16 %v632, %v631
        %v646 = vpack.c.bf16 %v634, %v633
        %v647 = vpack.c.bf16 %v636, %v635
        %v648 = vpack.c.bf16 %v638, %v637
        %v649 = vpack.c.bf16 %v640, %v639
        %v650 = vpack.c.bf16 %v642, %v641
        %651 = vmatprep.subr.bf16.mxu0 0
        %652 = vmatpush1.bf16.msra.mxu0 %v424
        %653 = vmatprep.subr.bf16.mxu0 0
        %654 = vmatpush1.bf16.msra.mxu0 %v425
        %655 = vmatprep.subr.bf16.mxu0 0
        %656 = vmatpush1.bf16.msra.mxu0 %v426
        %657 = vmatprep.subr.bf16.mxu0 0
        %658 = vmatpush1.bf16.msra.mxu0 %v427
        %659 = vmatprep.subr.bf16.mxu0 0
        %660 = vmatpush1.bf16.msra.mxu0 %v428
        %661 = vmatprep.subr.bf16.mxu0 0
        %662 = vmatpush1.bf16.msra.mxu0 %v429
        %663 = vmatprep.subr.bf16.mxu0 0
        %664 = vmatpush1.bf16.msra.mxu0 %v430
        %665 = vmatprep.subr.bf16.mxu0 0
        %666 = vmatpush1.bf16.msra.mxu0 %v431
        %667 = vmatprep.subr.bf16.mxu0 0
        %668 = vmatpush1.bf16.msra.mxu0 0
        %669 = vmatprep.subr.bf16.mxu0 0
        %670 = vmatpush1.bf16.msra.mxu0 0
        %671 = vmatprep.subr.bf16.mxu0 0
        %672 = vmatpush1.bf16.msra.mxu0 0
        %673 = vmatprep.subr.bf16.mxu0 0
        %674 = vmatpush1.bf16.msra.mxu0 0
        %675 = vmatprep.subr.bf16.mxu0 0
        %676 = vmatpush1.bf16.msra.mxu0 0
        %677 = vmatprep.subr.bf16.mxu0 0
        %678 = vmatpush1.bf16.msra.mxu0 0
        %679 = vmatprep.subr.bf16.mxu0 0
        %680 = vmatpush1.bf16.msra.mxu0 0
        %681 = vmatprep.subr.bf16.mxu0 0
        %682 = vmatpush1.bf16.msra.mxu0 0
        %683 = vmatprep.mubr.bf16.mxu0 0
        %684 = vmatmul.mubr.bf16.gmra.mrb[0].mxu0 %v643
        %v685 = vpop.f32.mrb[0].mxu0
        %v686 = vadd.f32 0.0, %v685
        %v687 = vpop.f32.mrb[0].mxu0
        %v688 = vpop.f32.mrb[0].mxu0
        %v689 = vadd.f32 0.0, %v688
        %v690 = vpop.f32.mrb[0].mxu0
        %691 = vmatprep.mubr.bf16.mxu0 0
        %692 = vmatmul.mubr.bf16.gmra.mrb[0].mxu0 %v644
        %v693 = vpop.f32.mrb[0].mxu0
        %v694 = vadd.f32 0.0, %v693
        %v695 = vpop.f32.mrb[0].mxu0
        %v696 = vpop.f32.mrb[0].mxu0
        %v697 = vadd.f32 0.0, %v696
        %v698 = vpop.f32.mrb[0].mxu0
        %699 = vmatprep.mubr.bf16.mxu0 0
        %700 = vmatmul.mubr.bf16.gmra.mrb[0].mxu0 %v645
        %v701 = vpop.f32.mrb[0].mxu0
        %v702 = vadd.f32 0.0, %v701
        %v703 = vpop.f32.mrb[0].mxu0
        %v704 = vpop.f32.mrb[0].mxu0
        %v705 = vadd.f32 0.0, %v704
        %v706 = vpop.f32.mrb[0].mxu0
        %707 = vmatprep.mubr.bf16.mxu0 0
        %708 = vmatmul.mubr.bf16.gmra.mrb[0].mxu0 %v646
        %v709 = vpop.f32.mrb[0].mxu0
        %v710 = vadd.f32 0.0, %v709
        %v711 = vpop.f32.mrb[0].mxu0
        %v712 = vpop.f32.mrb[0].mxu0
        %v713 = vadd.f32 0.0, %v712
        %v714 = vpop.f32.mrb[0].mxu0
        %715 = vmatprep.mubr.bf16.mxu0 0
        %716 = vmatmul.mubr.bf16.gmra.mrb[0].mxu0 %v647
        %v717 = vpop.f32.mrb[0].mxu0
        %v718 = vadd.f32 0.0, %v717
        %v719 = vpop.f32.mrb[0].mxu0
        %v720 = vpop.f32.mrb[0].mxu0
        %v721 = vadd.f32 0.0, %v720
        %v722 = vpop.f32.mrb[0].mxu0
        %723 = vmatprep.mubr.bf16.mxu0 0
        %724 = vmatmul.mubr.bf16.gmra.mrb[0].mxu0 %v648
        %v725 = vpop.f32.mrb[0].mxu0
        %v726 = vadd.f32 0.0, %v725
        %v727 = vpop.f32.mrb[0].mxu0
        %v728 = vpop.f32.mrb[0].mxu0
        %v729 = vadd.f32 0.0, %v728
        %v730 = vpop.f32.mrb[0].mxu0
        %731 = vmatprep.mubr.bf16.mxu0 0
        %732 = vmatmul.mubr.bf16.gmra.mrb[0].mxu0 %v649
        %v733 = vpop.f32.mrb[0].mxu0
        %v734 = vadd.f32 0.0, %v733
        %v735 = vpop.f32.mrb[0].mxu0
        %v736 = vpop.f32.mrb[0].mxu0
        %v737 = vadd.f32 0.0, %v736
        %v738 = vpop.f32.mrb[0].mxu0
        %739 = vmatprep.mubr.bf16.mxu0 0
        %740 = vmatmul.mubr.bf16.gmra.mrb[0].mxu0 %v650
        %v741 = vpop.f32.mrb[0].mxu0
        %v742 = vadd.f32 0.0, %v741
        %v743 = vpop.f32.mrb[0].mxu0
        %v744 = vpop.f32.mrb[0].mxu0
        %v745 = vadd.f32 0.0, %v744
        %v746 = vpop.f32.mrb[0].mxu0
        %747 = vdwg.mxu0
        %v748 = vpack.c.bf16 %v689, %v686
        %v749 = vpack.c.bf16 %v697, %v694
        %v750 = vpack.c.bf16 %v705, %v702
        %v751 = vpack.c.bf16 %v713, %v710
        %v752 = vpack.c.bf16 %v721, %v718
        %v753 = vpack.c.bf16 %v729, %v726
        %v754 = vpack.c.bf16 %v737, %v734
        %v755 = vpack.c.bf16 %v745, %v742
        %v756 = vld [vmem:[%s2 + $0x8] sm:$0xf]
        %v757 = vld [vmem:[%s2 + $0xc] sm:$0xf]
        %v760 = vunpack.c.l.b16 %v756
        %v761 = vunpack.c.l.b16 %v757
        %v762 = vpack.c.b16 %v761, %v760
        %vm764 = vcmask 130048
        %v766 = vsel %vm764, %v748, 0
        %v769 = vsel %vm764, %v749, 0
        %v772 = vsel %vm764, %v750, 0
        %v775 = vsel %vm764, %v751, 0
        %v778 = vsel %vm764, %v752, 0
        %v781 = vsel %vm764, %v753, 0
        %v784 = vsel %vm764, %v754, 0
        %v787 = vsel %vm764, %v755, 0
        %789 = vmatprep.subr.bf16.mxu0 0
        %790 = vmatpush1.bf16.msra.mxu0 %v762
        %791 = vmatprep.subr.bf16.mxu0 0
        %792 = vmatpush1.bf16.msra.mxu0 0
        %793 = vmatprep.subr.bf16.mxu0 0
        %794 = vmatpush1.bf16.msra.mxu0 0
        %795 = vmatprep.subr.bf16.mxu0 0
        %796 = vmatpush1.bf16.msra.mxu0 0
        %797 = vmatprep.subr.bf16.mxu0 0
        %798 = vmatpush1.bf16.msra.mxu0 0
        %799 = vmatprep.subr.bf16.mxu0 0
        %800 = vmatpush1.bf16.msra.mxu0 0
        %801 = vmatprep.subr.bf16.mxu0 0
        %802 = vmatpush1.bf16.msra.mxu0 0
        %803 = vmatprep.subr.bf16.mxu0 0
        %804 = vmatpush1.bf16.msra.mxu0 0
        %805 = vmatprep.subr.bf16.mxu0 0
        %806 = vmatpush1.bf16.msra.mxu0 0
        %807 = vmatprep.subr.bf16.mxu0 0
        %808 = vmatpush1.bf16.msra.mxu0 0
        %809 = vmatprep.subr.bf16.mxu0 0
        %810 = vmatpush1.bf16.msra.mxu0 0
        %811 = vmatprep.subr.bf16.mxu0 0
        %812 = vmatpush1.bf16.msra.mxu0 0
        %813 = vmatprep.subr.bf16.mxu0 0
        %814 = vmatpush1.bf16.msra.mxu0 0
        %815 = vmatprep.subr.bf16.mxu0 0
        %816 = vmatpush1.bf16.msra.mxu0 0
        %817 = vmatprep.subr.bf16.mxu0 0
        %818 = vmatpush1.bf16.msra.mxu0 0
        %819 = vmatprep.subr.bf16.mxu0 0
        %820 = vmatpush1.bf16.msra.mxu0 0
        %821 = vmatprep.mubr.bf16.mxu0 0
        %822 = vmatmul.mubr.bf16.gmra.mrb[0].mxu0 %v766
        %v823 = vpop.f32.mrb[0].mxu0
        %v824 = vadd.f32 0.0, %v823
        %v825 = vpop.f32.mrb[0].mxu0
        %v826 = vpop.f32.mrb[0].mxu0
        %v827 = vadd.f32 0.0, %v826
        %v828 = vpop.f32.mrb[0].mxu0
        %829 = vmatprep.mubr.bf16.mxu0 0
        %830 = vmatmul.mubr.bf16.gmra.mrb[0].mxu0 %v769
        %v831 = vpop.f32.mrb[0].mxu0
        %v832 = vadd.f32 0.0, %v831
        %v833 = vpop.f32.mrb[0].mxu0
        %v834 = vpop.f32.mrb[0].mxu0
        %v835 = vadd.f32 0.0, %v834
        %v836 = vpop.f32.mrb[0].mxu0
        %837 = vmatprep.mubr.bf16.mxu0 0
        %838 = vmatmul.mubr.bf16.gmra.mrb[0].mxu0 %v772
        %v839 = vpop.f32.mrb[0].mxu0
        %v840 = vadd.f32 0.0, %v839
        %v841 = vpop.f32.mrb[0].mxu0
        %v842 = vpop.f32.mrb[0].mxu0
        %v843 = vadd.f32 0.0, %v842
        %v844 = vpop.f32.mrb[0].mxu0
        %845 = vmatprep.mubr.bf16.mxu0 0
        %846 = vmatmul.mubr.bf16.gmra.mrb[0].mxu0 %v775
        %v847 = vpop.f32.mrb[0].mxu0
        %v848 = vadd.f32 0.0, %v847
        %v849 = vpop.f32.mrb[0].mxu0
        %v850 = vpop.f32.mrb[0].mxu0
        %v851 = vadd.f32 0.0, %v850
        %v852 = vpop.f32.mrb[0].mxu0
        %853 = vmatprep.mubr.bf16.mxu0 0
        %854 = vmatmul.mubr.bf16.gmra.mrb[0].mxu0 %v778
        %v855 = vpop.f32.mrb[0].mxu0
        %v856 = vadd.f32 0.0, %v855
        %v857 = vpop.f32.mrb[0].mxu0
        %v858 = vpop.f32.mrb[0].mxu0
        %v859 = vadd.f32 0.0, %v858
        %v860 = vpop.f32.mrb[0].mxu0
        %861 = vmatprep.mubr.bf16.mxu0 0
        %862 = vmatmul.mubr.bf16.gmra.mrb[0].mxu0 %v781
        %v863 = vpop.f32.mrb[0].mxu0
        %v864 = vadd.f32 0.0, %v863
        %v865 = vpop.f32.mrb[0].mxu0
        %v866 = vpop.f32.mrb[0].mxu0
        %v867 = vadd.f32 0.0, %v866
        %v868 = vpop.f32.mrb[0].mxu0
        %869 = vmatprep.mubr.bf16.mxu0 0
        %870 = vmatmul.mubr.bf16.gmra.mrb[0].mxu0 %v784
        %v871 = vpop.f32.mrb[0].mxu0
        %v872 = vadd.f32 0.0, %v871
        %v873 = vpop.f32.mrb[0].mxu0
        %v874 = vpop.f32.mrb[0].mxu0
        %v875 = vadd.f32 0.0, %v874
        %v876 = vpop.f32.mrb[0].mxu0
        %877 = vmatprep.mubr.bf16.mxu0 0
        %878 = vmatmul.mubr.bf16.gmra.mrb[0].mxu0 %v787
        %v879 = vpop.f32.mrb[0].mxu0
        %v880 = vadd.f32 0.0, %v879
        %v881 = vpop.f32.mrb[0].mxu0
        %v882 = vpop.f32.mrb[0].mxu0
        %v883 = vadd.f32 0.0, %v882
        %v884 = vpop.f32.mrb[0].mxu0
        %885 = vdwg.mxu0
        %v888 = vunpack.c.l.b16 %v545
        %v889 = vunpack.c.l.b16 %v546
        %v890 = vpack.c.b16 %v889, %v888
        %v893 = vsel %vm764, %v537, 0
        %v896 = vsel %vm764, %v538, 0
        %v899 = vsel %vm764, %v539, 0
        %v902 = vsel %vm764, %v540, 0
        %v905 = vsel %vm764, %v541, 0
        %v908 = vsel %vm764, %v542, 0
        %v911 = vsel %vm764, %v543, 0
        %v914 = vsel %vm764, %v544, 0
        %916 = vmatprep.subr.bf16.mxu0 0
        %917 = vmatpush1.bf16.msra.mxu0 %v890
        %918 = vmatprep.subr.bf16.mxu0 0
        %919 = vmatpush1.bf16.msra.mxu0 0
        %920 = vmatprep.subr.bf16.mxu0 0
        %921 = vmatpush1.bf16.msra.mxu0 0
        %922 = vmatprep.subr.bf16.mxu0 0
        %923 = vmatpush1.bf16.msra.mxu0 0
        %924 = vmatprep.subr.bf16.mxu0 0
        %925 = vmatpush1.bf16.msra.mxu0 0
        %926 = vmatprep.subr.bf16.mxu0 0
        %927 = vmatpush1.bf16.msra.mxu0 0
        %928 = vmatprep.subr.bf16.mxu0 0
        %929 = vmatpush1.bf16.msra.mxu0 0
        %930 = vmatprep.subr.bf16.mxu0 0
        %931 = vmatpush1.bf16.msra.mxu0 0
        %932 = vmatprep.subr.bf16.mxu0 0
        %933 = vmatpush1.bf16.msra.mxu0 0
        %934 = vmatprep.subr.bf16.mxu0 0
        %935 = vmatpush1.bf16.msra.mxu0 0
        %936 = vmatprep.subr.bf16.mxu0 0
        %937 = vmatpush1.bf16.msra.mxu0 0
        %938 = vmatprep.subr.bf16.mxu0 0
        %939 = vmatpush1.bf16.msra.mxu0 0
        %940 = vmatprep.subr.bf16.mxu0 0
        %941 = vmatpush1.bf16.msra.mxu0 0
        %942 = vmatprep.subr.bf16.mxu0 0
        %943 = vmatpush1.bf16.msra.mxu0 0
        %944 = vmatprep.subr.bf16.mxu0 0
        %945 = vmatpush1.bf16.msra.mxu0 0
        %946 = vmatprep.subr.bf16.mxu0 0
        %947 = vmatpush1.bf16.msra.mxu0 0
        %948 = vmatprep.mubr.bf16.mxu0 0
        %949 = vmatmul.mubr.bf16.gmra.mrb[0].mxu0 %v893
        %v950 = vpop.f32.mrb[0].mxu0
        %v951 = vadd.f32 %v824, %v950
        %v952 = vpop.f32.mrb[0].mxu0
        %v953 = vpop.f32.mrb[0].mxu0
        %v954 = vadd.f32 %v827, %v953
        %v955 = vpop.f32.mrb[0].mxu0
        %956 = vmatprep.mubr.bf16.mxu0 0
        %957 = vmatmul.mubr.bf16.gmra.mrb[0].mxu0 %v896
        %v958 = vpop.f32.mrb[0].mxu0
        %v959 = vadd.f32 %v832, %v958
        %v960 = vpop.f32.mrb[0].mxu0
        %v961 = vpop.f32.mrb[0].mxu0
        %v962 = vadd.f32 %v835, %v961
        %v963 = vpop.f32.mrb[0].mxu0
        %964 = vmatprep.mubr.bf16.mxu0 0
        %965 = vmatmul.mubr.bf16.gmra.mrb[0].mxu0 %v899
        %v966 = vpop.f32.mrb[0].mxu0
        %v967 = vadd.f32 %v840, %v966
        %v968 = vpop.f32.mrb[0].mxu0
        %v969 = vpop.f32.mrb[0].mxu0
        %v970 = vadd.f32 %v843, %v969
        %v971 = vpop.f32.mrb[0].mxu0
        %972 = vmatprep.mubr.bf16.mxu0 0
        %973 = vmatmul.mubr.bf16.gmra.mrb[0].mxu0 %v902
        %v974 = vpop.f32.mrb[0].mxu0
        %v975 = vadd.f32 %v848, %v974
        %v976 = vpop.f32.mrb[0].mxu0
        %v977 = vpop.f32.mrb[0].mxu0
        %v978 = vadd.f32 %v851, %v977
        %v979 = vpop.f32.mrb[0].mxu0
        %980 = vmatprep.mubr.bf16.mxu0 0
        %981 = vmatmul.mubr.bf16.gmra.mrb[0].mxu0 %v905
        %v982 = vpop.f32.mrb[0].mxu0
        %v983 = vadd.f32 %v856, %v982
        %v984 = vpop.f32.mrb[0].mxu0
        %v985 = vpop.f32.mrb[0].mxu0
        %v986 = vadd.f32 %v859, %v985
        %v987 = vpop.f32.mrb[0].mxu0
        %988 = vmatprep.mubr.bf16.mxu0 0
        %989 = vmatmul.mubr.bf16.gmra.mrb[0].mxu0 %v908
        %v990 = vpop.f32.mrb[0].mxu0
        %v991 = vadd.f32 %v864, %v990
        %v992 = vpop.f32.mrb[0].mxu0
        %v993 = vpop.f32.mrb[0].mxu0
        %v994 = vadd.f32 %v867, %v993
        %v995 = vpop.f32.mrb[0].mxu0
        %996 = vmatprep.mubr.bf16.mxu0 0
        %997 = vmatmul.mubr.bf16.gmra.mrb[0].mxu0 %v911
        %v998 = vpop.f32.mrb[0].mxu0
        %v999 = vadd.f32 %v872, %v998
        %v1000 = vpop.f32.mrb[0].mxu0
        %v1001 = vpop.f32.mrb[0].mxu0
        %v1002 = vadd.f32 %v875, %v1001
        %v1003 = vpop.f32.mrb[0].mxu0
        %1004 = vmatprep.mubr.bf16.mxu0 0
        %1005 = vmatmul.mubr.bf16.gmra.mrb[0].mxu0 %v914
        %v1006 = vpop.f32.mrb[0].mxu0
        %v1007 = vadd.f32 %v880, %v1006
        %v1008 = vpop.f32.mrb[0].mxu0
        %v1009 = vpop.f32.mrb[0].mxu0
        %v1010 = vadd.f32 %v883, %v1009
        %v1011 = vpop.f32.mrb[0].mxu0
        %1012 = vdwg.mxu0
        %1013 = vset.pattern.permute.xlu0 2
        %1014 = vperm.xlu0 %1013, %v254
        %v1015 = vpop.permute.xlu0 %1014
        %1016 = vset.pattern.permute.xlu0 2
        %1017 = vperm.xlu0 %1016, %v255
        %v1018 = vpop.permute.xlu0 %1017
        %1019 = vset.pattern.permute.xlu0 2
        %1020 = vperm.xlu0 %1019, %v256
        %v1021 = vpop.permute.xlu0 %1020
        %1022 = vset.pattern.permute.xlu0 2
        %1023 = vperm.xlu0 %1022, %v257
        %v1024 = vpop.permute.xlu0 %1023
        %1025 = vset.pattern.permute.xlu0 2
        %1026 = vperm.xlu0 %1025, %v258
        %v1027 = vpop.permute.xlu0 %1026
        %1028 = vset.pattern.permute.xlu0 2
        %1029 = vperm.xlu0 %1028, %v259
        %v1030 = vpop.permute.xlu0 %1029
        %1031 = vset.pattern.permute.xlu0 2
        %1032 = vperm.xlu0 %1031, %v260
        %v1033 = vpop.permute.xlu0 %1032
        %1034 = vset.pattern.permute.xlu0 2
        %1035 = vperm.xlu0 %1034, %v261
        %v1036 = vpop.permute.xlu0 %1035
        %1037 = vset.pattern.permute.xlu0 2
        %1038 = vperm.xlu0 %1037, %v262
        %v1039 = vpop.permute.xlu0 %1038
        %1040 = vset.pattern.permute.xlu0 2
        %1041 = vperm.xlu0 %1040, %v263
        %v1042 = vpop.permute.xlu0 %1041
        %1043 = vset.pattern.permute.xlu0 2
        %1044 = vperm.xlu0 %1043, %v264
        %v1045 = vpop.permute.xlu0 %1044
        %1046 = vset.pattern.permute.xlu0 2
        %1047 = vperm.xlu0 %1046, %v265
        %v1048 = vpop.permute.xlu0 %1047
        %1049 = vset.pattern.permute.xlu0 2
        %1050 = vperm.xlu0 %1049, %v266
        %v1051 = vpop.permute.xlu0 %1050
        %1052 = vset.pattern.permute.xlu0 2
        %1053 = vperm.xlu0 %1052, %v267
        %v1054 = vpop.permute.xlu0 %1053
        %1055 = vset.pattern.permute.xlu0 2
        %1056 = vperm.xlu0 %1055, %v268
        %v1057 = vpop.permute.xlu0 %1056
        %1058 = vset.pattern.permute.xlu0 2
        %1059 = vperm.xlu0 %1058, %v269
        %v1060 = vpop.permute.xlu0 %1059
        %vm1061 = vcmp.eq.s32.totalorder %v1015, %v287
        %vm1062 = vcmp.eq.s32.totalorder %v1018, %v287
        %vm1063 = vcmp.eq.s32.totalorder %v1021, %v287
        %vm1064 = vcmp.eq.s32.totalorder %v1024, %v287
        %vm1065 = vcmp.eq.s32.totalorder %v1027, %v287
        %vm1066 = vcmp.eq.s32.totalorder %v1030, %v287
        %vm1067 = vcmp.eq.s32.totalorder %v1033, %v287
        %vm1068 = vcmp.eq.s32.totalorder %v1036, %v287
        %vm1069 = vcmp.eq.s32.totalorder %v1039, %v287
        %vm1070 = vcmp.eq.s32.totalorder %v1042, %v287
        %vm1071 = vcmp.eq.s32.totalorder %v1045, %v287
        %vm1072 = vcmp.eq.s32.totalorder %v1048, %v287
        %vm1073 = vcmp.eq.s32.totalorder %v1051, %v287
        %vm1074 = vcmp.eq.s32.totalorder %v1054, %v287
        %vm1075 = vcmp.eq.s32.totalorder %v1057, %v287
        %vm1076 = vcmp.eq.s32.totalorder %v1060, %v287
        %v1077 = vsel %vm1061, 1, 0
        %v1078 = vsel %vm1062, 1, 0
        %v1079 = vsel %vm1063, 1, 0
        %v1080 = vsel %vm1064, 1, 0
        %v1081 = vsel %vm1065, 1, 0
        %v1082 = vsel %vm1066, 1, 0
        %v1083 = vsel %vm1067, 1, 0
        %v1084 = vsel %vm1068, 1, 0
        %v1085 = vsel %vm1069, 1, 0
        %v1086 = vsel %vm1070, 1, 0
        %v1087 = vsel %vm1071, 1, 0
        %v1088 = vsel %vm1072, 1, 0
        %v1089 = vsel %vm1073, 1, 0
        %v1090 = vsel %vm1074, 1, 0
        %v1091 = vsel %vm1075, 1, 0
        %v1092 = vsel %vm1076, 1, 0
        %v1093 = vcvt.s32.f32 %v1077
        %v1094 = vcvt.s32.f32 %v1078
        %v1095 = vcvt.s32.f32 %v1079
        %v1096 = vcvt.s32.f32 %v1080
        %v1097 = vcvt.s32.f32 %v1081
        %v1098 = vcvt.s32.f32 %v1082
        %v1099 = vcvt.s32.f32 %v1083
        %v1100 = vcvt.s32.f32 %v1084
        %v1101 = vcvt.s32.f32 %v1085
        %v1102 = vcvt.s32.f32 %v1086
        %v1103 = vcvt.s32.f32 %v1087
        %v1104 = vcvt.s32.f32 %v1088
        %v1105 = vcvt.s32.f32 %v1089
        %v1106 = vcvt.s32.f32 %v1090
        %v1107 = vcvt.s32.f32 %v1091
        %v1108 = vcvt.s32.f32 %v1092
        %v1109 = vpack.c.bf16 %v1094, %v1093
        %v1110 = vpack.c.bf16 %v1096, %v1095
        %v1111 = vpack.c.bf16 %v1098, %v1097
        %v1112 = vpack.c.bf16 %v1100, %v1099
        %v1113 = vpack.c.bf16 %v1102, %v1101
        %v1114 = vpack.c.bf16 %v1104, %v1103
        %v1115 = vpack.c.bf16 %v1106, %v1105
        %v1116 = vpack.c.bf16 %v1108, %v1107
        %1117 = vmatprep.subr.bf16.mxu0 0
        %1118 = vmatpush1.bf16.msra.mxu0 %v424
        %1119 = vmatprep.subr.bf16.mxu0 0
        %1120 = vmatpush1.bf16.msra.mxu0 %v425
        %1121 = vmatprep.subr.bf16.mxu0 0
        %1122 = vmatpush1.bf16.msra.mxu0 %v426
        %1123 = vmatprep.subr.bf16.mxu0 0
        %1124 = vmatpush1.bf16.msra.mxu0 %v427
        %1125 = vmatprep.subr.bf16.mxu0 0
        %1126 = vmatpush1.bf16.msra.mxu0 %v428
        %1127 = vmatprep.subr.bf16.mxu0 0
        %1128 = vmatpush1.bf16.msra.mxu0 %v429
        %1129 = vmatprep.subr.bf16.mxu0 0
        %1130 = vmatpush1.bf16.msra.mxu0 %v430
        %1131 = vmatprep.subr.bf16.mxu0 0
        %1132 = vmatpush1.bf16.msra.mxu0 %v431
        %1133 = vmatprep.subr.bf16.mxu0 0
        %1134 = vmatpush1.bf16.msra.mxu0 0
        %1135 = vmatprep.subr.bf16.mxu0 0
        %1136 = vmatpush1.bf16.msra.mxu0 0
        %1137 = vmatprep.subr.bf16.mxu0 0
        %1138 = vmatpush1.bf16.msra.mxu0 0
        %1139 = vmatprep.subr.bf16.mxu0 0
        %1140 = vmatpush1.bf16.msra.mxu0 0
        %1141 = vmatprep.subr.bf16.mxu0 0
        %1142 = vmatpush1.bf16.msra.mxu0 0
        %1143 = vmatprep.subr.bf16.mxu0 0
        %1144 = vmatpush1.bf16.msra.mxu0 0
        %1145 = vmatprep.subr.bf16.mxu0 0
        %1146 = vmatpush1.bf16.msra.mxu0 0
        %1147 = vmatprep.subr.bf16.mxu0 0
        %1148 = vmatpush1.bf16.msra.mxu0 0
        %1149 = vmatprep.mubr.bf16.mxu0 0
        %1150 = vmatmul.mubr.bf16.gmra.mrb[0].mxu0 %v1109
        %v1151 = vpop.f32.mrb[0].mxu0
        %v1152 = vadd.f32 0.0, %v1151
        %v1153 = vpop.f32.mrb[0].mxu0
        %v1154 = vpop.f32.mrb[0].mxu0
        %v1155 = vadd.f32 0.0, %v1154
        %v1156 = vpop.f32.mrb[0].mxu0
        %1157 = vmatprep.mubr.bf16.mxu0 0
        %1158 = vmatmul.mubr.bf16.gmra.mrb[0].mxu0 %v1110
        %v1159 = vpop.f32.mrb[0].mxu0
        %v1160 = vadd.f32 0.0, %v1159
        %v1161 = vpop.f32.mrb[0].mxu0
        %v1162 = vpop.f32.mrb[0].mxu0
        %v1163 = vadd.f32 0.0, %v1162
        %v1164 = vpop.f32.mrb[0].mxu0
        %1165 = vmatprep.mubr.bf16.mxu0 0
        %1166 = vmatmul.mubr.bf16.gmra.mrb[0].mxu0 %v1111
        %v1167 = vpop.f32.mrb[0].mxu0
        %v1168 = vadd.f32 0.0, %v1167
        %v1169 = vpop.f32.mrb[0].mxu0
        %v1170 = vpop.f32.mrb[0].mxu0
        %v1171 = vadd.f32 0.0, %v1170
        %v1172 = vpop.f32.mrb[0].mxu0
        %1173 = vmatprep.mubr.bf16.mxu0 0
        %1174 = vmatmul.mubr.bf16.gmra.mrb[0].mxu0 %v1112
        %v1175 = vpop.f32.mrb[0].mxu0
        %v1176 = vadd.f32 0.0, %v1175
        %v1177 = vpop.f32.mrb[0].mxu0
        %v1178 = vpop.f32.mrb[0].mxu0
        %v1179 = vadd.f32 0.0, %v1178
        %v1180 = vpop.f32.mrb[0].mxu0
        %1181 = vmatprep.mubr.bf16.mxu0 0
        %1182 = vmatmul.mubr.bf16.gmra.mrb[0].mxu0 %v1113
        %v1183 = vpop.f32.mrb[0].mxu0
        %v1184 = vadd.f32 0.0, %v1183
        %v1185 = vpop.f32.mrb[0].mxu0
        %v1186 = vpop.f32.mrb[0].mxu0
        %v1187 = vadd.f32 0.0, %v1186
        %v1188 = vpop.f32.mrb[0].mxu0
        %1189 = vmatprep.mubr.bf16.mxu0 0
        %1190 = vmatmul.mubr.bf16.gmra.mrb[0].mxu0 %v1114
        %v1191 = vpop.f32.mrb[0].mxu0
        %v1192 = vadd.f32 0.0, %v1191
        %v1193 = vpop.f32.mrb[0].mxu0
        %v1194 = vpop.f32.mrb[0].mxu0
        %v1195 = vadd.f32 0.0, %v1194
        %v1196 = vpop.f32.mrb[0].mxu0
        %1197 = vmatprep.mubr.bf16.mxu0 0
        %1198 = vmatmul.mubr.bf16.gmra.mrb[0].mxu0 %v1115
        %v1199 = vpop.f32.mrb[0].mxu0
        %v1200 = vadd.f32 0.0, %v1199
        %v1201 = vpop.f32.mrb[0].mxu0
        %v1202 = vpop.f32.mrb[0].mxu0
        %v1203 = vadd.f32 0.0, %v1202
        %v1204 = vpop.f32.mrb[0].mxu0
        %1205 = vmatprep.mubr.bf16.mxu0 0
        %1206 = vmatmul.mubr.bf16.gmra.mrb[0].mxu0 %v1116
        %v1207 = vpop.f32.mrb[0].mxu0
        %v1208 = vadd.f32 0.0, %v1207
        %v1209 = vpop.f32.mrb[0].mxu0
        %v1210 = vpop.f32.mrb[0].mxu0
        %v1211 = vadd.f32 0.0, %v1210
        %v1212 = vpop.f32.mrb[0].mxu0
        %1213 = vdwg.mxu0
        %v1214 = vpack.c.bf16 %v1155, %v1152
        %v1215 = vpack.c.bf16 %v1163, %v1160
        %v1216 = vpack.c.bf16 %v1171, %v1168
        %v1217 = vpack.c.bf16 %v1179, %v1176
        %v1218 = vpack.c.bf16 %v1187, %v1184
        %v1219 = vpack.c.bf16 %v1195, %v1192
        %v1220 = vpack.c.bf16 %v1203, %v1200
        %v1221 = vpack.c.bf16 %v1211, %v1208
        %v1222 = vld [vmem:[%s2 + $0x10] sm:$0xf]
        %v1223 = vld [vmem:[%s2 + $0x14] sm:$0xf]
        %v1226 = vunpack.c.l.b16 %v1222
        %v1227 = vunpack.c.l.b16 %v1223
        %v1228 = vpack.c.b16 %v1227, %v1226
        %v1231 = vsel %vm764, %v1214, 0
        %v1234 = vsel %vm764, %v1215, 0
        %v1237 = vsel %vm764, %v1216, 0
        %v1240 = vsel %vm764, %v1217, 0
        %v1243 = vsel %vm764, %v1218, 0
        %v1246 = vsel %vm764, %v1219, 0
        %v1249 = vsel %vm764, %v1220, 0
        %v1252 = vsel %vm764, %v1221, 0
        %1254 = vmatprep.subr.bf16.mxu0 0
        %1255 = vmatpush1.bf16.msra.mxu0 %v1228
        %1256 = vmatprep.subr.bf16.mxu0 0
        %1257 = vmatpush1.bf16.msra.mxu0 0
        %1258 = vmatprep.subr.bf16.mxu0 0
        %1259 = vmatpush1.bf16.msra.mxu0 0
        %1260 = vmatprep.subr.bf16.mxu0 0
        %1261 = vmatpush1.bf16.msra.mxu0 0
        %1262 = vmatprep.subr.bf16.mxu0 0
        %1263 = vmatpush1.bf16.msra.mxu0 0
        %1264 = vmatprep.subr.bf16.mxu0 0
        %1265 = vmatpush1.bf16.msra.mxu0 0
        %1266 = vmatprep.subr.bf16.mxu0 0
        %1267 = vmatpush1.bf16.msra.mxu0 0
        %1268 = vmatprep.subr.bf16.mxu0 0
        %1269 = vmatpush1.bf16.msra.mxu0 0
        %1270 = vmatprep.subr.bf16.mxu0 0
        %1271 = vmatpush1.bf16.msra.mxu0 0
        %1272 = vmatprep.subr.bf16.mxu0 0
        %1273 = vmatpush1.bf16.msra.mxu0 0
        %1274 = vmatprep.subr.bf16.mxu0 0
        %1275 = vmatpush1.bf16.msra.mxu0 0
        %1276 = vmatprep.subr.bf16.mxu0 0
        %1277 = vmatpush1.bf16.msra.mxu0 0
        %1278 = vmatprep.subr.bf16.mxu0 0
        %1279 = vmatpush1.bf16.msra.mxu0 0
        %1280 = vmatprep.subr.bf16.mxu0 0
        %1281 = vmatpush1.bf16.msra.mxu0 0
        %1282 = vmatprep.subr.bf16.mxu0 0
        %1283 = vmatpush1.bf16.msra.mxu0 0
        %1284 = vmatprep.subr.bf16.mxu0 0
        %1285 = vmatpush1.bf16.msra.mxu0 0
        %1286 = vmatprep.mubr.bf16.mxu0 0
        %1287 = vmatmul.mubr.bf16.gmra.mrb[0].mxu0 %v1231
        %v1288 = vpop.f32.mrb[0].mxu0
        %v1289 = vadd.f32 0.0, %v1288
        %v1290 = vpop.f32.mrb[0].mxu0
        %v1291 = vpop.f32.mrb[0].mxu0
        %v1292 = vadd.f32 0.0, %v1291
        %v1293 = vpop.f32.mrb[0].mxu0
        %1294 = vmatprep.mubr.bf16.mxu0 0
        %1295 = vmatmul.mubr.bf16.gmra.mrb[0].mxu0 %v1234
        %v1296 = vpop.f32.mrb[0].mxu0
        %v1297 = vadd.f32 0.0, %v1296
        %v1298 = vpop.f32.mrb[0].mxu0
        %v1299 = vpop.f32.mrb[0].mxu0
        %v1300 = vadd.f32 0.0, %v1299
        %v1301 = vpop.f32.mrb[0].mxu0
        %1302 = vmatprep.mubr.bf16.mxu0 0
        %1303 = vmatmul.mubr.bf16.gmra.mrb[0].mxu0 %v1237
        %v1304 = vpop.f32.mrb[0].mxu0
        %v1305 = vadd.f32 0.0, %v1304
        %v1306 = vpop.f32.mrb[0].mxu0
        %v1307 = vpop.f32.mrb[0].mxu0
        %v1308 = vadd.f32 0.0, %v1307
        %v1309 = vpop.f32.mrb[0].mxu0
        %1310 = vmatprep.mubr.bf16.mxu0 0
        %1311 = vmatmul.mubr.bf16.gmra.mrb[0].mxu0 %v1240
        %v1312 = vpop.f32.mrb[0].mxu0
        %v1313 = vadd.f32 0.0, %v1312
        %v1314 = vpop.f32.mrb[0].mxu0
        %v1315 = vpop.f32.mrb[0].mxu0
        %v1316 = vadd.f32 0.0, %v1315
        %v1317 = vpop.f32.mrb[0].mxu0
        %1318 = vmatprep.mubr.bf16.mxu0 0
        %1319 = vmatmul.mubr.bf16.gmra.mrb[0].mxu0 %v1243
        %v1320 = vpop.f32.mrb[0].mxu0
        %v1321 = vadd.f32 0.0, %v1320
        %v1322 = vpop.f32.mrb[0].mxu0
        %v1323 = vpop.f32.mrb[0].mxu0
        %v1324 = vadd.f32 0.0, %v1323
        %v1325 = vpop.f32.mrb[0].mxu0
        %1326 = vmatprep.mubr.bf16.mxu0 0
        %1327 = vmatmul.mubr.bf16.gmra.mrb[0].mxu0 %v1246
        %v1328 = vpop.f32.mrb[0].mxu0
        %v1329 = vadd.f32 0.0, %v1328
        %v1330 = vpop.f32.mrb[0].mxu0
        %v1331 = vpop.f32.mrb[0].mxu0
        %v1332 = vadd.f32 0.0, %v1331
        %v1333 = vpop.f32.mrb[0].mxu0
        %1334 = vmatprep.mubr.bf16.mxu0 0
        %1335 = vmatmul.mubr.bf16.gmra.mrb[0].mxu0 %v1249
        %v1336 = vpop.f32.mrb[0].mxu0
        %v1337 = vadd.f32 0.0, %v1336
        %v1338 = vpop.f32.mrb[0].mxu0
        %v1339 = vpop.f32.mrb[0].mxu0
        %v1340 = vadd.f32 0.0, %v1339
        %v1341 = vpop.f32.mrb[0].mxu0
        %1342 = vmatprep.mubr.bf16.mxu0 0
        %1343 = vmatmul.mubr.bf16.gmra.mrb[0].mxu0 %v1252
        %v1344 = vpop.f32.mrb[0].mxu0
        %v1345 = vadd.f32 0.0, %v1344
        %v1346 = vpop.f32.mrb[0].mxu0
        %v1347 = vpop.f32.mrb[0].mxu0
        %v1348 = vadd.f32 0.0, %v1347
        %v1349 = vpop.f32.mrb[0].mxu0
        %1350 = vdwg.mxu0
        %v1351 = vadd.f32 %v951, %v1289
        %v1352 = vadd.f32 %v954, %v1292
        %v1353 = vadd.f32 %v959, %v1297
        %v1354 = vadd.f32 %v962, %v1300
        %v1355 = vadd.f32 %v967, %v1305
        %v1356 = vadd.f32 %v970, %v1308
        %v1357 = vadd.f32 %v975, %v1313
        %v1358 = vadd.f32 %v978, %v1316
        %v1359 = vadd.f32 %v983, %v1321
        %v1360 = vadd.f32 %v986, %v1324
        %v1361 = vadd.f32 %v991, %v1329
        %v1362 = vadd.f32 %v994, %v1332
        %v1363 = vadd.f32 %v999, %v1337
        %v1364 = vadd.f32 %v1002, %v1340
        %v1365 = vadd.f32 %v1007, %v1345
        %v1366 = vadd.f32 %v1010, %v1348
        %1367 = vset.pattern.permute.xlu0 3
        %1368 = vperm.xlu0 %1367, %v254
        %v1369 = vpop.permute.xlu0 %1368
        %1370 = vset.pattern.permute.xlu0 3
        %1371 = vperm.xlu0 %1370, %v255
        %v1372 = vpop.permute.xlu0 %1371
        %1373 = vset.pattern.permute.xlu0 3
        %1374 = vperm.xlu0 %1373, %v256
        %v1375 = vpop.permute.xlu0 %1374
        %1376 = vset.pattern.permute.xlu0 3
        %1377 = vperm.xlu0 %1376, %v257
        %v1378 = vpop.permute.xlu0 %1377
        %1379 = vset.pattern.permute.xlu0 3
        %1380 = vperm.xlu0 %1379, %v258
        %v1381 = vpop.permute.xlu0 %1380
        %1382 = vset.pattern.permute.xlu0 3
        %1383 = vperm.xlu0 %1382, %v259
        %v1384 = vpop.permute.xlu0 %1383
        %1385 = vset.pattern.permute.xlu0 3
        %1386 = vperm.xlu0 %1385, %v260
        %v1387 = vpop.permute.xlu0 %1386
        %1388 = vset.pattern.permute.xlu0 3
        %1389 = vperm.xlu0 %1388, %v261
        %v1390 = vpop.permute.xlu0 %1389
        %1391 = vset.pattern.permute.xlu0 3
        %1392 = vperm.xlu0 %1391, %v262
        %v1393 = vpop.permute.xlu0 %1392
        %1394 = vset.pattern.permute.xlu0 3
        %1395 = vperm.xlu0 %1394, %v263
        %v1396 = vpop.permute.xlu0 %1395
        %1397 = vset.pattern.permute.xlu0 3
        %1398 = vperm.xlu0 %1397, %v264
        %v1399 = vpop.permute.xlu0 %1398
        %1400 = vset.pattern.permute.xlu0 3
        %1401 = vperm.xlu0 %1400, %v265
        %v1402 = vpop.permute.xlu0 %1401
        %1403 = vset.pattern.permute.xlu0 3
        %1404 = vperm.xlu0 %1403, %v266
        %v1405 = vpop.permute.xlu0 %1404
        %1406 = vset.pattern.permute.xlu0 3
        %1407 = vperm.xlu0 %1406, %v267
        %v1408 = vpop.permute.xlu0 %1407
        %1409 = vset.pattern.permute.xlu0 3
        %1410 = vperm.xlu0 %1409, %v268
        %v1411 = vpop.permute.xlu0 %1410
        %1412 = vset.pattern.permute.xlu0 3
        %1413 = vperm.xlu0 %1412, %v269
        %v1414 = vpop.permute.xlu0 %1413
        %vm1415 = vcmp.eq.s32.totalorder %v1369, %v287
        %vm1416 = vcmp.eq.s32.totalorder %v1372, %v287
        %vm1417 = vcmp.eq.s32.totalorder %v1375, %v287
        %vm1418 = vcmp.eq.s32.totalorder %v1378, %v287
        %vm1419 = vcmp.eq.s32.totalorder %v1381, %v287
        %vm1420 = vcmp.eq.s32.totalorder %v1384, %v287
        %vm1421 = vcmp.eq.s32.totalorder %v1387, %v287
        %vm1422 = vcmp.eq.s32.totalorder %v1390, %v287
        %vm1423 = vcmp.eq.s32.totalorder %v1393, %v287
        %vm1424 = vcmp.eq.s32.totalorder %v1396, %v287
        %vm1425 = vcmp.eq.s32.totalorder %v1399, %v287
        %vm1426 = vcmp.eq.s32.totalorder %v1402, %v287
        %vm1427 = vcmp.eq.s32.totalorder %v1405, %v287
        %vm1428 = vcmp.eq.s32.totalorder %v1408, %v287
        %vm1429 = vcmp.eq.s32.totalorder %v1411, %v287
        %vm1430 = vcmp.eq.s32.totalorder %v1414, %v287
        %v1431 = vsel %vm1415, 1, 0
        %v1432 = vsel %vm1416, 1, 0
        %v1433 = vsel %vm1417, 1, 0
        %v1434 = vsel %vm1418, 1, 0
        %v1435 = vsel %vm1419, 1, 0
        %v1436 = vsel %vm1420, 1, 0
        %v1437 = vsel %vm1421, 1, 0
        %v1438 = vsel %vm1422, 1, 0
        %v1439 = vsel %vm1423, 1, 0
        %v1440 = vsel %vm1424, 1, 0
        %v1441 = vsel %vm1425, 1, 0
        %v1442 = vsel %vm1426, 1, 0
        %v1443 = vsel %vm1427, 1, 0
        %v1444 = vsel %vm1428, 1, 0
        %v1445 = vsel %vm1429, 1, 0
        %v1446 = vsel %vm1430, 1, 0
        %v1447 = vcvt.s32.f32 %v1431
        %v1448 = vcvt.s32.f32 %v1432
        %v1449 = vcvt.s32.f32 %v1433
        %v1450 = vcvt.s32.f32 %v1434
        %v1451 = vcvt.s32.f32 %v1435
        %v1452 = vcvt.s32.f32 %v1436
        %v1453 = vcvt.s32.f32 %v1437
        %v1454 = vcvt.s32.f32 %v1438
        %v1455 = vcvt.s32.f32 %v1439
        %v1456 = vcvt.s32.f32 %v1440
        %v1457 = vcvt.s32.f32 %v1441
        %v1458 = vcvt.s32.f32 %v1442
        %v1459 = vcvt.s32.f32 %v1443
        %v1460 = vcvt.s32.f32 %v1444
        %v1461 = vcvt.s32.f32 %v1445
        %v1462 = vcvt.s32.f32 %v1446
        %v1463 = vpack.c.bf16 %v1448, %v1447
        %v1464 = vpack.c.bf16 %v1450, %v1449
        %v1465 = vpack.c.bf16 %v1452, %v1451
        %v1466 = vpack.c.bf16 %v1454, %v1453
        %v1467 = vpack.c.bf16 %v1456, %v1455
        %v1468 = vpack.c.bf16 %v1458, %v1457
        %v1469 = vpack.c.bf16 %v1460, %v1459
        %v1470 = vpack.c.bf16 %v1462, %v1461
        %1471 = vmatprep.subr.bf16.mxu0 0
        %1472 = vmatpush1.bf16.msra.mxu0 %v424
        %1473 = vmatprep.subr.bf16.mxu0 0
        %1474 = vmatpush1.bf16.msra.mxu0 %v425
        %1475 = vmatprep.subr.bf16.mxu0 0
        %1476 = vmatpush1.bf16.msra.mxu0 %v426
        %1477 = vmatprep.subr.bf16.mxu0 0
        %1478 = vmatpush1.bf16.msra.mxu0 %v427
        %1479 = vmatprep.subr.bf16.mxu0 0
        %1480 = vmatpush1.bf16.msra.mxu0 %v428
        %1481 = vmatprep.subr.bf16.mxu0 0
        %1482 = vmatpush1.bf16.msra.mxu0 %v429
        %1483 = vmatprep.subr.bf16.mxu0 0
        %1484 = vmatpush1.bf16.msra.mxu0 %v430
        %1485 = vmatprep.subr.bf16.mxu0 0
        %1486 = vmatpush1.bf16.msra.mxu0 %v431
        %1487 = vmatprep.subr.bf16.mxu0 0
        %1488 = vmatpush1.bf16.msra.mxu0 0
        %1489 = vmatprep.subr.bf16.mxu0 0
        %1490 = vmatpush1.bf16.msra.mxu0 0
        %1491 = vmatprep.subr.bf16.mxu0 0
        %1492 = vmatpush1.bf16.msra.mxu0 0
        %1493 = vmatprep.subr.bf16.mxu0 0
        %1494 = vmatpush1.bf16.msra.mxu0 0
        %1495 = vmatprep.subr.bf16.mxu0 0
        %1496 = vmatpush1.bf16.msra.mxu0 0
        %1497 = vmatprep.subr.bf16.mxu0 0
        %1498 = vmatpush1.bf16.msra.mxu0 0
        %1499 = vmatprep.subr.bf16.mxu0 0
        %1500 = vmatpush1.bf16.msra.mxu0 0
        %1501 = vmatprep.subr.bf16.mxu0 0
        %1502 = vmatpush1.bf16.msra.mxu0 0
        %1503 = vmatprep.mubr.bf16.mxu0 0
        %1504 = vmatmul.mubr.bf16.gmra.mrb[0].mxu0 %v1463
        %v1505 = vpop.f32.mrb[0].mxu0
        %v1506 = vadd.f32 0.0, %v1505
        %v1507 = vpop.f32.mrb[0].mxu0
        %v1508 = vpop.f32.mrb[0].mxu0
        %v1509 = vadd.f32 0.0, %v1508
        %v1510 = vpop.f32.mrb[0].mxu0
        %1511 = vmatprep.mubr.bf16.mxu0 0
        %1512 = vmatmul.mubr.bf16.gmra.mrb[0].mxu0 %v1464
        %v1513 = vpop.f32.mrb[0].mxu0
        %v1514 = vadd.f32 0.0, %v1513
        %v1515 = vpop.f32.mrb[0].mxu0
        %v1516 = vpop.f32.mrb[0].mxu0
        %v1517 = vadd.f32 0.0, %v1516
        %v1518 = vpop.f32.mrb[0].mxu0
        %1519 = vmatprep.mubr.bf16.mxu0 0
        %1520 = vmatmul.mubr.bf16.gmra.mrb[0].mxu0 %v1465
        %v1521 = vpop.f32.mrb[0].mxu0
        %v1522 = vadd.f32 0.0, %v1521
        %v1523 = vpop.f32.mrb[0].mxu0
        %v1524 = vpop.f32.mrb[0].mxu0
        %v1525 = vadd.f32 0.0, %v1524
        %v1526 = vpop.f32.mrb[0].mxu0
        %1527 = vmatprep.mubr.bf16.mxu0 0
        %1528 = vmatmul.mubr.bf16.gmra.mrb[0].mxu0 %v1466
        %v1529 = vpop.f32.mrb[0].mxu0
        %v1530 = vadd.f32 0.0, %v1529
        %v1531 = vpop.f32.mrb[0].mxu0
        %v1532 = vpop.f32.mrb[0].mxu0
        %v1533 = vadd.f32 0.0, %v1532
        %v1534 = vpop.f32.mrb[0].mxu0
        %1535 = vmatprep.mubr.bf16.mxu0 0
        %1536 = vmatmul.mubr.bf16.gmra.mrb[0].mxu0 %v1467
        %v1537 = vpop.f32.mrb[0].mxu0
        %v1538 = vadd.f32 0.0, %v1537
        %v1539 = vpop.f32.mrb[0].mxu0
        %v1540 = vpop.f32.mrb[0].mxu0
        %v1541 = vadd.f32 0.0, %v1540
        %v1542 = vpop.f32.mrb[0].mxu0
        %1543 = vmatprep.mubr.bf16.mxu0 0
        %1544 = vmatmul.mubr.bf16.gmra.mrb[0].mxu0 %v1468
        %v1545 = vpop.f32.mrb[0].mxu0
        %v1546 = vadd.f32 0.0, %v1545
        %v1547 = vpop.f32.mrb[0].mxu0
        %v1548 = vpop.f32.mrb[0].mxu0
        %v1549 = vadd.f32 0.0, %v1548
        %v1550 = vpop.f32.mrb[0].mxu0
        %1551 = vmatprep.mubr.bf16.mxu0 0
        %1552 = vmatmul.mubr.bf16.gmra.mrb[0].mxu0 %v1469
        %v1553 = vpop.f32.mrb[0].mxu0
        %v1554 = vadd.f32 0.0, %v1553
        %v1555 = vpop.f32.mrb[0].mxu0
        %v1556 = vpop.f32.mrb[0].mxu0
        %v1557 = vadd.f32 0.0, %v1556
        %v1558 = vpop.f32.mrb[0].mxu0
        %1559 = vmatprep.mubr.bf16.mxu0 0
        %1560 = vmatmul.mubr.bf16.gmra.mrb[0].mxu0 %v1470
        %v1561 = vpop.f32.mrb[0].mxu0
        %v1562 = vadd.f32 0.0, %v1561
        %v1563 = vpop.f32.mrb[0].mxu0
        %v1564 = vpop.f32.mrb[0].mxu0
        %v1565 = vadd.f32 0.0, %v1564
        %v1566 = vpop.f32.mrb[0].mxu0
        %1567 = vdwg.mxu0
        %v1568 = vpack.c.bf16 %v1509, %v1506
        %v1569 = vpack.c.bf16 %v1517, %v1514
        %v1570 = vpack.c.bf16 %v1525, %v1522
        %v1571 = vpack.c.bf16 %v1533, %v1530
        %v1572 = vpack.c.bf16 %v1541, %v1538
        %v1573 = vpack.c.bf16 %v1549, %v1546
        %v1574 = vpack.c.bf16 %v1557, %v1554
        %v1575 = vpack.c.bf16 %v1565, %v1562
        %v1576 = vld [vmem:[%s2 + $0x18] sm:$0xf]
        %v1577 = vld [vmem:[%s2 + $0x1c] sm:$0xf]
        %v1580 = vunpack.c.l.b16 %v1576
        %v1581 = vunpack.c.l.b16 %v1577
        %v1582 = vpack.c.b16 %v1581, %v1580
        %v1585 = vsel %vm764, %v1568, 0
        %v1588 = vsel %vm764, %v1569, 0
        %v1591 = vsel %vm764, %v1570, 0
        %v1594 = vsel %vm764, %v1571, 0
        %v1597 = vsel %vm764, %v1572, 0
        %v1600 = vsel %vm764, %v1573, 0
        %v1603 = vsel %vm764, %v1574, 0
        %v1606 = vsel %vm764, %v1575, 0
        %1608 = vmatprep.subr.bf16.mxu0 0
        %1609 = vmatpush1.bf16.msra.mxu0 %v1582
        %1610 = vmatprep.subr.bf16.mxu0 0
        %1611 = vmatpush1.bf16.msra.mxu0 0
        %1612 = vmatprep.subr.bf16.mxu0 0
        %1613 = vmatpush1.bf16.msra.mxu0 0
        %1614 = vmatprep.subr.bf16.mxu0 0
        %1615 = vmatpush1.bf16.msra.mxu0 0
        %1616 = vmatprep.subr.bf16.mxu0 0
        %1617 = vmatpush1.bf16.msra.mxu0 0
        %1618 = vmatprep.subr.bf16.mxu0 0
        %1619 = vmatpush1.bf16.msra.mxu0 0
        %1620 = vmatprep.subr.bf16.mxu0 0
        %1621 = vmatpush1.bf16.msra.mxu0 0
        %1622 = vmatprep.subr.bf16.mxu0 0
        %1623 = vmatpush1.bf16.msra.mxu0 0
        %1624 = vmatprep.subr.bf16.mxu0 0
        %1625 = vmatpush1.bf16.msra.mxu0 0
        %1626 = vmatprep.subr.bf16.mxu0 0
        %1627 = vmatpush1.bf16.msra.mxu0 0
        %1628 = vmatprep.subr.bf16.mxu0 0
        %1629 = vmatpush1.bf16.msra.mxu0 0
        %1630 = vmatprep.subr.bf16.mxu0 0
        %1631 = vmatpush1.bf16.msra.mxu0 0
        %1632 = vmatprep.subr.bf16.mxu0 0
        %1633 = vmatpush1.bf16.msra.mxu0 0
        %1634 = vmatprep.subr.bf16.mxu0 0
        %1635 = vmatpush1.bf16.msra.mxu0 0
        %1636 = vmatprep.subr.bf16.mxu0 0
        %1637 = vmatpush1.bf16.msra.mxu0 0
        %1638 = vmatprep.subr.bf16.mxu0 0
        %1639 = vmatpush1.bf16.msra.mxu0 0
        %1640 = vmatprep.mubr.bf16.mxu0 0
        %1641 = vmatmul.mubr.bf16.gmra.mrb[0].mxu0 %v1585
        %v1642 = vpop.f32.mrb[0].mxu0
        %v1643 = vadd.f32 0.0, %v1642
        %v1644 = vpop.f32.mrb[0].mxu0
        %v1645 = vpop.f32.mrb[0].mxu0
        %v1646 = vadd.f32 0.0, %v1645
        %v1647 = vpop.f32.mrb[0].mxu0
        %1648 = vmatprep.mubr.bf16.mxu0 0
        %1649 = vmatmul.mubr.bf16.gmra.mrb[0].mxu0 %v1588
        %v1650 = vpop.f32.mrb[0].mxu0
        %v1651 = vadd.f32 0.0, %v1650
        %v1652 = vpop.f32.mrb[0].mxu0
        %v1653 = vpop.f32.mrb[0].mxu0
        %v1654 = vadd.f32 0.0, %v1653
        %v1655 = vpop.f32.mrb[0].mxu0
        %1656 = vmatprep.mubr.bf16.mxu0 0
        %1657 = vmatmul.mubr.bf16.gmra.mrb[0].mxu0 %v1591
        %v1658 = vpop.f32.mrb[0].mxu0
        %v1659 = vadd.f32 0.0, %v1658
        %v1660 = vpop.f32.mrb[0].mxu0
        %v1661 = vpop.f32.mrb[0].mxu0
        %v1662 = vadd.f32 0.0, %v1661
        %v1663 = vpop.f32.mrb[0].mxu0
        %1664 = vmatprep.mubr.bf16.mxu0 0
        %1665 = vmatmul.mubr.bf16.gmra.mrb[0].mxu0 %v1594
        %v1666 = vpop.f32.mrb[0].mxu0
        %v1667 = vadd.f32 0.0, %v1666
        %v1668 = vpop.f32.mrb[0].mxu0
        %v1669 = vpop.f32.mrb[0].mxu0
        %v1670 = vadd.f32 0.0, %v1669
        %v1671 = vpop.f32.mrb[0].mxu0
        %1672 = vmatprep.mubr.bf16.mxu0 0
        %1673 = vmatmul.mubr.bf16.gmra.mrb[0].mxu0 %v1597
        %v1674 = vpop.f32.mrb[0].mxu0
        %v1675 = vadd.f32 0.0, %v1674
        %v1676 = vpop.f32.mrb[0].mxu0
        %v1677 = vpop.f32.mrb[0].mxu0
        %v1678 = vadd.f32 0.0, %v1677
        %v1679 = vpop.f32.mrb[0].mxu0
        %1680 = vmatprep.mubr.bf16.mxu0 0
        %1681 = vmatmul.mubr.bf16.gmra.mrb[0].mxu0 %v1600
        %v1682 = vpop.f32.mrb[0].mxu0
        %v1683 = vadd.f32 0.0, %v1682
        %v1684 = vpop.f32.mrb[0].mxu0
        %v1685 = vpop.f32.mrb[0].mxu0
        %v1686 = vadd.f32 0.0, %v1685
        %v1687 = vpop.f32.mrb[0].mxu0
        %1688 = vmatprep.mubr.bf16.mxu0 0
        %1689 = vmatmul.mubr.bf16.gmra.mrb[0].mxu0 %v1603
        %v1690 = vpop.f32.mrb[0].mxu0
        %v1691 = vadd.f32 0.0, %v1690
        %v1692 = vpop.f32.mrb[0].mxu0
        %v1693 = vpop.f32.mrb[0].mxu0
        %v1694 = vadd.f32 0.0, %v1693
        %v1695 = vpop.f32.mrb[0].mxu0
        %1696 = vmatprep.mubr.bf16.mxu0 0
        %1697 = vmatmul.mubr.bf16.gmra.mrb[0].mxu0 %v1606
        %v1698 = vpop.f32.mrb[0].mxu0
        %v1699 = vadd.f32 0.0, %v1698
        %v1700 = vpop.f32.mrb[0].mxu0
        %v1701 = vpop.f32.mrb[0].mxu0
        %v1702 = vadd.f32 0.0, %v1701
        %v1703 = vpop.f32.mrb[0].mxu0
        %1704 = vdwg.mxu0
        %v1705 = vadd.f32 %v1351, %v1643
        %v1706 = vadd.f32 %v1352, %v1646
        %v1707 = vadd.f32 %v1353, %v1651
        %v1708 = vadd.f32 %v1354, %v1654
        %v1709 = vadd.f32 %v1355, %v1659
        %v1710 = vadd.f32 %v1356, %v1662
        %v1711 = vadd.f32 %v1357, %v1667
        %v1712 = vadd.f32 %v1358, %v1670
        %v1713 = vadd.f32 %v1359, %v1675
        %v1714 = vadd.f32 %v1360, %v1678
        %v1715 = vadd.f32 %v1361, %v1683
        %v1716 = vadd.f32 %v1362, %v1686
        %v1717 = vadd.f32 %v1363, %v1691
        %v1718 = vadd.f32 %v1364, %v1694
        %v1719 = vadd.f32 %v1365, %v1699
        %v1720 = vadd.f32 %v1366, %v1702
        %1721 = vset.pattern.permute.xlu0 4
        %1722 = vperm.xlu0 %1721, %v254
        %v1723 = vpop.permute.xlu0 %1722
        %1724 = vset.pattern.permute.xlu0 4
        %1725 = vperm.xlu0 %1724, %v255
        %v1726 = vpop.permute.xlu0 %1725
        %1727 = vset.pattern.permute.xlu0 4
        %1728 = vperm.xlu0 %1727, %v256
        %v1729 = vpop.permute.xlu0 %1728
        %1730 = vset.pattern.permute.xlu0 4
        %1731 = vperm.xlu0 %1730, %v257
        %v1732 = vpop.permute.xlu0 %1731
        %1733 = vset.pattern.permute.xlu0 4
        %1734 = vperm.xlu0 %1733, %v258
        %v1735 = vpop.permute.xlu0 %1734
        %1736 = vset.pattern.permute.xlu0 4
        %1737 = vperm.xlu0 %1736, %v259
        %v1738 = vpop.permute.xlu0 %1737
        %1739 = vset.pattern.permute.xlu0 4
        %1740 = vperm.xlu0 %1739, %v260
        %v1741 = vpop.permute.xlu0 %1740
        %1742 = vset.pattern.permute.xlu0 4
        %1743 = vperm.xlu0 %1742, %v261
        %v1744 = vpop.permute.xlu0 %1743
        %1745 = vset.pattern.permute.xlu0 4
        %1746 = vperm.xlu0 %1745, %v262
        %v1747 = vpop.permute.xlu0 %1746
        %1748 = vset.pattern.permute.xlu0 4
        %1749 = vperm.xlu0 %1748, %v263
        %v1750 = vpop.permute.xlu0 %1749
        %1751 = vset.pattern.permute.xlu0 4
        %1752 = vperm.xlu0 %1751, %v264
        %v1753 = vpop.permute.xlu0 %1752
        %1754 = vset.pattern.permute.xlu0 4
        %1755 = vperm.xlu0 %1754, %v265
        %v1756 = vpop.permute.xlu0 %1755
        %1757 = vset.pattern.permute.xlu0 4
        %1758 = vperm.xlu0 %1757, %v266
        %v1759 = vpop.permute.xlu0 %1758
        %1760 = vset.pattern.permute.xlu0 4
        %1761 = vperm.xlu0 %1760, %v267
        %v1762 = vpop.permute.xlu0 %1761
        %1763 = vset.pattern.permute.xlu0 4
        %1764 = vperm.xlu0 %1763, %v268
        %v1765 = vpop.permute.xlu0 %1764
        %1766 = vset.pattern.permute.xlu0 4
        %1767 = vperm.xlu0 %1766, %v269
        %v1768 = vpop.permute.xlu0 %1767
        %vm1769 = vcmp.eq.s32.totalorder %v1723, %v287
        %vm1770 = vcmp.eq.s32.totalorder %v1726, %v287
        %vm1771 = vcmp.eq.s32.totalorder %v1729, %v287
        %vm1772 = vcmp.eq.s32.totalorder %v1732, %v287
        %vm1773 = vcmp.eq.s32.totalorder %v1735, %v287
        %vm1774 = vcmp.eq.s32.totalorder %v1738, %v287
        %vm1775 = vcmp.eq.s32.totalorder %v1741, %v287
        %vm1776 = vcmp.eq.s32.totalorder %v1744, %v287
        %vm1777 = vcmp.eq.s32.totalorder %v1747, %v287
        %vm1778 = vcmp.eq.s32.totalorder %v1750, %v287
        %vm1779 = vcmp.eq.s32.totalorder %v1753, %v287
        %vm1780 = vcmp.eq.s32.totalorder %v1756, %v287
        %vm1781 = vcmp.eq.s32.totalorder %v1759, %v287
        %vm1782 = vcmp.eq.s32.totalorder %v1762, %v287
        %vm1783 = vcmp.eq.s32.totalorder %v1765, %v287
        %vm1784 = vcmp.eq.s32.totalorder %v1768, %v287
        %v1785 = vsel %vm1769, 1, 0
        %v1786 = vsel %vm1770, 1, 0
        %v1787 = vsel %vm1771, 1, 0
        %v1788 = vsel %vm1772, 1, 0
        %v1789 = vsel %vm1773, 1, 0
        %v1790 = vsel %vm1774, 1, 0
        %v1791 = vsel %vm1775, 1, 0
        %v1792 = vsel %vm1776, 1, 0
        %v1793 = vsel %vm1777, 1, 0
        %v1794 = vsel %vm1778, 1, 0
        %v1795 = vsel %vm1779, 1, 0
        %v1796 = vsel %vm1780, 1, 0
        %v1797 = vsel %vm1781, 1, 0
        %v1798 = vsel %vm1782, 1, 0
        %v1799 = vsel %vm1783, 1, 0
        %v1800 = vsel %vm1784, 1, 0
        %v1801 = vcvt.s32.f32 %v1785
        %v1802 = vcvt.s32.f32 %v1786
        %v1803 = vcvt.s32.f32 %v1787
        %v1804 = vcvt.s32.f32 %v1788
        %v1805 = vcvt.s32.f32 %v1789
        %v1806 = vcvt.s32.f32 %v1790
        %v1807 = vcvt.s32.f32 %v1791
        %v1808 = vcvt.s32.f32 %v1792
        %v1809 = vcvt.s32.f32 %v1793
        %v1810 = vcvt.s32.f32 %v1794
        %v1811 = vcvt.s32.f32 %v1795
        %v1812 = vcvt.s32.f32 %v1796
        %v1813 = vcvt.s32.f32 %v1797
        %v1814 = vcvt.s32.f32 %v1798
        %v1815 = vcvt.s32.f32 %v1799
        %v1816 = vcvt.s32.f32 %v1800
        %v1817 = vpack.c.bf16 %v1802, %v1801
        %v1818 = vpack.c.bf16 %v1804, %v1803
        %v1819 = vpack.c.bf16 %v1806, %v1805
        %v1820 = vpack.c.bf16 %v1808, %v1807
        %v1821 = vpack.c.bf16 %v1810, %v1809
        %v1822 = vpack.c.bf16 %v1812, %v1811
        %v1823 = vpack.c.bf16 %v1814, %v1813
        %v1824 = vpack.c.bf16 %v1816, %v1815
        %1825 = vmatprep.subr.bf16.mxu0 0
        %1826 = vmatpush1.bf16.msra.mxu0 %v424
        %1827 = vmatprep.subr.bf16.mxu0 0
        %1828 = vmatpush1.bf16.msra.mxu0 %v425
        %1829 = vmatprep.subr.bf16.mxu0 0
        %1830 = vmatpush1.bf16.msra.mxu0 %v426
        %1831 = vmatprep.subr.bf16.mxu0 0
        %1832 = vmatpush1.bf16.msra.mxu0 %v427
        %1833 = vmatprep.subr.bf16.mxu0 0
        %1834 = vmatpush1.bf16.msra.mxu0 %v428
        %1835 = vmatprep.subr.bf16.mxu0 0
        %1836 = vmatpush1.bf16.msra.mxu0 %v429
        %1837 = vmatprep.subr.bf16.mxu0 0
        %1838 = vmatpush1.bf16.msra.mxu0 %v430
        %1839 = vmatprep.subr.bf16.mxu0 0
        %1840 = vmatpush1.bf16.msra.mxu0 %v431
        %1841 = vmatprep.subr.bf16.mxu0 0
        %1842 = vmatpush1.bf16.msra.mxu0 0
        %1843 = vmatprep.subr.bf16.mxu0 0
        %1844 = vmatpush1.bf16.msra.mxu0 0
        %1845 = vmatprep.subr.bf16.mxu0 0
        %1846 = vmatpush1.bf16.msra.mxu0 0
        %1847 = vmatprep.subr.bf16.mxu0 0
        %1848 = vmatpush1.bf16.msra.mxu0 0
        %1849 = vmatprep.subr.bf16.mxu0 0
        %1850 = vmatpush1.bf16.msra.mxu0 0
        %1851 = vmatprep.subr.bf16.mxu0 0
        %1852 = vmatpush1.bf16.msra.mxu0 0
        %1853 = vmatprep.subr.bf16.mxu0 0
        %1854 = vmatpush1.bf16.msra.mxu0 0
        %1855 = vmatprep.subr.bf16.mxu0 0
        %1856 = vmatpush1.bf16.msra.mxu0 0
        %1857 = vmatprep.mubr.bf16.mxu0 0
        %1858 = vmatmul.mubr.bf16.gmra.mrb[0].mxu0 %v1817
        %v1859 = vpop.f32.mrb[0].mxu0
        %v1860 = vadd.f32 0.0, %v1859
        %v1861 = vpop.f32.mrb[0].mxu0
        %v1862 = vpop.f32.mrb[0].mxu0
        %v1863 = vadd.f32 0.0, %v1862
        %v1864 = vpop.f32.mrb[0].mxu0
        %1865 = vmatprep.mubr.bf16.mxu0 0
        %1866 = vmatmul.mubr.bf16.gmra.mrb[0].mxu0 %v1818
        %v1867 = vpop.f32.mrb[0].mxu0
        %v1868 = vadd.f32 0.0, %v1867
        %v1869 = vpop.f32.mrb[0].mxu0
        %v1870 = vpop.f32.mrb[0].mxu0
        %v1871 = vadd.f32 0.0, %v1870
        %v1872 = vpop.f32.mrb[0].mxu0
        %1873 = vmatprep.mubr.bf16.mxu0 0
        %1874 = vmatmul.mubr.bf16.gmra.mrb[0].mxu0 %v1819
        %v1875 = vpop.f32.mrb[0].mxu0
        %v1876 = vadd.f32 0.0, %v1875
        %v1877 = vpop.f32.mrb[0].mxu0
        %v1878 = vpop.f32.mrb[0].mxu0
        %v1879 = vadd.f32 0.0, %v1878
        %v1880 = vpop.f32.mrb[0].mxu0
        %1881 = vmatprep.mubr.bf16.mxu0 0
        %1882 = vmatmul.mubr.bf16.gmra.mrb[0].mxu0 %v1820
        %v1883 = vpop.f32.mrb[0].mxu0
        %v1884 = vadd.f32 0.0, %v1883
        %v1885 = vpop.f32.mrb[0].mxu0
        %v1886 = vpop.f32.mrb[0].mxu0
        %v1887 = vadd.f32 0.0, %v1886
        %v1888 = vpop.f32.mrb[0].mxu0
        %1889 = vmatprep.mubr.bf16.mxu0 0
        %1890 = vmatmul.mubr.bf16.gmra.mrb[0].mxu0 %v1821
        %v1891 = vpop.f32.mrb[0].mxu0
        %v1892 = vadd.f32 0.0, %v1891
        %v1893 = vpop.f32.mrb[0].mxu0
        %v1894 = vpop.f32.mrb[0].mxu0
        %v1895 = vadd.f32 0.0, %v1894
        %v1896 = vpop.f32.mrb[0].mxu0
        %1897 = vmatprep.mubr.bf16.mxu0 0
        %1898 = vmatmul.mubr.bf16.gmra.mrb[0].mxu0 %v1822
        %v1899 = vpop.f32.mrb[0].mxu0
        %v1900 = vadd.f32 0.0, %v1899
        %v1901 = vpop.f32.mrb[0].mxu0
        %v1902 = vpop.f32.mrb[0].mxu0
        %v1903 = vadd.f32 0.0, %v1902
        %v1904 = vpop.f32.mrb[0].mxu0
        %1905 = vmatprep.mubr.bf16.mxu0 0
        %1906 = vmatmul.mubr.bf16.gmra.mrb[0].mxu0 %v1823
        %v1907 = vpop.f32.mrb[0].mxu0
        %v1908 = vadd.f32 0.0, %v1907
        %v1909 = vpop.f32.mrb[0].mxu0
        %v1910 = vpop.f32.mrb[0].mxu0
        %v1911 = vadd.f32 0.0, %v1910
        %v1912 = vpop.f32.mrb[0].mxu0
        %1913 = vmatprep.mubr.bf16.mxu0 0
        %1914 = vmatmul.mubr.bf16.gmra.mrb[0].mxu0 %v1824
        %v1915 = vpop.f32.mrb[0].mxu0
        %v1916 = vadd.f32 0.0, %v1915
        %v1917 = vpop.f32.mrb[0].mxu0
        %v1918 = vpop.f32.mrb[0].mxu0
        %v1919 = vadd.f32 0.0, %v1918
        %v1920 = vpop.f32.mrb[0].mxu0
        %1921 = vdwg.mxu0
        %v1922 = vpack.c.bf16 %v1863, %v1860
        %v1923 = vpack.c.bf16 %v1871, %v1868
        %v1924 = vpack.c.bf16 %v1879, %v1876
        %v1925 = vpack.c.bf16 %v1887, %v1884
        %v1926 = vpack.c.bf16 %v1895, %v1892
        %v1927 = vpack.c.bf16 %v1903, %v1900
        %v1928 = vpack.c.bf16 %v1911, %v1908
        %v1929 = vpack.c.bf16 %v1919, %v1916
        %v1930 = vld [vmem:[%s2 + $0x20] sm:$0xf]
        %v1931 = vld [vmem:[%s2 + $0x24] sm:$0xf]
        %v1934 = vunpack.c.l.b16 %v1930
        %v1935 = vunpack.c.l.b16 %v1931
        %v1936 = vpack.c.b16 %v1935, %v1934
        %v1939 = vsel %vm764, %v1922, 0
        %v1942 = vsel %vm764, %v1923, 0
        %v1945 = vsel %vm764, %v1924, 0
        %v1948 = vsel %vm764, %v1925, 0
        %v1951 = vsel %vm764, %v1926, 0
        %v1954 = vsel %vm764, %v1927, 0
        %v1957 = vsel %vm764, %v1928, 0
        %v1960 = vsel %vm764, %v1929, 0
        %1962 = vmatprep.subr.bf16.mxu0 0
        %1963 = vmatpush1.bf16.msra.mxu0 %v1936
        %1964 = vmatprep.subr.bf16.mxu0 0
        %1965 = vmatpush1.bf16.msra.mxu0 0
        %1966 = vmatprep.subr.bf16.mxu0 0
        %1967 = vmatpush1.bf16.msra.mxu0 0
        %1968 = vmatprep.subr.bf16.mxu0 0
        %1969 = vmatpush1.bf16.msra.mxu0 0
        %1970 = vmatprep.subr.bf16.mxu0 0
        %1971 = vmatpush1.bf16.msra.mxu0 0
        %1972 = vmatprep.subr.bf16.mxu0 0
        %1973 = vmatpush1.bf16.msra.mxu0 0
        %1974 = vmatprep.subr.bf16.mxu0 0
        %1975 = vmatpush1.bf16.msra.mxu0 0
        %1976 = vmatprep.subr.bf16.mxu0 0
        %1977 = vmatpush1.bf16.msra.mxu0 0
        %1978 = vmatprep.subr.bf16.mxu0 0
        %1979 = vmatpush1.bf16.msra.mxu0 0
        %1980 = vmatprep.subr.bf16.mxu0 0
        %1981 = vmatpush1.bf16.msra.mxu0 0
        %1982 = vmatprep.subr.bf16.mxu0 0
        %1983 = vmatpush1.bf16.msra.mxu0 0
        %1984 = vmatprep.subr.bf16.mxu0 0
        %1985 = vmatpush1.bf16.msra.mxu0 0
        %1986 = vmatprep.subr.bf16.mxu0 0
        %1987 = vmatpush1.bf16.msra.mxu0 0
        %1988 = vmatprep.subr.bf16.mxu0 0
        %1989 = vmatpush1.bf16.msra.mxu0 0
        %1990 = vmatprep.subr.bf16.mxu0 0
        %1991 = vmatpush1.bf16.msra.mxu0 0
        %1992 = vmatprep.subr.bf16.mxu0 0
        %1993 = vmatpush1.bf16.msra.mxu0 0
        %1994 = vmatprep.mubr.bf16.mxu0 0
        %1995 = vmatmul.mubr.bf16.gmra.mrb[0].mxu0 %v1939
        %v1996 = vpop.f32.mrb[0].mxu0
        %v1997 = vadd.f32 0.0, %v1996
        %v1998 = vpop.f32.mrb[0].mxu0
        %v1999 = vpop.f32.mrb[0].mxu0
        %v2000 = vadd.f32 0.0, %v1999
        %v2001 = vpop.f32.mrb[0].mxu0
        %2002 = vmatprep.mubr.bf16.mxu0 0
        %2003 = vmatmul.mubr.bf16.gmra.mrb[0].mxu0 %v1942
        %v2004 = vpop.f32.mrb[0].mxu0
        %v2005 = vadd.f32 0.0, %v2004
        %v2006 = vpop.f32.mrb[0].mxu0
        %v2007 = vpop.f32.mrb[0].mxu0
        %v2008 = vadd.f32 0.0, %v2007
        %v2009 = vpop.f32.mrb[0].mxu0
        %2010 = vmatprep.mubr.bf16.mxu0 0
        %2011 = vmatmul.mubr.bf16.gmra.mrb[0].mxu0 %v1945
        %v2012 = vpop.f32.mrb[0].mxu0
        %v2013 = vadd.f32 0.0, %v2012
        %v2014 = vpop.f32.mrb[0].mxu0
        %v2015 = vpop.f32.mrb[0].mxu0
        %v2016 = vadd.f32 0.0, %v2015
        %v2017 = vpop.f32.mrb[0].mxu0
        %2018 = vmatprep.mubr.bf16.mxu0 0
        %2019 = vmatmul.mubr.bf16.gmra.mrb[0].mxu0 %v1948
        %v2020 = vpop.f32.mrb[0].mxu0
        %v2021 = vadd.f32 0.0, %v2020
        %v2022 = vpop.f32.mrb[0].mxu0
        %v2023 = vpop.f32.mrb[0].mxu0
        %v2024 = vadd.f32 0.0, %v2023
        %v2025 = vpop.f32.mrb[0].mxu0
        %2026 = vmatprep.mubr.bf16.mxu0 0
        %2027 = vmatmul.mubr.bf16.gmra.mrb[0].mxu0 %v1951
        %v2028 = vpop.f32.mrb[0].mxu0
        %v2029 = vadd.f32 0.0, %v2028
        %v2030 = vpop.f32.mrb[0].mxu0
        %v2031 = vpop.f32.mrb[0].mxu0
        %v2032 = vadd.f32 0.0, %v2031
        %v2033 = vpop.f32.mrb[0].mxu0
        %2034 = vmatprep.mubr.bf16.mxu0 0
        %2035 = vmatmul.mubr.bf16.gmra.mrb[0].mxu0 %v1954
        %v2036 = vpop.f32.mrb[0].mxu0
        %v2037 = vadd.f32 0.0, %v2036
        %v2038 = vpop.f32.mrb[0].mxu0
        %v2039 = vpop.f32.mrb[0].mxu0
        %v2040 = vadd.f32 0.0, %v2039
        %v2041 = vpop.f32.mrb[0].mxu0
        %2042 = vmatprep.mubr.bf16.mxu0 0
        %2043 = vmatmul.mubr.bf16.gmra.mrb[0].mxu0 %v1957
        %v2044 = vpop.f32.mrb[0].mxu0
        %v2045 = vadd.f32 0.0, %v2044
        %v2046 = vpop.f32.mrb[0].mxu0
        %v2047 = vpop.f32.mrb[0].mxu0
        %v2048 = vadd.f32 0.0, %v2047
        %v2049 = vpop.f32.mrb[0].mxu0
        %2050 = vmatprep.mubr.bf16.mxu0 0
        %2051 = vmatmul.mubr.bf16.gmra.mrb[0].mxu0 %v1960
        %v2052 = vpop.f32.mrb[0].mxu0
        %v2053 = vadd.f32 0.0, %v2052
        %v2054 = vpop.f32.mrb[0].mxu0
        %v2055 = vpop.f32.mrb[0].mxu0
        %v2056 = vadd.f32 0.0, %v2055
        %v2057 = vpop.f32.mrb[0].mxu0
        %2058 = vdwg.mxu0
        %v2059 = vadd.f32 %v1705, %v1997
        %v2060 = vadd.f32 %v1706, %v2000
        %v2061 = vadd.f32 %v1707, %v2005
        %v2062 = vadd.f32 %v1708, %v2008
        %v2063 = vadd.f32 %v1709, %v2013
        %v2064 = vadd.f32 %v1710, %v2016
        %v2065 = vadd.f32 %v1711, %v2021
        %v2066 = vadd.f32 %v1712, %v2024
        %v2067 = vadd.f32 %v1713, %v2029
        %v2068 = vadd.f32 %v1714, %v2032
        %v2069 = vadd.f32 %v1715, %v2037
        %v2070 = vadd.f32 %v1716, %v2040
        %v2071 = vadd.f32 %v1717, %v2045
        %v2072 = vadd.f32 %v1718, %v2048
        %v2073 = vadd.f32 %v1719, %v2053
        %v2074 = vadd.f32 %v1720, %v2056
        %2075 = vset.pattern.permute.xlu0 5
        %2076 = vperm.xlu0 %2075, %v254
        %v2077 = vpop.permute.xlu0 %2076
        %2078 = vset.pattern.permute.xlu0 5
        %2079 = vperm.xlu0 %2078, %v255
        %v2080 = vpop.permute.xlu0 %2079
        %2081 = vset.pattern.permute.xlu0 5
        %2082 = vperm.xlu0 %2081, %v256
        %v2083 = vpop.permute.xlu0 %2082
        %2084 = vset.pattern.permute.xlu0 5
        %2085 = vperm.xlu0 %2084, %v257
        %v2086 = vpop.permute.xlu0 %2085
        %2087 = vset.pattern.permute.xlu0 5
        %2088 = vperm.xlu0 %2087, %v258
        %v2089 = vpop.permute.xlu0 %2088
        %2090 = vset.pattern.permute.xlu0 5
        %2091 = vperm.xlu0 %2090, %v259
        %v2092 = vpop.permute.xlu0 %2091
        %2093 = vset.pattern.permute.xlu0 5
        %2094 = vperm.xlu0 %2093, %v260
        %v2095 = vpop.permute.xlu0 %2094
        %2096 = vset.pattern.permute.xlu0 5
        %2097 = vperm.xlu0 %2096, %v261
        %v2098 = vpop.permute.xlu0 %2097
        %2099 = vset.pattern.permute.xlu0 5
        %2100 = vperm.xlu0 %2099, %v262
        %v2101 = vpop.permute.xlu0 %2100
        %2102 = vset.pattern.permute.xlu0 5
        %2103 = vperm.xlu0 %2102, %v263
        %v2104 = vpop.permute.xlu0 %2103
        %2105 = vset.pattern.permute.xlu0 5
        %2106 = vperm.xlu0 %2105, %v264
        %v2107 = vpop.permute.xlu0 %2106
        %2108 = vset.pattern.permute.xlu0 5
        %2109 = vperm.xlu0 %2108, %v265
        %v2110 = vpop.permute.xlu0 %2109
        %2111 = vset.pattern.permute.xlu0 5
        %2112 = vperm.xlu0 %2111, %v266
        %v2113 = vpop.permute.xlu0 %2112
        %2114 = vset.pattern.permute.xlu0 5
        %2115 = vperm.xlu0 %2114, %v267
        %v2116 = vpop.permute.xlu0 %2115
        %2117 = vset.pattern.permute.xlu0 5
        %2118 = vperm.xlu0 %2117, %v268
        %v2119 = vpop.permute.xlu0 %2118
        %2120 = vset.pattern.permute.xlu0 5
        %2121 = vperm.xlu0 %2120, %v269
        %v2122 = vpop.permute.xlu0 %2121
        %vm2123 = vcmp.eq.s32.totalorder %v2077, %v287
        %vm2124 = vcmp.eq.s32.totalorder %v2080, %v287
        %vm2125 = vcmp.eq.s32.totalorder %v2083, %v287
        %vm2126 = vcmp.eq.s32.totalorder %v2086, %v287
        %vm2127 = vcmp.eq.s32.totalorder %v2089, %v287
        %vm2128 = vcmp.eq.s32.totalorder %v2092, %v287
        %vm2129 = vcmp.eq.s32.totalorder %v2095, %v287
        %vm2130 = vcmp.eq.s32.totalorder %v2098, %v287
        %vm2131 = vcmp.eq.s32.totalorder %v2101, %v287
        %vm2132 = vcmp.eq.s32.totalorder %v2104, %v287
        %vm2133 = vcmp.eq.s32.totalorder %v2107, %v287
        %vm2134 = vcmp.eq.s32.totalorder %v2110, %v287
        %vm2135 = vcmp.eq.s32.totalorder %v2113, %v287
        %vm2136 = vcmp.eq.s32.totalorder %v2116, %v287
        %vm2137 = vcmp.eq.s32.totalorder %v2119, %v287
        %vm2138 = vcmp.eq.s32.totalorder %v2122, %v287
        %v2139 = vsel %vm2123, 1, 0
        %v2140 = vsel %vm2124, 1, 0
        %v2141 = vsel %vm2125, 1, 0
        %v2142 = vsel %vm2126, 1, 0
        %v2143 = vsel %vm2127, 1, 0
        %v2144 = vsel %vm2128, 1, 0
        %v2145 = vsel %vm2129, 1, 0
        %v2146 = vsel %vm2130, 1, 0
        %v2147 = vsel %vm2131, 1, 0
        %v2148 = vsel %vm2132, 1, 0
        %v2149 = vsel %vm2133, 1, 0
        %v2150 = vsel %vm2134, 1, 0
        %v2151 = vsel %vm2135, 1, 0
        %v2152 = vsel %vm2136, 1, 0
        %v2153 = vsel %vm2137, 1, 0
        %v2154 = vsel %vm2138, 1, 0
        %v2155 = vcvt.s32.f32 %v2139
        %v2156 = vcvt.s32.f32 %v2140
        %v2157 = vcvt.s32.f32 %v2141
        %v2158 = vcvt.s32.f32 %v2142
        %v2159 = vcvt.s32.f32 %v2143
        %v2160 = vcvt.s32.f32 %v2144
        %v2161 = vcvt.s32.f32 %v2145
        %v2162 = vcvt.s32.f32 %v2146
        %v2163 = vcvt.s32.f32 %v2147
        %v2164 = vcvt.s32.f32 %v2148
        %v2165 = vcvt.s32.f32 %v2149
        %v2166 = vcvt.s32.f32 %v2150
        %v2167 = vcvt.s32.f32 %v2151
        %v2168 = vcvt.s32.f32 %v2152
        %v2169 = vcvt.s32.f32 %v2153
        %v2170 = vcvt.s32.f32 %v2154
        %v2171 = vpack.c.bf16 %v2156, %v2155
        %v2172 = vpack.c.bf16 %v2158, %v2157
        %v2173 = vpack.c.bf16 %v2160, %v2159
        %v2174 = vpack.c.bf16 %v2162, %v2161
        %v2175 = vpack.c.bf16 %v2164, %v2163
        %v2176 = vpack.c.bf16 %v2166, %v2165
        %v2177 = vpack.c.bf16 %v2168, %v2167
        %v2178 = vpack.c.bf16 %v2170, %v2169
        %2179 = vmatprep.subr.bf16.mxu0 0
        %2180 = vmatpush1.bf16.msra.mxu0 %v424
        %2181 = vmatprep.subr.bf16.mxu0 0
        %2182 = vmatpush1.bf16.msra.mxu0 %v425
        %2183 = vmatprep.subr.bf16.mxu0 0
        %2184 = vmatpush1.bf16.msra.mxu0 %v426
        %2185 = vmatprep.subr.bf16.mxu0 0
        %2186 = vmatpush1.bf16.msra.mxu0 %v427
        %2187 = vmatprep.subr.bf16.mxu0 0
        %2188 = vmatpush1.bf16.msra.mxu0 %v428
        %2189 = vmatprep.subr.bf16.mxu0 0
        %2190 = vmatpush1.bf16.msra.mxu0 %v429
        %2191 = vmatprep.subr.bf16.mxu0 0
        %2192 = vmatpush1.bf16.msra.mxu0 %v430
        %2193 = vmatprep.subr.bf16.mxu0 0
        %2194 = vmatpush1.bf16.msra.mxu0 %v431
        %2195 = vmatprep.subr.bf16.mxu0 0
        %2196 = vmatpush1.bf16.msra.mxu0 0
        %2197 = vmatprep.subr.bf16.mxu0 0
        %2198 = vmatpush1.bf16.msra.mxu0 0
        %2199 = vmatprep.subr.bf16.mxu0 0
        %2200 = vmatpush1.bf16.msra.mxu0 0
        %2201 = vmatprep.subr.bf16.mxu0 0
        %2202 = vmatpush1.bf16.msra.mxu0 0
        %2203 = vmatprep.subr.bf16.mxu0 0
        %2204 = vmatpush1.bf16.msra.mxu0 0
        %2205 = vmatprep.subr.bf16.mxu0 0
        %2206 = vmatpush1.bf16.msra.mxu0 0
        %2207 = vmatprep.subr.bf16.mxu0 0
        %2208 = vmatpush1.bf16.msra.mxu0 0
        %2209 = vmatprep.subr.bf16.mxu0 0
        %2210 = vmatpush1.bf16.msra.mxu0 0
        %2211 = vmatprep.mubr.bf16.mxu0 0
        %2212 = vmatmul.mubr.bf16.gmra.mrb[0].mxu0 %v2171
        %v2213 = vpop.f32.mrb[0].mxu0
        %v2214 = vadd.f32 0.0, %v2213
        %v2215 = vpop.f32.mrb[0].mxu0
        %v2216 = vpop.f32.mrb[0].mxu0
        %v2217 = vadd.f32 0.0, %v2216
        %v2218 = vpop.f32.mrb[0].mxu0
        %2219 = vmatprep.mubr.bf16.mxu0 0
        %2220 = vmatmul.mubr.bf16.gmra.mrb[0].mxu0 %v2172
        %v2221 = vpop.f32.mrb[0].mxu0
        %v2222 = vadd.f32 0.0, %v2221
        %v2223 = vpop.f32.mrb[0].mxu0
        %v2224 = vpop.f32.mrb[0].mxu0
        %v2225 = vadd.f32 0.0, %v2224
        %v2226 = vpop.f32.mrb[0].mxu0
        %2227 = vmatprep.mubr.bf16.mxu0 0
        %2228 = vmatmul.mubr.bf16.gmra.mrb[0].mxu0 %v2173
        %v2229 = vpop.f32.mrb[0].mxu0
        %v2230 = vadd.f32 0.0, %v2229
        %v2231 = vpop.f32.mrb[0].mxu0
        %v2232 = vpop.f32.mrb[0].mxu0
        %v2233 = vadd.f32 0.0, %v2232
        %v2234 = vpop.f32.mrb[0].mxu0
        %2235 = vmatprep.mubr.bf16.mxu0 0
        %2236 = vmatmul.mubr.bf16.gmra.mrb[0].mxu0 %v2174
        %v2237 = vpop.f32.mrb[0].mxu0
        %v2238 = vadd.f32 0.0, %v2237
        %v2239 = vpop.f32.mrb[0].mxu0
        %v2240 = vpop.f32.mrb[0].mxu0
        %v2241 = vadd.f32 0.0, %v2240
        %v2242 = vpop.f32.mrb[0].mxu0
        %2243 = vmatprep.mubr.bf16.mxu0 0
        %2244 = vmatmul.mubr.bf16.gmra.mrb[0].mxu0 %v2175
        %v2245 = vpop.f32.mrb[0].mxu0
        %v2246 = vadd.f32 0.0, %v2245
        %v2247 = vpop.f32.mrb[0].mxu0
        %v2248 = vpop.f32.mrb[0].mxu0
        %v2249 = vadd.f32 0.0, %v2248
        %v2250 = vpop.f32.mrb[0].mxu0
        %2251 = vmatprep.mubr.bf16.mxu0 0
        %2252 = vmatmul.mubr.bf16.gmra.mrb[0].mxu0 %v2176
        %v2253 = vpop.f32.mrb[0].mxu0
        %v2254 = vadd.f32 0.0, %v2253
        %v2255 = vpop.f32.mrb[0].mxu0
        %v2256 = vpop.f32.mrb[0].mxu0
        %v2257 = vadd.f32 0.0, %v2256
        %v2258 = vpop.f32.mrb[0].mxu0
        %2259 = vmatprep.mubr.bf16.mxu0 0
        %2260 = vmatmul.mubr.bf16.gmra.mrb[0].mxu0 %v2177
        %v2261 = vpop.f32.mrb[0].mxu0
        %v2262 = vadd.f32 0.0, %v2261
        %v2263 = vpop.f32.mrb[0].mxu0
        %v2264 = vpop.f32.mrb[0].mxu0
        %v2265 = vadd.f32 0.0, %v2264
        %v2266 = vpop.f32.mrb[0].mxu0
        %2267 = vmatprep.mubr.bf16.mxu0 0
        %2268 = vmatmul.mubr.bf16.gmra.mrb[0].mxu0 %v2178
        %v2269 = vpop.f32.mrb[0].mxu0
        %v2270 = vadd.f32 0.0, %v2269
        %v2271 = vpop.f32.mrb[0].mxu0
        %v2272 = vpop.f32.mrb[0].mxu0
        %v2273 = vadd.f32 0.0, %v2272
        %v2274 = vpop.f32.mrb[0].mxu0
        %2275 = vdwg.mxu0
        %v2276 = vpack.c.bf16 %v2217, %v2214
        %v2277 = vpack.c.bf16 %v2225, %v2222
        %v2278 = vpack.c.bf16 %v2233, %v2230
        %v2279 = vpack.c.bf16 %v2241, %v2238
        %v2280 = vpack.c.bf16 %v2249, %v2246
        %v2281 = vpack.c.bf16 %v2257, %v2254
        %v2282 = vpack.c.bf16 %v2265, %v2262
        %v2283 = vpack.c.bf16 %v2273, %v2270
        %v2284 = vld [vmem:[%s2 + $0x28] sm:$0xf]
        %v2285 = vld [vmem:[%s2 + $0x2c] sm:$0xf]
        %v2288 = vunpack.c.l.b16 %v2284
        %v2289 = vunpack.c.l.b16 %v2285
        %v2290 = vpack.c.b16 %v2289, %v2288
        %v2293 = vsel %vm764, %v2276, 0
        %v2296 = vsel %vm764, %v2277, 0
        %v2299 = vsel %vm764, %v2278, 0
        %v2302 = vsel %vm764, %v2279, 0
        %v2305 = vsel %vm764, %v2280, 0
        %v2308 = vsel %vm764, %v2281, 0
        %v2311 = vsel %vm764, %v2282, 0
        %v2314 = vsel %vm764, %v2283, 0
        %2316 = vmatprep.subr.bf16.mxu0 0
        %2317 = vmatpush1.bf16.msra.mxu0 %v2290
        %2318 = vmatprep.subr.bf16.mxu0 0
        %2319 = vmatpush1.bf16.msra.mxu0 0
        %2320 = vmatprep.subr.bf16.mxu0 0
        %2321 = vmatpush1.bf16.msra.mxu0 0
        %2322 = vmatprep.subr.bf16.mxu0 0
        %2323 = vmatpush1.bf16.msra.mxu0 0
        %2324 = vmatprep.subr.bf16.mxu0 0
        %2325 = vmatpush1.bf16.msra.mxu0 0
        %2326 = vmatprep.subr.bf16.mxu0 0
        %2327 = vmatpush1.bf16.msra.mxu0 0
        %2328 = vmatprep.subr.bf16.mxu0 0
        %2329 = vmatpush1.bf16.msra.mxu0 0
        %2330 = vmatprep.subr.bf16.mxu0 0
        %2331 = vmatpush1.bf16.msra.mxu0 0
        %2332 = vmatprep.subr.bf16.mxu0 0
        %2333 = vmatpush1.bf16.msra.mxu0 0
        %2334 = vmatprep.subr.bf16.mxu0 0
        %2335 = vmatpush1.bf16.msra.mxu0 0
        %2336 = vmatprep.subr.bf16.mxu0 0
        %2337 = vmatpush1.bf16.msra.mxu0 0
        %2338 = vmatprep.subr.bf16.mxu0 0
        %2339 = vmatpush1.bf16.msra.mxu0 0
        %2340 = vmatprep.subr.bf16.mxu0 0
        %2341 = vmatpush1.bf16.msra.mxu0 0
        %2342 = vmatprep.subr.bf16.mxu0 0
        %2343 = vmatpush1.bf16.msra.mxu0 0
        %2344 = vmatprep.subr.bf16.mxu0 0
        %2345 = vmatpush1.bf16.msra.mxu0 0
        %2346 = vmatprep.subr.bf16.mxu0 0
        %2347 = vmatpush1.bf16.msra.mxu0 0
        %2348 = vmatprep.mubr.bf16.mxu0 0
        %2349 = vmatmul.mubr.bf16.gmra.mrb[0].mxu0 %v2293
        %v2350 = vpop.f32.mrb[0].mxu0
        %v2351 = vadd.f32 0.0, %v2350
        %v2352 = vpop.f32.mrb[0].mxu0
        %v2353 = vpop.f32.mrb[0].mxu0
        %v2354 = vadd.f32 0.0, %v2353
        %v2355 = vpop.f32.mrb[0].mxu0
        %2356 = vmatprep.mubr.bf16.mxu0 0
        %2357 = vmatmul.mubr.bf16.gmra.mrb[0].mxu0 %v2296
        %v2358 = vpop.f32.mrb[0].mxu0
        %v2359 = vadd.f32 0.0, %v2358
        %v2360 = vpop.f32.mrb[0].mxu0
        %v2361 = vpop.f32.mrb[0].mxu0
        %v2362 = vadd.f32 0.0, %v2361
        %v2363 = vpop.f32.mrb[0].mxu0
        %2364 = vmatprep.mubr.bf16.mxu0 0
        %2365 = vmatmul.mubr.bf16.gmra.mrb[0].mxu0 %v2299
        %v2366 = vpop.f32.mrb[0].mxu0
        %v2367 = vadd.f32 0.0, %v2366
        %v2368 = vpop.f32.mrb[0].mxu0
        %v2369 = vpop.f32.mrb[0].mxu0
        %v2370 = vadd.f32 0.0, %v2369
        %v2371 = vpop.f32.mrb[0].mxu0
        %2372 = vmatprep.mubr.bf16.mxu0 0
        %2373 = vmatmul.mubr.bf16.gmra.mrb[0].mxu0 %v2302
        %v2374 = vpop.f32.mrb[0].mxu0
        %v2375 = vadd.f32 0.0, %v2374
        %v2376 = vpop.f32.mrb[0].mxu0
        %v2377 = vpop.f32.mrb[0].mxu0
        %v2378 = vadd.f32 0.0, %v2377
        %v2379 = vpop.f32.mrb[0].mxu0
        %2380 = vmatprep.mubr.bf16.mxu0 0
        %2381 = vmatmul.mubr.bf16.gmra.mrb[0].mxu0 %v2305
        %v2382 = vpop.f32.mrb[0].mxu0
        %v2383 = vadd.f32 0.0, %v2382
        %v2384 = vpop.f32.mrb[0].mxu0
        %v2385 = vpop.f32.mrb[0].mxu0
        %v2386 = vadd.f32 0.0, %v2385
        %v2387 = vpop.f32.mrb[0].mxu0
        %2388 = vmatprep.mubr.bf16.mxu0 0
        %2389 = vmatmul.mubr.bf16.gmra.mrb[0].mxu0 %v2308
        %v2390 = vpop.f32.mrb[0].mxu0
        %v2391 = vadd.f32 0.0, %v2390
        %v2392 = vpop.f32.mrb[0].mxu0
        %v2393 = vpop.f32.mrb[0].mxu0
        %v2394 = vadd.f32 0.0, %v2393
        %v2395 = vpop.f32.mrb[0].mxu0
        %2396 = vmatprep.mubr.bf16.mxu0 0
        %2397 = vmatmul.mubr.bf16.gmra.mrb[0].mxu0 %v2311
        %v2398 = vpop.f32.mrb[0].mxu0
        %v2399 = vadd.f32 0.0, %v2398
        %v2400 = vpop.f32.mrb[0].mxu0
        %v2401 = vpop.f32.mrb[0].mxu0
        %v2402 = vadd.f32 0.0, %v2401
        %v2403 = vpop.f32.mrb[0].mxu0
        %2404 = vmatprep.mubr.bf16.mxu0 0
        %2405 = vmatmul.mubr.bf16.gmra.mrb[0].mxu0 %v2314
        %v2406 = vpop.f32.mrb[0].mxu0
        %v2407 = vadd.f32 0.0, %v2406
        %v2408 = vpop.f32.mrb[0].mxu0
        %v2409 = vpop.f32.mrb[0].mxu0
        %v2410 = vadd.f32 0.0, %v2409
        %v2411 = vpop.f32.mrb[0].mxu0
        %2412 = vdwg.mxu0
        %v2413 = vadd.f32 %v2059, %v2351
        %v2414 = vadd.f32 %v2060, %v2354
        %v2415 = vadd.f32 %v2061, %v2359
        %v2416 = vadd.f32 %v2062, %v2362
        %v2417 = vadd.f32 %v2063, %v2367
        %v2418 = vadd.f32 %v2064, %v2370
        %v2419 = vadd.f32 %v2065, %v2375
        %v2420 = vadd.f32 %v2066, %v2378
        %v2421 = vadd.f32 %v2067, %v2383
        %v2422 = vadd.f32 %v2068, %v2386
        %v2423 = vadd.f32 %v2069, %v2391
        %v2424 = vadd.f32 %v2070, %v2394
        %v2425 = vadd.f32 %v2071, %v2399
        %v2426 = vadd.f32 %v2072, %v2402
        %v2427 = vadd.f32 %v2073, %v2407
        %v2428 = vadd.f32 %v2074, %v2410
        %2429 = vset.pattern.permute.xlu0 6
        %2430 = vperm.xlu0 %2429, %v254
        %v2431 = vpop.permute.xlu0 %2430
        %2432 = vset.pattern.permute.xlu0 6
        %2433 = vperm.xlu0 %2432, %v255
        %v2434 = vpop.permute.xlu0 %2433
        %2435 = vset.pattern.permute.xlu0 6
        %2436 = vperm.xlu0 %2435, %v256
        %v2437 = vpop.permute.xlu0 %2436
        %2438 = vset.pattern.permute.xlu0 6
        %2439 = vperm.xlu0 %2438, %v257
        %v2440 = vpop.permute.xlu0 %2439
        %2441 = vset.pattern.permute.xlu0 6
        %2442 = vperm.xlu0 %2441, %v258
        %v2443 = vpop.permute.xlu0 %2442
        %2444 = vset.pattern.permute.xlu0 6
        %2445 = vperm.xlu0 %2444, %v259
        %v2446 = vpop.permute.xlu0 %2445
        %2447 = vset.pattern.permute.xlu0 6
        %2448 = vperm.xlu0 %2447, %v260
        %v2449 = vpop.permute.xlu0 %2448
        %2450 = vset.pattern.permute.xlu0 6
        %2451 = vperm.xlu0 %2450, %v261
        %v2452 = vpop.permute.xlu0 %2451
        %2453 = vset.pattern.permute.xlu0 6
        %2454 = vperm.xlu0 %2453, %v262
        %v2455 = vpop.permute.xlu0 %2454
        %2456 = vset.pattern.permute.xlu0 6
        %2457 = vperm.xlu0 %2456, %v263
        %v2458 = vpop.permute.xlu0 %2457
        %2459 = vset.pattern.permute.xlu0 6
        %2460 = vperm.xlu0 %2459, %v264
        %v2461 = vpop.permute.xlu0 %2460
        %2462 = vset.pattern.permute.xlu0 6
        %2463 = vperm.xlu0 %2462, %v265
        %v2464 = vpop.permute.xlu0 %2463
        %2465 = vset.pattern.permute.xlu0 6
        %2466 = vperm.xlu0 %2465, %v266
        %v2467 = vpop.permute.xlu0 %2466
        %2468 = vset.pattern.permute.xlu0 6
        %2469 = vperm.xlu0 %2468, %v267
        %v2470 = vpop.permute.xlu0 %2469
        %2471 = vset.pattern.permute.xlu0 6
        %2472 = vperm.xlu0 %2471, %v268
        %v2473 = vpop.permute.xlu0 %2472
        %2474 = vset.pattern.permute.xlu0 6
        %2475 = vperm.xlu0 %2474, %v269
        %v2476 = vpop.permute.xlu0 %2475
        %vm2477 = vcmp.eq.s32.totalorder %v2431, %v287
        %vm2478 = vcmp.eq.s32.totalorder %v2434, %v287
        %vm2479 = vcmp.eq.s32.totalorder %v2437, %v287
        %vm2480 = vcmp.eq.s32.totalorder %v2440, %v287
        %vm2481 = vcmp.eq.s32.totalorder %v2443, %v287
        %vm2482 = vcmp.eq.s32.totalorder %v2446, %v287
        %vm2483 = vcmp.eq.s32.totalorder %v2449, %v287
        %vm2484 = vcmp.eq.s32.totalorder %v2452, %v287
        %vm2485 = vcmp.eq.s32.totalorder %v2455, %v287
        %vm2486 = vcmp.eq.s32.totalorder %v2458, %v287
        %vm2487 = vcmp.eq.s32.totalorder %v2461, %v287
        %vm2488 = vcmp.eq.s32.totalorder %v2464, %v287
        %vm2489 = vcmp.eq.s32.totalorder %v2467, %v287
        %vm2490 = vcmp.eq.s32.totalorder %v2470, %v287
        %vm2491 = vcmp.eq.s32.totalorder %v2473, %v287
        %vm2492 = vcmp.eq.s32.totalorder %v2476, %v287
        %v2493 = vsel %vm2477, 1, 0
        %v2494 = vsel %vm2478, 1, 0
        %v2495 = vsel %vm2479, 1, 0
        %v2496 = vsel %vm2480, 1, 0
        %v2497 = vsel %vm2481, 1, 0
        %v2498 = vsel %vm2482, 1, 0
        %v2499 = vsel %vm2483, 1, 0
        %v2500 = vsel %vm2484, 1, 0
        %v2501 = vsel %vm2485, 1, 0
        %v2502 = vsel %vm2486, 1, 0
        %v2503 = vsel %vm2487, 1, 0
        %v2504 = vsel %vm2488, 1, 0
        %v2505 = vsel %vm2489, 1, 0
        %v2506 = vsel %vm2490, 1, 0
        %v2507 = vsel %vm2491, 1, 0
        %v2508 = vsel %vm2492, 1, 0
        %v2509 = vcvt.s32.f32 %v2493
        %v2510 = vcvt.s32.f32 %v2494
        %v2511 = vcvt.s32.f32 %v2495
        %v2512 = vcvt.s32.f32 %v2496
        %v2513 = vcvt.s32.f32 %v2497
        %v2514 = vcvt.s32.f32 %v2498
        %v2515 = vcvt.s32.f32 %v2499
        %v2516 = vcvt.s32.f32 %v2500
        %v2517 = vcvt.s32.f32 %v2501
        %v2518 = vcvt.s32.f32 %v2502
        %v2519 = vcvt.s32.f32 %v2503
        %v2520 = vcvt.s32.f32 %v2504
        %v2521 = vcvt.s32.f32 %v2505
        %v2522 = vcvt.s32.f32 %v2506
        %v2523 = vcvt.s32.f32 %v2507
        %v2524 = vcvt.s32.f32 %v2508
        %v2525 = vpack.c.bf16 %v2510, %v2509
        %v2526 = vpack.c.bf16 %v2512, %v2511
        %v2527 = vpack.c.bf16 %v2514, %v2513
        %v2528 = vpack.c.bf16 %v2516, %v2515
        %v2529 = vpack.c.bf16 %v2518, %v2517
        %v2530 = vpack.c.bf16 %v2520, %v2519
        %v2531 = vpack.c.bf16 %v2522, %v2521
        %v2532 = vpack.c.bf16 %v2524, %v2523
        %2533 = vmatprep.subr.bf16.mxu0 0
        %2534 = vmatpush1.bf16.msra.mxu0 %v424
        %2535 = vmatprep.subr.bf16.mxu0 0
        %2536 = vmatpush1.bf16.msra.mxu0 %v425
        %2537 = vmatprep.subr.bf16.mxu0 0
        %2538 = vmatpush1.bf16.msra.mxu0 %v426
        %2539 = vmatprep.subr.bf16.mxu0 0
        %2540 = vmatpush1.bf16.msra.mxu0 %v427
        %2541 = vmatprep.subr.bf16.mxu0 0
        %2542 = vmatpush1.bf16.msra.mxu0 %v428
        %2543 = vmatprep.subr.bf16.mxu0 0
        %2544 = vmatpush1.bf16.msra.mxu0 %v429
        %2545 = vmatprep.subr.bf16.mxu0 0
        %2546 = vmatpush1.bf16.msra.mxu0 %v430
        %2547 = vmatprep.subr.bf16.mxu0 0
        %2548 = vmatpush1.bf16.msra.mxu0 %v431
        %2549 = vmatprep.subr.bf16.mxu0 0
        %2550 = vmatpush1.bf16.msra.mxu0 0
        %2551 = vmatprep.subr.bf16.mxu0 0
        %2552 = vmatpush1.bf16.msra.mxu0 0
        %2553 = vmatprep.subr.bf16.mxu0 0
        %2554 = vmatpush1.bf16.msra.mxu0 0
        %2555 = vmatprep.subr.bf16.mxu0 0
        %2556 = vmatpush1.bf16.msra.mxu0 0
        %2557 = vmatprep.subr.bf16.mxu0 0
        %2558 = vmatpush1.bf16.msra.mxu0 0
        %2559 = vmatprep.subr.bf16.mxu0 0
        %2560 = vmatpush1.bf16.msra.mxu0 0
        %2561 = vmatprep.subr.bf16.mxu0 0
        %2562 = vmatpush1.bf16.msra.mxu0 0
        %2563 = vmatprep.subr.bf16.mxu0 0
        %2564 = vmatpush1.bf16.msra.mxu0 0
        %2565 = vmatprep.mubr.bf16.mxu0 0
        %2566 = vmatmul.mubr.bf16.gmra.mrb[0].mxu0 %v2525
        %v2567 = vpop.f32.mrb[0].mxu0
        %v2568 = vadd.f32 0.0, %v2567
        %v2569 = vpop.f32.mrb[0].mxu0
        %v2570 = vpop.f32.mrb[0].mxu0
        %v2571 = vadd.f32 0.0, %v2570
        %v2572 = vpop.f32.mrb[0].mxu0
        %2573 = vmatprep.mubr.bf16.mxu0 0
        %2574 = vmatmul.mubr.bf16.gmra.mrb[0].mxu0 %v2526
        %v2575 = vpop.f32.mrb[0].mxu0
        %v2576 = vadd.f32 0.0, %v2575
        %v2577 = vpop.f32.mrb[0].mxu0
        %v2578 = vpop.f32.mrb[0].mxu0
        %v2579 = vadd.f32 0.0, %v2578
        %v2580 = vpop.f32.mrb[0].mxu0
        %2581 = vmatprep.mubr.bf16.mxu0 0
        %2582 = vmatmul.mubr.bf16.gmra.mrb[0].mxu0 %v2527
        %v2583 = vpop.f32.mrb[0].mxu0
        %v2584 = vadd.f32 0.0, %v2583
        %v2585 = vpop.f32.mrb[0].mxu0
        %v2586 = vpop.f32.mrb[0].mxu0
        %v2587 = vadd.f32 0.0, %v2586
        %v2588 = vpop.f32.mrb[0].mxu0
        %2589 = vmatprep.mubr.bf16.mxu0 0
        %2590 = vmatmul.mubr.bf16.gmra.mrb[0].mxu0 %v2528
        %v2591 = vpop.f32.mrb[0].mxu0
        %v2592 = vadd.f32 0.0, %v2591
        %v2593 = vpop.f32.mrb[0].mxu0
        %v2594 = vpop.f32.mrb[0].mxu0
        %v2595 = vadd.f32 0.0, %v2594
        %v2596 = vpop.f32.mrb[0].mxu0
        %2597 = vmatprep.mubr.bf16.mxu0 0
        %2598 = vmatmul.mubr.bf16.gmra.mrb[0].mxu0 %v2529
        %v2599 = vpop.f32.mrb[0].mxu0
        %v2600 = vadd.f32 0.0, %v2599
        %v2601 = vpop.f32.mrb[0].mxu0
        %v2602 = vpop.f32.mrb[0].mxu0
        %v2603 = vadd.f32 0.0, %v2602
        %v2604 = vpop.f32.mrb[0].mxu0
        %2605 = vmatprep.mubr.bf16.mxu0 0
        %2606 = vmatmul.mubr.bf16.gmra.mrb[0].mxu0 %v2530
        %v2607 = vpop.f32.mrb[0].mxu0
        %v2608 = vadd.f32 0.0, %v2607
        %v2609 = vpop.f32.mrb[0].mxu0
        %v2610 = vpop.f32.mrb[0].mxu0
        %v2611 = vadd.f32 0.0, %v2610
        %v2612 = vpop.f32.mrb[0].mxu0
        %2613 = vmatprep.mubr.bf16.mxu0 0
        %2614 = vmatmul.mubr.bf16.gmra.mrb[0].mxu0 %v2531
        %v2615 = vpop.f32.mrb[0].mxu0
        %v2616 = vadd.f32 0.0, %v2615
        %v2617 = vpop.f32.mrb[0].mxu0
        %v2618 = vpop.f32.mrb[0].mxu0
        %v2619 = vadd.f32 0.0, %v2618
        %v2620 = vpop.f32.mrb[0].mxu0
        %2621 = vmatprep.mubr.bf16.mxu0 0
        %2622 = vmatmul.mubr.bf16.gmra.mrb[0].mxu0 %v2532
        %v2623 = vpop.f32.mrb[0].mxu0
        %v2624 = vadd.f32 0.0, %v2623
        %v2625 = vpop.f32.mrb[0].mxu0
        %v2626 = vpop.f32.mrb[0].mxu0
        %v2627 = vadd.f32 0.0, %v2626
        %v2628 = vpop.f32.mrb[0].mxu0
        %2629 = vdwg.mxu0
        %v2630 = vpack.c.bf16 %v2571, %v2568
        %v2631 = vpack.c.bf16 %v2579, %v2576
        %v2632 = vpack.c.bf16 %v2587, %v2584
        %v2633 = vpack.c.bf16 %v2595, %v2592
        %v2634 = vpack.c.bf16 %v2603, %v2600
        %v2635 = vpack.c.bf16 %v2611, %v2608
        %v2636 = vpack.c.bf16 %v2619, %v2616
        %v2637 = vpack.c.bf16 %v2627, %v2624
        %v2638 = vld [vmem:[%s2 + $0x30] sm:$0xf]
        %v2639 = vld [vmem:[%s2 + $0x34] sm:$0xf]
        %v2642 = vunpack.c.l.b16 %v2638
        %v2643 = vunpack.c.l.b16 %v2639
        %v2644 = vpack.c.b16 %v2643, %v2642
        %v2647 = vsel %vm764, %v2630, 0
        %v2650 = vsel %vm764, %v2631, 0
        %v2653 = vsel %vm764, %v2632, 0
        %v2656 = vsel %vm764, %v2633, 0
        %v2659 = vsel %vm764, %v2634, 0
        %v2662 = vsel %vm764, %v2635, 0
        %v2665 = vsel %vm764, %v2636, 0
        %v2668 = vsel %vm764, %v2637, 0
        %2670 = vmatprep.subr.bf16.mxu0 0
        %2671 = vmatpush1.bf16.msra.mxu0 %v2644
        %2672 = vmatprep.subr.bf16.mxu0 0
        %2673 = vmatpush1.bf16.msra.mxu0 0
        %2674 = vmatprep.subr.bf16.mxu0 0
        %2675 = vmatpush1.bf16.msra.mxu0 0
        %2676 = vmatprep.subr.bf16.mxu0 0
        %2677 = vmatpush1.bf16.msra.mxu0 0
        %2678 = vmatprep.subr.bf16.mxu0 0
        %2679 = vmatpush1.bf16.msra.mxu0 0
        %2680 = vmatprep.subr.bf16.mxu0 0
        %2681 = vmatpush1.bf16.msra.mxu0 0
        %2682 = vmatprep.subr.bf16.mxu0 0
        %2683 = vmatpush1.bf16.msra.mxu0 0
        %2684 = vmatprep.subr.bf16.mxu0 0
        %2685 = vmatpush1.bf16.msra.mxu0 0
        %2686 = vmatprep.subr.bf16.mxu0 0
        %2687 = vmatpush1.bf16.msra.mxu0 0
        %2688 = vmatprep.subr.bf16.mxu0 0
        %2689 = vmatpush1.bf16.msra.mxu0 0
        %2690 = vmatprep.subr.bf16.mxu0 0
        %2691 = vmatpush1.bf16.msra.mxu0 0
        %2692 = vmatprep.subr.bf16.mxu0 0
        %2693 = vmatpush1.bf16.msra.mxu0 0
        %2694 = vmatprep.subr.bf16.mxu0 0
        %2695 = vmatpush1.bf16.msra.mxu0 0
        %2696 = vmatprep.subr.bf16.mxu0 0
        %2697 = vmatpush1.bf16.msra.mxu0 0
        %2698 = vmatprep.subr.bf16.mxu0 0
        %2699 = vmatpush1.bf16.msra.mxu0 0
        %2700 = vmatprep.subr.bf16.mxu0 0
        %2701 = vmatpush1.bf16.msra.mxu0 0
        %2702 = vmatprep.mubr.bf16.mxu0 0
        %2703 = vmatmul.mubr.bf16.gmra.mrb[0].mxu0 %v2647
        %v2704 = vpop.f32.mrb[0].mxu0
        %v2705 = vadd.f32 0.0, %v2704
        %v2706 = vpop.f32.mrb[0].mxu0
        %v2707 = vpop.f32.mrb[0].mxu0
        %v2708 = vadd.f32 0.0, %v2707
        %v2709 = vpop.f32.mrb[0].mxu0
        %2710 = vmatprep.mubr.bf16.mxu0 0
        %2711 = vmatmul.mubr.bf16.gmra.mrb[0].mxu0 %v2650
        %v2712 = vpop.f32.mrb[0].mxu0
        %v2713 = vadd.f32 0.0, %v2712
        %v2714 = vpop.f32.mrb[0].mxu0
        %v2715 = vpop.f32.mrb[0].mxu0
        %v2716 = vadd.f32 0.0, %v2715
        %v2717 = vpop.f32.mrb[0].mxu0
        %2718 = vmatprep.mubr.bf16.mxu0 0
        %2719 = vmatmul.mubr.bf16.gmra.mrb[0].mxu0 %v2653
        %v2720 = vpop.f32.mrb[0].mxu0
        %v2721 = vadd.f32 0.0, %v2720
        %v2722 = vpop.f32.mrb[0].mxu0
        %v2723 = vpop.f32.mrb[0].mxu0
        %v2724 = vadd.f32 0.0, %v2723
        %v2725 = vpop.f32.mrb[0].mxu0
        %2726 = vmatprep.mubr.bf16.mxu0 0
        %2727 = vmatmul.mubr.bf16.gmra.mrb[0].mxu0 %v2656
        %v2728 = vpop.f32.mrb[0].mxu0
        %v2729 = vadd.f32 0.0, %v2728
        %v2730 = vpop.f32.mrb[0].mxu0
        %v2731 = vpop.f32.mrb[0].mxu0
        %v2732 = vadd.f32 0.0, %v2731
        %v2733 = vpop.f32.mrb[0].mxu0
        %2734 = vmatprep.mubr.bf16.mxu0 0
        %2735 = vmatmul.mubr.bf16.gmra.mrb[0].mxu0 %v2659
        %v2736 = vpop.f32.mrb[0].mxu0
        %v2737 = vadd.f32 0.0, %v2736
        %v2738 = vpop.f32.mrb[0].mxu0
        %v2739 = vpop.f32.mrb[0].mxu0
        %v2740 = vadd.f32 0.0, %v2739
        %v2741 = vpop.f32.mrb[0].mxu0
        %2742 = vmatprep.mubr.bf16.mxu0 0
        %2743 = vmatmul.mubr.bf16.gmra.mrb[0].mxu0 %v2662
        %v2744 = vpop.f32.mrb[0].mxu0
        %v2745 = vadd.f32 0.0, %v2744
        %v2746 = vpop.f32.mrb[0].mxu0
        %v2747 = vpop.f32.mrb[0].mxu0
        %v2748 = vadd.f32 0.0, %v2747
        %v2749 = vpop.f32.mrb[0].mxu0
        %2750 = vmatprep.mubr.bf16.mxu0 0
        %2751 = vmatmul.mubr.bf16.gmra.mrb[0].mxu0 %v2665
        %v2752 = vpop.f32.mrb[0].mxu0
        %v2753 = vadd.f32 0.0, %v2752
        %v2754 = vpop.f32.mrb[0].mxu0
        %v2755 = vpop.f32.mrb[0].mxu0
        %v2756 = vadd.f32 0.0, %v2755
        %v2757 = vpop.f32.mrb[0].mxu0
        %2758 = vmatprep.mubr.bf16.mxu0 0
        %2759 = vmatmul.mubr.bf16.gmra.mrb[0].mxu0 %v2668
        %v2760 = vpop.f32.mrb[0].mxu0
        %v2761 = vadd.f32 0.0, %v2760
        %v2762 = vpop.f32.mrb[0].mxu0
        %v2763 = vpop.f32.mrb[0].mxu0
        %v2764 = vadd.f32 0.0, %v2763
        %v2765 = vpop.f32.mrb[0].mxu0
        %2766 = vdwg.mxu0
        %v2767 = vadd.f32 %v2413, %v2705
        %v2768 = vadd.f32 %v2414, %v2708
        %v2769 = vadd.f32 %v2415, %v2713
        %v2770 = vadd.f32 %v2416, %v2716
        %v2771 = vadd.f32 %v2417, %v2721
        %v2772 = vadd.f32 %v2418, %v2724
        %v2773 = vadd.f32 %v2419, %v2729
        %v2774 = vadd.f32 %v2420, %v2732
        %v2775 = vadd.f32 %v2421, %v2737
        %v2776 = vadd.f32 %v2422, %v2740
        %v2777 = vadd.f32 %v2423, %v2745
        %v2778 = vadd.f32 %v2424, %v2748
        %v2779 = vadd.f32 %v2425, %v2753
        %v2780 = vadd.f32 %v2426, %v2756
        %v2781 = vadd.f32 %v2427, %v2761
        %v2782 = vadd.f32 %v2428, %v2764
        %2783 = vset.pattern.permute.xlu0 7
        %2784 = vperm.xlu0 %2783, %v254
        %v2785 = vpop.permute.xlu0 %2784
        %2786 = vset.pattern.permute.xlu0 7
        %2787 = vperm.xlu0 %2786, %v255
        %v2788 = vpop.permute.xlu0 %2787
        %2789 = vset.pattern.permute.xlu0 7
        %2790 = vperm.xlu0 %2789, %v256
        %v2791 = vpop.permute.xlu0 %2790
        %2792 = vset.pattern.permute.xlu0 7
        %2793 = vperm.xlu0 %2792, %v257
        %v2794 = vpop.permute.xlu0 %2793
        %2795 = vset.pattern.permute.xlu0 7
        %2796 = vperm.xlu0 %2795, %v258
        %v2797 = vpop.permute.xlu0 %2796
        %2798 = vset.pattern.permute.xlu0 7
        %2799 = vperm.xlu0 %2798, %v259
        %v2800 = vpop.permute.xlu0 %2799
        %2801 = vset.pattern.permute.xlu0 7
        %2802 = vperm.xlu0 %2801, %v260
        %v2803 = vpop.permute.xlu0 %2802
        %2804 = vset.pattern.permute.xlu0 7
        %2805 = vperm.xlu0 %2804, %v261
        %v2806 = vpop.permute.xlu0 %2805
        %2807 = vset.pattern.permute.xlu0 7
        %2808 = vperm.xlu0 %2807, %v262
        %v2809 = vpop.permute.xlu0 %2808
        %2810 = vset.pattern.permute.xlu0 7
        %2811 = vperm.xlu0 %2810, %v263
        %v2812 = vpop.permute.xlu0 %2811
        %2813 = vset.pattern.permute.xlu0 7
        %2814 = vperm.xlu0 %2813, %v264
        %v2815 = vpop.permute.xlu0 %2814
        %2816 = vset.pattern.permute.xlu0 7
        %2817 = vperm.xlu0 %2816, %v265
        %v2818 = vpop.permute.xlu0 %2817
        %2819 = vset.pattern.permute.xlu0 7
        %2820 = vperm.xlu0 %2819, %v266
        %v2821 = vpop.permute.xlu0 %2820
        %2822 = vset.pattern.permute.xlu0 7
        %2823 = vperm.xlu0 %2822, %v267
        %v2824 = vpop.permute.xlu0 %2823
        %2825 = vset.pattern.permute.xlu0 7
        %2826 = vperm.xlu0 %2825, %v268
        %v2827 = vpop.permute.xlu0 %2826
        %2828 = vset.pattern.permute.xlu0 7
        %2829 = vperm.xlu0 %2828, %v269
        %v2830 = vpop.permute.xlu0 %2829
        %vm2831 = vcmp.eq.s32.totalorder %v2785, %v287
        %vm2832 = vcmp.eq.s32.totalorder %v2788, %v287
        %vm2833 = vcmp.eq.s32.totalorder %v2791, %v287
        %vm2834 = vcmp.eq.s32.totalorder %v2794, %v287
        %vm2835 = vcmp.eq.s32.totalorder %v2797, %v287
        %vm2836 = vcmp.eq.s32.totalorder %v2800, %v287
        %vm2837 = vcmp.eq.s32.totalorder %v2803, %v287
        %vm2838 = vcmp.eq.s32.totalorder %v2806, %v287
        %vm2839 = vcmp.eq.s32.totalorder %v2809, %v287
        %vm2840 = vcmp.eq.s32.totalorder %v2812, %v287
        %vm2841 = vcmp.eq.s32.totalorder %v2815, %v287
        %vm2842 = vcmp.eq.s32.totalorder %v2818, %v287
        %vm2843 = vcmp.eq.s32.totalorder %v2821, %v287
        %vm2844 = vcmp.eq.s32.totalorder %v2824, %v287
        %vm2845 = vcmp.eq.s32.totalorder %v2827, %v287
        %vm2846 = vcmp.eq.s32.totalorder %v2830, %v287
        %v2847 = vsel %vm2831, 1, 0
        %v2848 = vsel %vm2832, 1, 0
        %v2849 = vsel %vm2833, 1, 0
        %v2850 = vsel %vm2834, 1, 0
        %v2851 = vsel %vm2835, 1, 0
        %v2852 = vsel %vm2836, 1, 0
        %v2853 = vsel %vm2837, 1, 0
        %v2854 = vsel %vm2838, 1, 0
        %v2855 = vsel %vm2839, 1, 0
        %v2856 = vsel %vm2840, 1, 0
        %v2857 = vsel %vm2841, 1, 0
        %v2858 = vsel %vm2842, 1, 0
        %v2859 = vsel %vm2843, 1, 0
        %v2860 = vsel %vm2844, 1, 0
        %v2861 = vsel %vm2845, 1, 0
        %v2862 = vsel %vm2846, 1, 0
        %v2863 = vcvt.s32.f32 %v2847
        %v2864 = vcvt.s32.f32 %v2848
        %v2865 = vcvt.s32.f32 %v2849
        %v2866 = vcvt.s32.f32 %v2850
        %v2867 = vcvt.s32.f32 %v2851
        %v2868 = vcvt.s32.f32 %v2852
        %v2869 = vcvt.s32.f32 %v2853
        %v2870 = vcvt.s32.f32 %v2854
        %v2871 = vcvt.s32.f32 %v2855
        %v2872 = vcvt.s32.f32 %v2856
        %v2873 = vcvt.s32.f32 %v2857
        %v2874 = vcvt.s32.f32 %v2858
        %v2875 = vcvt.s32.f32 %v2859
        %v2876 = vcvt.s32.f32 %v2860
        %v2877 = vcvt.s32.f32 %v2861
        %v2878 = vcvt.s32.f32 %v2862
        %v2879 = vpack.c.bf16 %v2864, %v2863
        %v2880 = vpack.c.bf16 %v2866, %v2865
        %v2881 = vpack.c.bf16 %v2868, %v2867
        %v2882 = vpack.c.bf16 %v2870, %v2869
        %v2883 = vpack.c.bf16 %v2872, %v2871
        %v2884 = vpack.c.bf16 %v2874, %v2873
        %v2885 = vpack.c.bf16 %v2876, %v2875
        %v2886 = vpack.c.bf16 %v2878, %v2877
        %2887 = vmatprep.subr.bf16.mxu0 0
        %2888 = vmatpush1.bf16.msra.mxu0 %v424
        %2889 = vmatprep.subr.bf16.mxu0 0
        %2890 = vmatpush1.bf16.msra.mxu0 %v425
        %2891 = vmatprep.subr.bf16.mxu0 0
        %2892 = vmatpush1.bf16.msra.mxu0 %v426
        %2893 = vmatprep.subr.bf16.mxu0 0
        %2894 = vmatpush1.bf16.msra.mxu0 %v427
        %2895 = vmatprep.subr.bf16.mxu0 0
        %2896 = vmatpush1.bf16.msra.mxu0 %v428
        %2897 = vmatprep.subr.bf16.mxu0 0
        %2898 = vmatpush1.bf16.msra.mxu0 %v429
        %2899 = vmatprep.subr.bf16.mxu0 0
        %2900 = vmatpush1.bf16.msra.mxu0 %v430
        %2901 = vmatprep.subr.bf16.mxu0 0
        %2902 = vmatpush1.bf16.msra.mxu0 %v431
        %2903 = vmatprep.subr.bf16.mxu0 0
        %2904 = vmatpush1.bf16.msra.mxu0 0
        %2905 = vmatprep.subr.bf16.mxu0 0
        %2906 = vmatpush1.bf16.msra.mxu0 0
        %2907 = vmatprep.subr.bf16.mxu0 0
        %2908 = vmatpush1.bf16.msra.mxu0 0
        %2909 = vmatprep.subr.bf16.mxu0 0
        %2910 = vmatpush1.bf16.msra.mxu0 0
        %2911 = vmatprep.subr.bf16.mxu0 0
        %2912 = vmatpush1.bf16.msra.mxu0 0
        %2913 = vmatprep.subr.bf16.mxu0 0
        %2914 = vmatpush1.bf16.msra.mxu0 0
        %2915 = vmatprep.subr.bf16.mxu0 0
        %2916 = vmatpush1.bf16.msra.mxu0 0
        %2917 = vmatprep.subr.bf16.mxu0 0
        %2918 = vmatpush1.bf16.msra.mxu0 0
        %2919 = vmatprep.mubr.bf16.mxu0 0
        %2920 = vmatmul.mubr.bf16.gmra.mrb[0].mxu0 %v2879
        %v2921 = vpop.f32.mrb[0].mxu0
        %v2922 = vadd.f32 0.0, %v2921
        %v2923 = vpop.f32.mrb[0].mxu0
        %v2924 = vpop.f32.mrb[0].mxu0
        %v2925 = vadd.f32 0.0, %v2924
        %v2926 = vpop.f32.mrb[0].mxu0
        %2927 = vmatprep.mubr.bf16.mxu0 0
        %2928 = vmatmul.mubr.bf16.gmra.mrb[0].mxu0 %v2880
        %v2929 = vpop.f32.mrb[0].mxu0
        %v2930 = vadd.f32 0.0, %v2929
        %v2931 = vpop.f32.mrb[0].mxu0
        %v2932 = vpop.f32.mrb[0].mxu0
        %v2933 = vadd.f32 0.0, %v2932
        %v2934 = vpop.f32.mrb[0].mxu0
        %2935 = vmatprep.mubr.bf16.mxu0 0
        %2936 = vmatmul.mubr.bf16.gmra.mrb[0].mxu0 %v2881
        %v2937 = vpop.f32.mrb[0].mxu0
        %v2938 = vadd.f32 0.0, %v2937
        %v2939 = vpop.f32.mrb[0].mxu0
        %v2940 = vpop.f32.mrb[0].mxu0
        %v2941 = vadd.f32 0.0, %v2940
        %v2942 = vpop.f32.mrb[0].mxu0
        %2943 = vmatprep.mubr.bf16.mxu0 0
        %2944 = vmatmul.mubr.bf16.gmra.mrb[0].mxu0 %v2882
        %v2945 = vpop.f32.mrb[0].mxu0
        %v2946 = vadd.f32 0.0, %v2945
        %v2947 = vpop.f32.mrb[0].mxu0
        %v2948 = vpop.f32.mrb[0].mxu0
        %v2949 = vadd.f32 0.0, %v2948
        %v2950 = vpop.f32.mrb[0].mxu0
        %2951 = vmatprep.mubr.bf16.mxu0 0
        %2952 = vmatmul.mubr.bf16.gmra.mrb[0].mxu0 %v2883
        %v2953 = vpop.f32.mrb[0].mxu0
        %v2954 = vadd.f32 0.0, %v2953
        %v2955 = vpop.f32.mrb[0].mxu0
        %v2956 = vpop.f32.mrb[0].mxu0
        %v2957 = vadd.f32 0.0, %v2956
        %v2958 = vpop.f32.mrb[0].mxu0
        %2959 = vmatprep.mubr.bf16.mxu0 0
        %2960 = vmatmul.mubr.bf16.gmra.mrb[0].mxu0 %v2884
        %v2961 = vpop.f32.mrb[0].mxu0
        %v2962 = vadd.f32 0.0, %v2961
        %v2963 = vpop.f32.mrb[0].mxu0
        %v2964 = vpop.f32.mrb[0].mxu0
        %v2965 = vadd.f32 0.0, %v2964
        %v2966 = vpop.f32.mrb[0].mxu0
        %2967 = vmatprep.mubr.bf16.mxu0 0
        %2968 = vmatmul.mubr.bf16.gmra.mrb[0].mxu0 %v2885
        %v2969 = vpop.f32.mrb[0].mxu0
        %v2970 = vadd.f32 0.0, %v2969
        %v2971 = vpop.f32.mrb[0].mxu0
        %v2972 = vpop.f32.mrb[0].mxu0
        %v2973 = vadd.f32 0.0, %v2972
        %v2974 = vpop.f32.mrb[0].mxu0
        %2975 = vmatprep.mubr.bf16.mxu0 0
        %2976 = vmatmul.mubr.bf16.gmra.mrb[0].mxu0 %v2886
        %v2977 = vpop.f32.mrb[0].mxu0
        %v2978 = vadd.f32 0.0, %v2977
        %v2979 = vpop.f32.mrb[0].mxu0
        %v2980 = vpop.f32.mrb[0].mxu0
        %v2981 = vadd.f32 0.0, %v2980
        %v2982 = vpop.f32.mrb[0].mxu0
        %2983 = vdwg.mxu0
        %v2984 = vpack.c.bf16 %v2925, %v2922
        %v2985 = vpack.c.bf16 %v2933, %v2930
        %v2986 = vpack.c.bf16 %v2941, %v2938
        %v2987 = vpack.c.bf16 %v2949, %v2946
        %v2988 = vpack.c.bf16 %v2957, %v2954
        %v2989 = vpack.c.bf16 %v2965, %v2962
        %v2990 = vpack.c.bf16 %v2973, %v2970
        %v2991 = vpack.c.bf16 %v2981, %v2978
        %v2992 = vld [vmem:[%s2 + $0x38] sm:$0xf]
        %v2993 = vld [vmem:[%s2 + $0x3c] sm:$0xf]
        %v2996 = vunpack.c.l.b16 %v2992
        %v2997 = vunpack.c.l.b16 %v2993
        %v2998 = vpack.c.b16 %v2997, %v2996
        %v3001 = vsel %vm764, %v2984, 0
        %v3004 = vsel %vm764, %v2985, 0
        %v3007 = vsel %vm764, %v2986, 0
        %v3010 = vsel %vm764, %v2987, 0
        %v3013 = vsel %vm764, %v2988, 0
        %v3016 = vsel %vm764, %v2989, 0
        %v3019 = vsel %vm764, %v2990, 0
        %v3022 = vsel %vm764, %v2991, 0
        %3024 = vmatprep.subr.bf16.mxu0 0
        %3025 = vmatpush1.bf16.msra.mxu0 %v2998
        %3026 = vmatprep.subr.bf16.mxu0 0
        %3027 = vmatpush1.bf16.msra.mxu0 0
        %3028 = vmatprep.subr.bf16.mxu0 0
        %3029 = vmatpush1.bf16.msra.mxu0 0
        %3030 = vmatprep.subr.bf16.mxu0 0
        %3031 = vmatpush1.bf16.msra.mxu0 0
        %3032 = vmatprep.subr.bf16.mxu0 0
        %3033 = vmatpush1.bf16.msra.mxu0 0
        %3034 = vmatprep.subr.bf16.mxu0 0
        %3035 = vmatpush1.bf16.msra.mxu0 0
        %3036 = vmatprep.subr.bf16.mxu0 0
        %3037 = vmatpush1.bf16.msra.mxu0 0
        %3038 = vmatprep.subr.bf16.mxu0 0
        %3039 = vmatpush1.bf16.msra.mxu0 0
        %3040 = vmatprep.subr.bf16.mxu0 0
        %3041 = vmatpush1.bf16.msra.mxu0 0
        %3042 = vmatprep.subr.bf16.mxu0 0
        %3043 = vmatpush1.bf16.msra.mxu0 0
        %3044 = vmatprep.subr.bf16.mxu0 0
        %3045 = vmatpush1.bf16.msra.mxu0 0
        %3046 = vmatprep.subr.bf16.mxu0 0
        %3047 = vmatpush1.bf16.msra.mxu0 0
        %3048 = vmatprep.subr.bf16.mxu0 0
        %3049 = vmatpush1.bf16.msra.mxu0 0
        %3050 = vmatprep.subr.bf16.mxu0 0
        %3051 = vmatpush1.bf16.msra.mxu0 0
        %3052 = vmatprep.subr.bf16.mxu0 0
        %3053 = vmatpush1.bf16.msra.mxu0 0
        %3054 = vmatprep.subr.bf16.mxu0 0
        %3055 = vmatpush1.bf16.msra.mxu0 0
        %3056 = vmatprep.mubr.bf16.mxu0 0
        %3057 = vmatmul.mubr.bf16.gmra.mrb[0].mxu0 %v3001
        %v3058 = vpop.f32.mrb[0].mxu0
        %v3059 = vadd.f32 0.0, %v3058
        %v3060 = vpop.f32.mrb[0].mxu0
        %v3061 = vpop.f32.mrb[0].mxu0
        %v3062 = vadd.f32 0.0, %v3061
        %v3063 = vpop.f32.mrb[0].mxu0
        %3064 = vmatprep.mubr.bf16.mxu0 0
        %3065 = vmatmul.mubr.bf16.gmra.mrb[0].mxu0 %v3004
        %v3066 = vpop.f32.mrb[0].mxu0
        %v3067 = vadd.f32 0.0, %v3066
        %v3068 = vpop.f32.mrb[0].mxu0
        %v3069 = vpop.f32.mrb[0].mxu0
        %v3070 = vadd.f32 0.0, %v3069
        %v3071 = vpop.f32.mrb[0].mxu0
        %3072 = vmatprep.mubr.bf16.mxu0 0
        %3073 = vmatmul.mubr.bf16.gmra.mrb[0].mxu0 %v3007
        %v3074 = vpop.f32.mrb[0].mxu0
        %v3075 = vadd.f32 0.0, %v3074
        %v3076 = vpop.f32.mrb[0].mxu0
        %v3077 = vpop.f32.mrb[0].mxu0
        %v3078 = vadd.f32 0.0, %v3077
        %v3079 = vpop.f32.mrb[0].mxu0
        %3080 = vmatprep.mubr.bf16.mxu0 0
        %3081 = vmatmul.mubr.bf16.gmra.mrb[0].mxu0 %v3010
        %v3082 = vpop.f32.mrb[0].mxu0
        %v3083 = vadd.f32 0.0, %v3082
        %v3084 = vpop.f32.mrb[0].mxu0
        %v3085 = vpop.f32.mrb[0].mxu0
        %v3086 = vadd.f32 0.0, %v3085
        %v3087 = vpop.f32.mrb[0].mxu0
        %3088 = vmatprep.mubr.bf16.mxu0 0
        %3089 = vmatmul.mubr.bf16.gmra.mrb[0].mxu0 %v3013
        %v3090 = vpop.f32.mrb[0].mxu0
        %v3091 = vadd.f32 0.0, %v3090
        %v3092 = vpop.f32.mrb[0].mxu0
        %v3093 = vpop.f32.mrb[0].mxu0
        %v3094 = vadd.f32 0.0, %v3093
        %v3095 = vpop.f32.mrb[0].mxu0
        %3096 = vmatprep.mubr.bf16.mxu0 0
        %3097 = vmatmul.mubr.bf16.gmra.mrb[0].mxu0 %v3016
        %v3098 = vpop.f32.mrb[0].mxu0
        %v3099 = vadd.f32 0.0, %v3098
        %v3100 = vpop.f32.mrb[0].mxu0
        %v3101 = vpop.f32.mrb[0].mxu0
        %v3102 = vadd.f32 0.0, %v3101
        %v3103 = vpop.f32.mrb[0].mxu0
        %3104 = vmatprep.mubr.bf16.mxu0 0
        %3105 = vmatmul.mubr.bf16.gmra.mrb[0].mxu0 %v3019
        %v3106 = vpop.f32.mrb[0].mxu0
        %v3107 = vadd.f32 0.0, %v3106
        %v3108 = vpop.f32.mrb[0].mxu0
        %v3109 = vpop.f32.mrb[0].mxu0
        %v3110 = vadd.f32 0.0, %v3109
        %v3111 = vpop.f32.mrb[0].mxu0
        %3112 = vmatprep.mubr.bf16.mxu0 0
        %3113 = vmatmul.mubr.bf16.gmra.mrb[0].mxu0 %v3022
        %v3114 = vpop.f32.mrb[0].mxu0
        %v3115 = vadd.f32 0.0, %v3114
        %v3116 = vpop.f32.mrb[0].mxu0
        %v3117 = vpop.f32.mrb[0].mxu0
        %v3118 = vadd.f32 0.0, %v3117
        %v3119 = vpop.f32.mrb[0].mxu0
        %3120 = vdwg.mxu0
        %v3121 = vadd.f32 %v2767, %v3059
        %v3122 = vadd.f32 %v2768, %v3062
        %v3123 = vadd.f32 %v2769, %v3067
        %v3124 = vadd.f32 %v2770, %v3070
        %v3125 = vadd.f32 %v2771, %v3075
        %v3126 = vadd.f32 %v2772, %v3078
        %v3127 = vadd.f32 %v2773, %v3083
        %v3128 = vadd.f32 %v2774, %v3086
        %v3129 = vadd.f32 %v2775, %v3091
        %v3130 = vadd.f32 %v2776, %v3094
        %v3131 = vadd.f32 %v2777, %v3099
        %v3132 = vadd.f32 %v2778, %v3102
        %v3133 = vadd.f32 %v2779, %v3107
        %v3134 = vadd.f32 %v2780, %v3110
        %v3135 = vadd.f32 %v2781, %v3115
        %v3136 = vadd.f32 %v2782, %v3118
        %v3137 = vld [vmem:[%s3] sm:$0x1]
        %v3139 = vlaneseq
        %v3140 = vshrl.u32 %v3139, 7
        %v3141 = vsub.s32 0, %v3140
        %v3142 = vrot.slane %v3137, %v3141
        %v3144 = vadd.f32 %v3121, %v3142
        %v3145 = vadd.f32 %v3122, %v3142
        %v3146 = vadd.f32 %v3123, %v3142
        %v3147 = vadd.f32 %v3124, %v3142
        %v3148 = vadd.f32 %v3125, %v3142
        %v3149 = vadd.f32 %v3126, %v3142
        %v3150 = vadd.f32 %v3127, %v3142
        %v3151 = vadd.f32 %v3128, %v3142
        %v3152 = vadd.f32 %v3129, %v3142
        %v3153 = vadd.f32 %v3130, %v3142
        %v3154 = vadd.f32 %v3131, %v3142
        %v3155 = vadd.f32 %v3132, %v3142
        %v3156 = vadd.f32 %v3133, %v3142
        %v3157 = vadd.f32 %v3134, %v3142
        %v3158 = vadd.f32 %v3135, %v3142
        %v3159 = vadd.f32 %v3136, %v3142
        %v3160 = vand.u32 2147483647, %v3144
        %vm3161 = vcmp.le.f32.partialorder %v3160, 0.7853982
        %vm3162 = vcmp.lt.s32.totalorder %v3144, 0
        %v3163 = vand.u32 %v3144, 2139095040
        %v3164 = vshrl.u32 %v3163, 23
        %v3165 = vsub.s32 %v3164, 127
        %v3166 = vand.u32 2147483647, %v3144
        %v3167 = vand.u32 %v3166, 8388607
        %v3168 = vor.u32 %v3167, 8388608
        %v3169 = vsub.s32 0, %v3168
        %v3170 = vadd.s32 %v3165, 1
        %vm3171 = vcmp.gt.s32.totalorder %v3170, 0
        %v3172 = vsel %vm3171, %v3170, 0
        %v3173 = vshrl.u32 %v3172, 5
        %v3174 = vand.u32 %v3172, 31
        %v3175 = vsub.s32 32, %v3174
        %v3176 = vshrl.u32 683565275, %v3175
        %v3177 = vshll.u32 683565275, %v3174
        %v3178 = vshrl.u32 2475754826, %v3175
        %v3179 = vor.u32 %v3177, %v3178
        %v3180 = vshll.u32 2475754826, %v3174
        %v3181 = vshrl.u32 2131351028, %v3175
        %v3182 = vor.u32 %v3180, %v3181
        %v3183 = vshll.u32 2131351028, %v3174
        %v3184 = vshrl.u32 2102212464, %v3175
        %v3185 = vor.u32 %v3183, %v3184
        %v3186 = vshll.u32 2102212464, %v3174
        %v3187 = vshrl.u32 920167782, %v3175
        %v3188 = vor.u32 %v3186, %v3187
        %v3189 = vshll.u32 920167782, %v3174
        %v3190 = vshrl.u32 1326507024, %v3175
        %v3191 = vor.u32 %v3189, %v3190
        %vm3192 = vcmp.lt.s32.totalorder %v3173, 1
        %vm3193 = vcmp.lt.s32.totalorder %v3173, 2
        %vm3194 = vcmp.lt.s32.totalorder %v3173, 3
        %vm3195 = vcmp.lt.s32.totalorder %v3173, 4
        %v3196 = vsel %vm3192, %v3176, %v3179
        %v3197 = vsel %vm3195, %v3185, 2102212464
        %v3198 = vsel %vm3194, %v3182, %v3197
        %v3199 = vsel %vm3193, %v3196, %v3198
        %v3200 = vsel %vm3192, %v3179, %v3182
        %v3201 = vsel %vm3195, %v3188, 920167782
        %v3202 = vsel %vm3194, %v3185, %v3201
        %v3203 = vsel %vm3193, %v3200, %v3202
        %v3204 = vsel %vm3192, %v3182, %v3185
        %v3205 = vsel %vm3195, %v3191, 1326507024
        %v3206 = vsel %vm3194, %v3188, %v3205
        %v3207 = vsel %vm3193, %v3204, %v3206
        %v3208 = vshll.u32 %v3168, 8
        %v3209 = vmul.u32.u64.compose %v3208, %v3207
        %v3210 = vextract.low.u32 %v3209
        %v3211 = vextract.high.u32 %v3209
        %v3212 = vmul.u32.u64.compose %v3208, %v3203
        %v3213 = vextract.low.u32 %v3212
        %v3214 = vextract.high.u32 %v3212
        %v3215 = vmul.u32 %v3208, %v3199
        %v3216 = vadd.s32 %v3211, %v3213
        %vm3217 = vc.u32 %v3211, %v3213
        %v3218 = vadd.s32 %v3214, 1
        %v3219 = vsel %vm3217, %v3218, %v3214
        %v3220 = vadd.s32 %v3215, %v3219
        %v3221 = vadd.s32 %v3220, 536870912
        %v3222 = vshrl.u32 %v3221, 30
        %v3223 = vshll.u32 %v3222, 30
        %v3224 = vsub.s32 %v3220, %v3223
        %vm3225 = vcmp.lt.s32.totalorder %v3224, 0
        %v3226 = vsub.s32 0, %v3224
        %v3227 = vsel %vm3225, %v3226, %v3224
        %v3228 = vclz %v3227
        %v3229 = vsub.s32 %v3228, 2
        %vm3230 = vcmp.gt.s32.totalorder 0, %v3229
        %v3231 = vsel %vm3230, 0, %v3229
        %v3232 = vsub.s32 32, %v3231
        %v3233 = vshll.u32 %v3224, %v3231
        %v3234 = vshrl.u32 %v3216, %v3232
        %v3235 = vor.u32 %v3233, %v3234
        %v3236 = vsub.s32 4294967266, %v3231
        %v3237 = vadd.s32 %v3236, 127
        %v3238 = vshll.u32 %v3237, 23
        %v3239 = vor.u32 4788187, %v3238
        %v3240 = vand.u32 2147483647, %v3239
        %v3242 = vcvt.s32.f32 %v3235
        %v3243 = vmul.f32 %v3242, %v3240
        %v3244 = vxor.u32 %v3243, 2147483648
        %v3245 = vsel %vm3162, %v3244, %v3243
        %v3246 = vsub.s32 4, %v3222
        %v3247 = vsel %vm3162, %v3246, %v3222
        %v3248 = vsel %vm3161, %v3144, %v3245
        %v3249 = vsel %vm3161, 0, %v3247
        %v3250 = vcosq.f32.pop %v3248
        %v3251 = vsinq.f32.pop %v3248
        %vm3252 = vweird.f32 %v3144
        %v3253 = vadd.s32 %v3249, 3
        %v3254 = vand.u32 %v3253, 3
        %vm3255 = vcmp.lt.s32.totalorder %v3254, 2
        %vm3256 = vcmp.eq.s32.totalorder %v3254, 0
        %v3257 = vxor.u32 %v3251, 2147483648
        %v3258 = vsel %vm3256, %v3250, %v3257
        %vm3259 = vcmp.eq.s32.totalorder %v3254, 2
        %v3260 = vxor.u32 %v3250, 2147483648
        %v3261 = vsel %vm3259, %v3260, %v3251
        %v3262 = vsel %vm3255, %v3258, %v3261
        %v3263 = vsel %vm3252, nan, %v3262
        %v3264 = vand.u32 2147483647, %v3145
        %vm3265 = vcmp.le.f32.partialorder %v3264, 0.7853982
        %vm3266 = vcmp.lt.s32.totalorder %v3145, 0
        %v3267 = vand.u32 %v3145, 2139095040
        %v3268 = vshrl.u32 %v3267, 23
        %v3269 = vsub.s32 %v3268, 127
        %v3270 = vand.u32 2147483647, %v3145
        %v3271 = vand.u32 %v3270, 8388607
        %v3272 = vor.u32 %v3271, 8388608
        %v3273 = vsub.s32 0, %v3272
        %v3274 = vadd.s32 %v3269, 1
        %vm3275 = vcmp.gt.s32.totalorder %v3274, 0
        %v3276 = vsel %vm3275, %v3274, 0
        %v3277 = vshrl.u32 %v3276, 5
        %v3278 = vand.u32 %v3276, 31
        %v3279 = vsub.s32 32, %v3278
        %v3280 = vshrl.u32 683565275, %v3279
        %v3281 = vshll.u32 683565275, %v3278
        %v3282 = vshrl.u32 2475754826, %v3279
        %v3283 = vor.u32 %v3281, %v3282
        %v3284 = vshll.u32 2475754826, %v3278
        %v3285 = vshrl.u32 2131351028, %v3279
        %v3286 = vor.u32 %v3284, %v3285
        %v3287 = vshll.u32 2131351028, %v3278
        %v3288 = vshrl.u32 2102212464, %v3279
        %v3289 = vor.u32 %v3287, %v3288
        %v3290 = vshll.u32 2102212464, %v3278
        %v3291 = vshrl.u32 920167782, %v3279
        %v3292 = vor.u32 %v3290, %v3291
        %v3293 = vshll.u32 920167782, %v3278
        %v3294 = vshrl.u32 1326507024, %v3279
        %v3295 = vor.u32 %v3293, %v3294
        %vm3296 = vcmp.lt.s32.totalorder %v3277, 1
        %vm3297 = vcmp.lt.s32.totalorder %v3277, 2
        %vm3298 = vcmp.lt.s32.totalorder %v3277, 3
        %vm3299 = vcmp.lt.s32.totalorder %v3277, 4
        %v3300 = vsel %vm3296, %v3280, %v3283
        %v3301 = vsel %vm3299, %v3289, 2102212464
        %v3302 = vsel %vm3298, %v3286, %v3301
        %v3303 = vsel %vm3297, %v3300, %v3302
        %v3304 = vsel %vm3296, %v3283, %v3286
        %v3305 = vsel %vm3299, %v3292, 920167782
        %v3306 = vsel %vm3298, %v3289, %v3305
        %v3307 = vsel %vm3297, %v3304, %v3306
        %v3308 = vsel %vm3296, %v3286, %v3289
        %v3309 = vsel %vm3299, %v3295, 1326507024
        %v3310 = vsel %vm3298, %v3292, %v3309
        %v3311 = vsel %vm3297, %v3308, %v3310
        %v3312 = vshll.u32 %v3272, 8
        %v3313 = vmul.u32.u64.compose %v3312, %v3311
        %v3314 = vextract.low.u32 %v3313
        %v3315 = vextract.high.u32 %v3313
        %v3316 = vmul.u32.u64.compose %v3312, %v3307
        %v3317 = vextract.low.u32 %v3316
        %v3318 = vextract.high.u32 %v3316
        %v3319 = vmul.u32 %v3312, %v3303
        %v3320 = vadd.s32 %v3315, %v3317
        %vm3321 = vc.u32 %v3315, %v3317
        %v3322 = vadd.s32 %v3318, 1
        %v3323 = vsel %vm3321, %v3322, %v3318
        %v3324 = vadd.s32 %v3319, %v3323
        %v3325 = vadd.s32 %v3324, 536870912
        %v3326 = vshrl.u32 %v3325, 30
        %v3327 = vshll.u32 %v3326, 30
        %v3328 = vsub.s32 %v3324, %v3327
        %vm3329 = vcmp.lt.s32.totalorder %v3328, 0
        %v3330 = vsub.s32 0, %v3328
        %v3331 = vsel %vm3329, %v3330, %v3328
        %v3332 = vclz %v3331
        %v3333 = vsub.s32 %v3332, 2
        %vm3334 = vcmp.gt.s32.totalorder 0, %v3333
        %v3335 = vsel %vm3334, 0, %v3333
        %v3336 = vsub.s32 32, %v3335
        %v3337 = vshll.u32 %v3328, %v3335
        %v3338 = vshrl.u32 %v3320, %v3336
        %v3339 = vor.u32 %v3337, %v3338
        %v3340 = vsub.s32 4294967266, %v3335
        %v3341 = vadd.s32 %v3340, 127
        %v3342 = vshll.u32 %v3341, 23
        %v3343 = vor.u32 4788187, %v3342
        %v3344 = vand.u32 2147483647, %v3343
        %v3346 = vcvt.s32.f32 %v3339
        %v3347 = vmul.f32 %v3346, %v3344
        %v3348 = vxor.u32 %v3347, 2147483648
        %v3349 = vsel %vm3266, %v3348, %v3347
        %v3350 = vsub.s32 4, %v3326
        %v3351 = vsel %vm3266, %v3350, %v3326
        %v3352 = vsel %vm3265, %v3145, %v3349
        %v3353 = vsel %vm3265, 0, %v3351
        %v3354 = vcosq.f32.pop %v3352
        %v3355 = vsinq.f32.pop %v3352
        %vm3356 = vweird.f32 %v3145
        %v3357 = vadd.s32 %v3353, 3
        %v3358 = vand.u32 %v3357, 3
        %vm3359 = vcmp.lt.s32.totalorder %v3358, 2
        %vm3360 = vcmp.eq.s32.totalorder %v3358, 0
        %v3361 = vxor.u32 %v3355, 2147483648
        %v3362 = vsel %vm3360, %v3354, %v3361
        %vm3363 = vcmp.eq.s32.totalorder %v3358, 2
        %v3364 = vxor.u32 %v3354, 2147483648
        %v3365 = vsel %vm3363, %v3364, %v3355
        %v3366 = vsel %vm3359, %v3362, %v3365
        %v3367 = vsel %vm3356, nan, %v3366
        %v3368 = vand.u32 2147483647, %v3146
        %vm3369 = vcmp.le.f32.partialorder %v3368, 0.7853982
        %vm3370 = vcmp.lt.s32.totalorder %v3146, 0
        %v3371 = vand.u32 %v3146, 2139095040
        %v3372 = vshrl.u32 %v3371, 23
        %v3373 = vsub.s32 %v3372, 127
        %v3374 = vand.u32 2147483647, %v3146
        %v3375 = vand.u32 %v3374, 8388607
        %v3376 = vor.u32 %v3375, 8388608
        %v3377 = vsub.s32 0, %v3376
        %v3378 = vadd.s32 %v3373, 1
        %vm3379 = vcmp.gt.s32.totalorder %v3378, 0
        %v3380 = vsel %vm3379, %v3378, 0
        %v3381 = vshrl.u32 %v3380, 5
        %v3382 = vand.u32 %v3380, 31
        %v3383 = vsub.s32 32, %v3382
        %v3384 = vshrl.u32 683565275, %v3383
        %v3385 = vshll.u32 683565275, %v3382
        %v3386 = vshrl.u32 2475754826, %v3383
        %v3387 = vor.u32 %v3385, %v3386
        %v3388 = vshll.u32 2475754826, %v3382
        %v3389 = vshrl.u32 2131351028, %v3383
        %v3390 = vor.u32 %v3388, %v3389
        %v3391 = vshll.u32 2131351028, %v3382
        %v3392 = vshrl.u32 2102212464, %v3383
        %v3393 = vor.u32 %v3391, %v3392
        %v3394 = vshll.u32 2102212464, %v3382
        %v3395 = vshrl.u32 920167782, %v3383
        %v3396 = vor.u32 %v3394, %v3395
        %v3397 = vshll.u32 920167782, %v3382
        %v3398 = vshrl.u32 1326507024, %v3383
        %v3399 = vor.u32 %v3397, %v3398
        %vm3400 = vcmp.lt.s32.totalorder %v3381, 1
        %vm3401 = vcmp.lt.s32.totalorder %v3381, 2
        %vm3402 = vcmp.lt.s32.totalorder %v3381, 3
        %vm3403 = vcmp.lt.s32.totalorder %v3381, 4
        %v3404 = vsel %vm3400, %v3384, %v3387
        %v3405 = vsel %vm3403, %v3393, 2102212464
        %v3406 = vsel %vm3402, %v3390, %v3405
        %v3407 = vsel %vm3401, %v3404, %v3406
        %v3408 = vsel %vm3400, %v3387, %v3390
        %v3409 = vsel %vm3403, %v3396, 920167782
        %v3410 = vsel %vm3402, %v3393, %v3409
        %v3411 = vsel %vm3401, %v3408, %v3410
        %v3412 = vsel %vm3400, %v3390, %v3393
        %v3413 = vsel %vm3403, %v3399, 1326507024
        %v3414 = vsel %vm3402, %v3396, %v3413
        %v3415 = vsel %vm3401, %v3412, %v3414
        %v3416 = vshll.u32 %v3376, 8
        %v3417 = vmul.u32.u64.compose %v3416, %v3415
        %v3418 = vextract.low.u32 %v3417
        %v3419 = vextract.high.u32 %v3417
        %v3420 = vmul.u32.u64.compose %v3416, %v3411
        %v3421 = vextract.low.u32 %v3420
        %v3422 = vextract.high.u32 %v3420
        %v3423 = vmul.u32 %v3416, %v3407
        %v3424 = vadd.s32 %v3419, %v3421
        %vm3425 = vc.u32 %v3419, %v3421
        %v3426 = vadd.s32 %v3422, 1
        %v3427 = vsel %vm3425, %v3426, %v3422
        %v3428 = vadd.s32 %v3423, %v3427
        %v3429 = vadd.s32 %v3428, 536870912
        %v3430 = vshrl.u32 %v3429, 30
        %v3431 = vshll.u32 %v3430, 30
        %v3432 = vsub.s32 %v3428, %v3431
        %vm3433 = vcmp.lt.s32.totalorder %v3432, 0
        %v3434 = vsub.s32 0, %v3432
        %v3435 = vsel %vm3433, %v3434, %v3432
        %v3436 = vclz %v3435
        %v3437 = vsub.s32 %v3436, 2
        %vm3438 = vcmp.gt.s32.totalorder 0, %v3437
        %v3439 = vsel %vm3438, 0, %v3437
        %v3440 = vsub.s32 32, %v3439
        %v3441 = vshll.u32 %v3432, %v3439
        %v3442 = vshrl.u32 %v3424, %v3440
        %v3443 = vor.u32 %v3441, %v3442
        %v3444 = vsub.s32 4294967266, %v3439
        %v3445 = vadd.s32 %v3444, 127
        %v3446 = vshll.u32 %v3445, 23
        %v3447 = vor.u32 4788187, %v3446
        %v3448 = vand.u32 2147483647, %v3447
        %v3450 = vcvt.s32.f32 %v3443
        %v3451 = vmul.f32 %v3450, %v3448
        %v3452 = vxor.u32 %v3451, 2147483648
        %v3453 = vsel %vm3370, %v3452, %v3451
        %v3454 = vsub.s32 4, %v3430
        %v3455 = vsel %vm3370, %v3454, %v3430
        %v3456 = vsel %vm3369, %v3146, %v3453
        %v3457 = vsel %vm3369, 0, %v3455
        %v3458 = vcosq.f32.pop %v3456
        %v3459 = vsinq.f32.pop %v3456
        %vm3460 = vweird.f32 %v3146
        %v3461 = vadd.s32 %v3457, 3
        %v3462 = vand.u32 %v3461, 3
        %vm3463 = vcmp.lt.s32.totalorder %v3462, 2
        %vm3464 = vcmp.eq.s32.totalorder %v3462, 0
        %v3465 = vxor.u32 %v3459, 2147483648
        %v3466 = vsel %vm3464, %v3458, %v3465
        %vm3467 = vcmp.eq.s32.totalorder %v3462, 2
        %v3468 = vxor.u32 %v3458, 2147483648
        %v3469 = vsel %vm3467, %v3468, %v3459
        %v3470 = vsel %vm3463, %v3466, %v3469
        %v3471 = vsel %vm3460, nan, %v3470
        %v3472 = vand.u32 2147483647, %v3147
        %vm3473 = vcmp.le.f32.partialorder %v3472, 0.7853982
        %vm3474 = vcmp.lt.s32.totalorder %v3147, 0
        %v3475 = vand.u32 %v3147, 2139095040
        %v3476 = vshrl.u32 %v3475, 23
        %v3477 = vsub.s32 %v3476, 127
        %v3478 = vand.u32 2147483647, %v3147
        %v3479 = vand.u32 %v3478, 8388607
        %v3480 = vor.u32 %v3479, 8388608
        %v3481 = vsub.s32 0, %v3480
        %v3482 = vadd.s32 %v3477, 1
        %vm3483 = vcmp.gt.s32.totalorder %v3482, 0
        %v3484 = vsel %vm3483, %v3482, 0
        %v3485 = vshrl.u32 %v3484, 5
        %v3486 = vand.u32 %v3484, 31
        %v3487 = vsub.s32 32, %v3486
        %v3488 = vshrl.u32 683565275, %v3487
        %v3489 = vshll.u32 683565275, %v3486
        %v3490 = vshrl.u32 2475754826, %v3487
        %v3491 = vor.u32 %v3489, %v3490
        %v3492 = vshll.u32 2475754826, %v3486
        %v3493 = vshrl.u32 2131351028, %v3487
        %v3494 = vor.u32 %v3492, %v3493
        %v3495 = vshll.u32 2131351028, %v3486
        %v3496 = vshrl.u32 2102212464, %v3487
        %v3497 = vor.u32 %v3495, %v3496
        %v3498 = vshll.u32 2102212464, %v3486
        %v3499 = vshrl.u32 920167782, %v3487
        %v3500 = vor.u32 %v3498, %v3499
        %v3501 = vshll.u32 920167782, %v3486
        %v3502 = vshrl.u32 1326507024, %v3487
        %v3503 = vor.u32 %v3501, %v3502
        %vm3504 = vcmp.lt.s32.totalorder %v3485, 1
        %vm3505 = vcmp.lt.s32.totalorder %v3485, 2
        %vm3506 = vcmp.lt.s32.totalorder %v3485, 3
        %vm3507 = vcmp.lt.s32.totalorder %v3485, 4
        %v3508 = vsel %vm3504, %v3488, %v3491
        %v3509 = vsel %vm3507, %v3497, 2102212464
        %v3510 = vsel %vm3506, %v3494, %v3509
        %v3511 = vsel %vm3505, %v3508, %v3510
        %v3512 = vsel %vm3504, %v3491, %v3494
        %v3513 = vsel %vm3507, %v3500, 920167782
        %v3514 = vsel %vm3506, %v3497, %v3513
        %v3515 = vsel %vm3505, %v3512, %v3514
        %v3516 = vsel %vm3504, %v3494, %v3497
        %v3517 = vsel %vm3507, %v3503, 1326507024
        %v3518 = vsel %vm3506, %v3500, %v3517
        %v3519 = vsel %vm3505, %v3516, %v3518
        %v3520 = vshll.u32 %v3480, 8
        %v3521 = vmul.u32.u64.compose %v3520, %v3519
        %v3522 = vextract.low.u32 %v3521
        %v3523 = vextract.high.u32 %v3521
        %v3524 = vmul.u32.u64.compose %v3520, %v3515
        %v3525 = vextract.low.u32 %v3524
        %v3526 = vextract.high.u32 %v3524
        %v3527 = vmul.u32 %v3520, %v3511
        %v3528 = vadd.s32 %v3523, %v3525
        %vm3529 = vc.u32 %v3523, %v3525
        %v3530 = vadd.s32 %v3526, 1
        %v3531 = vsel %vm3529, %v3530, %v3526
        %v3532 = vadd.s32 %v3527, %v3531
        %v3533 = vadd.s32 %v3532, 536870912
        %v3534 = vshrl.u32 %v3533, 30
        %v3535 = vshll.u32 %v3534, 30
        %v3536 = vsub.s32 %v3532, %v3535
        %vm3537 = vcmp.lt.s32.totalorder %v3536, 0
        %v3538 = vsub.s32 0, %v3536
        %v3539 = vsel %vm3537, %v3538, %v3536
        %v3540 = vclz %v3539
        %v3541 = vsub.s32 %v3540, 2
        %vm3542 = vcmp.gt.s32.totalorder 0, %v3541
        %v3543 = vsel %vm3542, 0, %v3541
        %v3544 = vsub.s32 32, %v3543
        %v3545 = vshll.u32 %v3536, %v3543
        %v3546 = vshrl.u32 %v3528, %v3544
        %v3547 = vor.u32 %v3545, %v3546
        %v3548 = vsub.s32 4294967266, %v3543
        %v3549 = vadd.s32 %v3548, 127
        %v3550 = vshll.u32 %v3549, 23
        %v3551 = vor.u32 4788187, %v3550
        %v3552 = vand.u32 2147483647, %v3551
        %v3554 = vcvt.s32.f32 %v3547
        %v3555 = vmul.f32 %v3554, %v3552
        %v3556 = vxor.u32 %v3555, 2147483648
        %v3557 = vsel %vm3474, %v3556, %v3555
        %v3558 = vsub.s32 4, %v3534
        %v3559 = vsel %vm3474, %v3558, %v3534
        %v3560 = vsel %vm3473, %v3147, %v3557
        %v3561 = vsel %vm3473, 0, %v3559
        %v3562 = vcosq.f32.pop %v3560
        %v3563 = vsinq.f32.pop %v3560
        %vm3564 = vweird.f32 %v3147
        %v3565 = vadd.s32 %v3561, 3
        %v3566 = vand.u32 %v3565, 3
        %vm3567 = vcmp.lt.s32.totalorder %v3566, 2
        %vm3568 = vcmp.eq.s32.totalorder %v3566, 0
        %v3569 = vxor.u32 %v3563, 2147483648
        %v3570 = vsel %vm3568, %v3562, %v3569
        %vm3571 = vcmp.eq.s32.totalorder %v3566, 2
        %v3572 = vxor.u32 %v3562, 2147483648
        %v3573 = vsel %vm3571, %v3572, %v3563
        %v3574 = vsel %vm3567, %v3570, %v3573
        %v3575 = vsel %vm3564, nan, %v3574
        %v3576 = vand.u32 2147483647, %v3148
        %vm3577 = vcmp.le.f32.partialorder %v3576, 0.7853982
        %vm3578 = vcmp.lt.s32.totalorder %v3148, 0
        %v3579 = vand.u32 %v3148, 2139095040
        %v3580 = vshrl.u32 %v3579, 23
        %v3581 = vsub.s32 %v3580, 127
        %v3582 = vand.u32 2147483647, %v3148
        %v3583 = vand.u32 %v3582, 8388607
        %v3584 = vor.u32 %v3583, 8388608
        %v3585 = vsub.s32 0, %v3584
        %v3586 = vadd.s32 %v3581, 1
        %vm3587 = vcmp.gt.s32.totalorder %v3586, 0
        %v3588 = vsel %vm3587, %v3586, 0
        %v3589 = vshrl.u32 %v3588, 5
        %v3590 = vand.u32 %v3588, 31
        %v3591 = vsub.s32 32, %v3590
        %v3592 = vshrl.u32 683565275, %v3591
        %v3593 = vshll.u32 683565275, %v3590
        %v3594 = vshrl.u32 2475754826, %v3591
        %v3595 = vor.u32 %v3593, %v3594
        %v3596 = vshll.u32 2475754826, %v3590
        %v3597 = vshrl.u32 2131351028, %v3591
        %v3598 = vor.u32 %v3596, %v3597
        %v3599 = vshll.u32 2131351028, %v3590
        %v3600 = vshrl.u32 2102212464, %v3591
        %v3601 = vor.u32 %v3599, %v3600
        %v3602 = vshll.u32 2102212464, %v3590
        %v3603 = vshrl.u32 920167782, %v3591
        %v3604 = vor.u32 %v3602, %v3603
        %v3605 = vshll.u32 920167782, %v3590
        %v3606 = vshrl.u32 1326507024, %v3591
        %v3607 = vor.u32 %v3605, %v3606
        %vm3608 = vcmp.lt.s32.totalorder %v3589, 1
        %vm3609 = vcmp.lt.s32.totalorder %v3589, 2
        %vm3610 = vcmp.lt.s32.totalorder %v3589, 3
        %vm3611 = vcmp.lt.s32.totalorder %v3589, 4
        %v3612 = vsel %vm3608, %v3592, %v3595
        %v3613 = vsel %vm3611, %v3601, 2102212464
        %v3614 = vsel %vm3610, %v3598, %v3613
        %v3615 = vsel %vm3609, %v3612, %v3614
        %v3616 = vsel %vm3608, %v3595, %v3598
        %v3617 = vsel %vm3611, %v3604, 920167782
        %v3618 = vsel %vm3610, %v3601, %v3617
        %v3619 = vsel %vm3609, %v3616, %v3618
        %v3620 = vsel %vm3608, %v3598, %v3601
        %v3621 = vsel %vm3611, %v3607, 1326507024
        %v3622 = vsel %vm3610, %v3604, %v3621
        %v3623 = vsel %vm3609, %v3620, %v3622
        %v3624 = vshll.u32 %v3584, 8
        %v3625 = vmul.u32.u64.compose %v3624, %v3623
        %v3626 = vextract.low.u32 %v3625
        %v3627 = vextract.high.u32 %v3625
        %v3628 = vmul.u32.u64.compose %v3624, %v3619
        %v3629 = vextract.low.u32 %v3628
        %v3630 = vextract.high.u32 %v3628
        %v3631 = vmul.u32 %v3624, %v3615
        %v3632 = vadd.s32 %v3627, %v3629
        %vm3633 = vc.u32 %v3627, %v3629
        %v3634 = vadd.s32 %v3630, 1
        %v3635 = vsel %vm3633, %v3634, %v3630
        %v3636 = vadd.s32 %v3631, %v3635
        %v3637 = vadd.s32 %v3636, 536870912
        %v3638 = vshrl.u32 %v3637, 30
        %v3639 = vshll.u32 %v3638, 30
        %v3640 = vsub.s32 %v3636, %v3639
        %vm3641 = vcmp.lt.s32.totalorder %v3640, 0
        %v3642 = vsub.s32 0, %v3640
        %v3643 = vsel %vm3641, %v3642, %v3640
        %v3644 = vclz %v3643
        %v3645 = vsub.s32 %v3644, 2
        %vm3646 = vcmp.gt.s32.totalorder 0, %v3645
        %v3647 = vsel %vm3646, 0, %v3645
        %v3648 = vsub.s32 32, %v3647
        %v3649 = vshll.u32 %v3640, %v3647
        %v3650 = vshrl.u32 %v3632, %v3648
        %v3651 = vor.u32 %v3649, %v3650
        %v3652 = vsub.s32 4294967266, %v3647
        %v3653 = vadd.s32 %v3652, 127
        %v3654 = vshll.u32 %v3653, 23
        %v3655 = vor.u32 4788187, %v3654
        %v3656 = vand.u32 2147483647, %v3655
        %v3658 = vcvt.s32.f32 %v3651
        %v3659 = vmul.f32 %v3658, %v3656
        %v3660 = vxor.u32 %v3659, 2147483648
        %v3661 = vsel %vm3578, %v3660, %v3659
        %v3662 = vsub.s32 4, %v3638
        %v3663 = vsel %vm3578, %v3662, %v3638
        %v3664 = vsel %vm3577, %v3148, %v3661
        %v3665 = vsel %vm3577, 0, %v3663
        %v3666 = vcosq.f32.pop %v3664
        %v3667 = vsinq.f32.pop %v3664
        %vm3668 = vweird.f32 %v3148
        %v3669 = vadd.s32 %v3665, 3
        %v3670 = vand.u32 %v3669, 3
        %vm3671 = vcmp.lt.s32.totalorder %v3670, 2
        %vm3672 = vcmp.eq.s32.totalorder %v3670, 0
        %v3673 = vxor.u32 %v3667, 2147483648
        %v3674 = vsel %vm3672, %v3666, %v3673
        %vm3675 = vcmp.eq.s32.totalorder %v3670, 2
        %v3676 = vxor.u32 %v3666, 2147483648
        %v3677 = vsel %vm3675, %v3676, %v3667
        %v3678 = vsel %vm3671, %v3674, %v3677
        %v3679 = vsel %vm3668, nan, %v3678
        %v3680 = vand.u32 2147483647, %v3149
        %vm3681 = vcmp.le.f32.partialorder %v3680, 0.7853982
        %vm3682 = vcmp.lt.s32.totalorder %v3149, 0
        %v3683 = vand.u32 %v3149, 2139095040
        %v3684 = vshrl.u32 %v3683, 23
        %v3685 = vsub.s32 %v3684, 127
        %v3686 = vand.u32 2147483647, %v3149
        %v3687 = vand.u32 %v3686, 8388607
        %v3688 = vor.u32 %v3687, 8388608
        %v3689 = vsub.s32 0, %v3688
        %v3690 = vadd.s32 %v3685, 1
        %vm3691 = vcmp.gt.s32.totalorder %v3690, 0
        %v3692 = vsel %vm3691, %v3690, 0
        %v3693 = vshrl.u32 %v3692, 5
        %v3694 = vand.u32 %v3692, 31
        %v3695 = vsub.s32 32, %v3694
        %v3696 = vshrl.u32 683565275, %v3695
        %v3697 = vshll.u32 683565275, %v3694
        %v3698 = vshrl.u32 2475754826, %v3695
        %v3699 = vor.u32 %v3697, %v3698
        %v3700 = vshll.u32 2475754826, %v3694
        %v3701 = vshrl.u32 2131351028, %v3695
        %v3702 = vor.u32 %v3700, %v3701
        %v3703 = vshll.u32 2131351028, %v3694
        %v3704 = vshrl.u32 2102212464, %v3695
        %v3705 = vor.u32 %v3703, %v3704
        %v3706 = vshll.u32 2102212464, %v3694
        %v3707 = vshrl.u32 920167782, %v3695
        %v3708 = vor.u32 %v3706, %v3707
        %v3709 = vshll.u32 920167782, %v3694
        %v3710 = vshrl.u32 1326507024, %v3695
        %v3711 = vor.u32 %v3709, %v3710
        %vm3712 = vcmp.lt.s32.totalorder %v3693, 1
        %vm3713 = vcmp.lt.s32.totalorder %v3693, 2
        %vm3714 = vcmp.lt.s32.totalorder %v3693, 3
        %vm3715 = vcmp.lt.s32.totalorder %v3693, 4
        %v3716 = vsel %vm3712, %v3696, %v3699
        %v3717 = vsel %vm3715, %v3705, 2102212464
        %v3718 = vsel %vm3714, %v3702, %v3717
        %v3719 = vsel %vm3713, %v3716, %v3718
        %v3720 = vsel %vm3712, %v3699, %v3702
        %v3721 = vsel %vm3715, %v3708, 920167782
        %v3722 = vsel %vm3714, %v3705, %v3721
        %v3723 = vsel %vm3713, %v3720, %v3722
        %v3724 = vsel %vm3712, %v3702, %v3705
        %v3725 = vsel %vm3715, %v3711, 1326507024
        %v3726 = vsel %vm3714, %v3708, %v3725
        %v3727 = vsel %vm3713, %v3724, %v3726
        %v3728 = vshll.u32 %v3688, 8
        %v3729 = vmul.u32.u64.compose %v3728, %v3727
        %v3730 = vextract.low.u32 %v3729
        %v3731 = vextract.high.u32 %v3729
        %v3732 = vmul.u32.u64.compose %v3728, %v3723
        %v3733 = vextract.low.u32 %v3732
        %v3734 = vextract.high.u32 %v3732
        %v3735 = vmul.u32 %v3728, %v3719
        %v3736 = vadd.s32 %v3731, %v3733
        %vm3737 = vc.u32 %v3731, %v3733
        %v3738 = vadd.s32 %v3734, 1
        %v3739 = vsel %vm3737, %v3738, %v3734
        %v3740 = vadd.s32 %v3735, %v3739
        %v3741 = vadd.s32 %v3740, 536870912
        %v3742 = vshrl.u32 %v3741, 30
        %v3743 = vshll.u32 %v3742, 30
        %v3744 = vsub.s32 %v3740, %v3743
        %vm3745 = vcmp.lt.s32.totalorder %v3744, 0
        %v3746 = vsub.s32 0, %v3744
        %v3747 = vsel %vm3745, %v3746, %v3744
        %v3748 = vclz %v3747
        %v3749 = vsub.s32 %v3748, 2
        %vm3750 = vcmp.gt.s32.totalorder 0, %v3749
        %v3751 = vsel %vm3750, 0, %v3749
        %v3752 = vsub.s32 32, %v3751
        %v3753 = vshll.u32 %v3744, %v3751
        %v3754 = vshrl.u32 %v3736, %v3752
        %v3755 = vor.u32 %v3753, %v3754
        %v3756 = vsub.s32 4294967266, %v3751
        %v3757 = vadd.s32 %v3756, 127
        %v3758 = vshll.u32 %v3757, 23
        %v3759 = vor.u32 4788187, %v3758
        %v3760 = vand.u32 2147483647, %v3759
        %v3762 = vcvt.s32.f32 %v3755
        %v3763 = vmul.f32 %v3762, %v3760
        %v3764 = vxor.u32 %v3763, 2147483648
        %v3765 = vsel %vm3682, %v3764, %v3763
        %v3766 = vsub.s32 4, %v3742
        %v3767 = vsel %vm3682, %v3766, %v3742
        %v3768 = vsel %vm3681, %v3149, %v3765
        %v3769 = vsel %vm3681, 0, %v3767
        %v3770 = vcosq.f32.pop %v3768
        %v3771 = vsinq.f32.pop %v3768
        %vm3772 = vweird.f32 %v3149
        %v3773 = vadd.s32 %v3769, 3
        %v3774 = vand.u32 %v3773, 3
        %vm3775 = vcmp.lt.s32.totalorder %v3774, 2
        %vm3776 = vcmp.eq.s32.totalorder %v3774, 0
        %v3777 = vxor.u32 %v3771, 2147483648
        %v3778 = vsel %vm3776, %v3770, %v3777
        %vm3779 = vcmp.eq.s32.totalorder %v3774, 2
        %v3780 = vxor.u32 %v3770, 2147483648
        %v3781 = vsel %vm3779, %v3780, %v3771
        %v3782 = vsel %vm3775, %v3778, %v3781
        %v3783 = vsel %vm3772, nan, %v3782
        %v3784 = vand.u32 2147483647, %v3150
        %vm3785 = vcmp.le.f32.partialorder %v3784, 0.7853982
        %vm3786 = vcmp.lt.s32.totalorder %v3150, 0
        %v3787 = vand.u32 %v3150, 2139095040
        %v3788 = vshrl.u32 %v3787, 23
        %v3789 = vsub.s32 %v3788, 127
        %v3790 = vand.u32 2147483647, %v3150
        %v3791 = vand.u32 %v3790, 8388607
        %v3792 = vor.u32 %v3791, 8388608
        %v3793 = vsub.s32 0, %v3792
        %v3794 = vadd.s32 %v3789, 1
        %vm3795 = vcmp.gt.s32.totalorder %v3794, 0
        %v3796 = vsel %vm3795, %v3794, 0
        %v3797 = vshrl.u32 %v3796, 5
        %v3798 = vand.u32 %v3796, 31
        %v3799 = vsub.s32 32, %v3798
        %v3800 = vshrl.u32 683565275, %v3799
        %v3801 = vshll.u32 683565275, %v3798
        %v3802 = vshrl.u32 2475754826, %v3799
        %v3803 = vor.u32 %v3801, %v3802
        %v3804 = vshll.u32 2475754826, %v3798
        %v3805 = vshrl.u32 2131351028, %v3799
        %v3806 = vor.u32 %v3804, %v3805
        %v3807 = vshll.u32 2131351028, %v3798
        %v3808 = vshrl.u32 2102212464, %v3799
        %v3809 = vor.u32 %v3807, %v3808
        %v3810 = vshll.u32 2102212464, %v3798
        %v3811 = vshrl.u32 920167782, %v3799
        %v3812 = vor.u32 %v3810, %v3811
        %v3813 = vshll.u32 920167782, %v3798
        %v3814 = vshrl.u32 1326507024, %v3799
        %v3815 = vor.u32 %v3813, %v3814
        %vm3816 = vcmp.lt.s32.totalorder %v3797, 1
        %vm3817 = vcmp.lt.s32.totalorder %v3797, 2
        %vm3818 = vcmp.lt.s32.totalorder %v3797, 3
        %vm3819 = vcmp.lt.s32.totalorder %v3797, 4
        %v3820 = vsel %vm3816, %v3800, %v3803
        %v3821 = vsel %vm3819, %v3809, 2102212464
        %v3822 = vsel %vm3818, %v3806, %v3821
        %v3823 = vsel %vm3817, %v3820, %v3822
        %v3824 = vsel %vm3816, %v3803, %v3806
        %v3825 = vsel %vm3819, %v3812, 920167782
        %v3826 = vsel %vm3818, %v3809, %v3825
        %v3827 = vsel %vm3817, %v3824, %v3826
        %v3828 = vsel %vm3816, %v3806, %v3809
        %v3829 = vsel %vm3819, %v3815, 1326507024
        %v3830 = vsel %vm3818, %v3812, %v3829
        %v3831 = vsel %vm3817, %v3828, %v3830
        %v3832 = vshll.u32 %v3792, 8
        %v3833 = vmul.u32.u64.compose %v3832, %v3831
        %v3834 = vextract.low.u32 %v3833
        %v3835 = vextract.high.u32 %v3833
        %v3836 = vmul.u32.u64.compose %v3832, %v3827
        %v3837 = vextract.low.u32 %v3836
        %v3838 = vextract.high.u32 %v3836
        %v3839 = vmul.u32 %v3832, %v3823
        %v3840 = vadd.s32 %v3835, %v3837
        %vm3841 = vc.u32 %v3835, %v3837
        %v3842 = vadd.s32 %v3838, 1
        %v3843 = vsel %vm3841, %v3842, %v3838
        %v3844 = vadd.s32 %v3839, %v3843
        %v3845 = vadd.s32 %v3844, 536870912
        %v3846 = vshrl.u32 %v3845, 30
        %v3847 = vshll.u32 %v3846, 30
        %v3848 = vsub.s32 %v3844, %v3847
        %vm3849 = vcmp.lt.s32.totalorder %v3848, 0
        %v3850 = vsub.s32 0, %v3848
        %v3851 = vsel %vm3849, %v3850, %v3848
        %v3852 = vclz %v3851
        %v3853 = vsub.s32 %v3852, 2
        %vm3854 = vcmp.gt.s32.totalorder 0, %v3853
        %v3855 = vsel %vm3854, 0, %v3853
        %v3856 = vsub.s32 32, %v3855
        %v3857 = vshll.u32 %v3848, %v3855
        %v3858 = vshrl.u32 %v3840, %v3856
        %v3859 = vor.u32 %v3857, %v3858
        %v3860 = vsub.s32 4294967266, %v3855
        %v3861 = vadd.s32 %v3860, 127
        %v3862 = vshll.u32 %v3861, 23
        %v3863 = vor.u32 4788187, %v3862
        %v3864 = vand.u32 2147483647, %v3863
        %v3866 = vcvt.s32.f32 %v3859
        %v3867 = vmul.f32 %v3866, %v3864
        %v3868 = vxor.u32 %v3867, 2147483648
        %v3869 = vsel %vm3786, %v3868, %v3867
        %v3870 = vsub.s32 4, %v3846
        %v3871 = vsel %vm3786, %v3870, %v3846
        %v3872 = vsel %vm3785, %v3150, %v3869
        %v3873 = vsel %vm3785, 0, %v3871
        %v3874 = vcosq.f32.pop %v3872
        %v3875 = vsinq.f32.pop %v3872
        %vm3876 = vweird.f32 %v3150
        %v3877 = vadd.s32 %v3873, 3
        %v3878 = vand.u32 %v3877, 3
        %vm3879 = vcmp.lt.s32.totalorder %v3878, 2
        %vm3880 = vcmp.eq.s32.totalorder %v3878, 0
        %v3881 = vxor.u32 %v3875, 2147483648
        %v3882 = vsel %vm3880, %v3874, %v3881
        %vm3883 = vcmp.eq.s32.totalorder %v3878, 2
        %v3884 = vxor.u32 %v3874, 2147483648
        %v3885 = vsel %vm3883, %v3884, %v3875
        %v3886 = vsel %vm3879, %v3882, %v3885
        %v3887 = vsel %vm3876, nan, %v3886
        %v3888 = vand.u32 2147483647, %v3151
        %vm3889 = vcmp.le.f32.partialorder %v3888, 0.7853982
        %vm3890 = vcmp.lt.s32.totalorder %v3151, 0
        %v3891 = vand.u32 %v3151, 2139095040
        %v3892 = vshrl.u32 %v3891, 23
        %v3893 = vsub.s32 %v3892, 127
        %v3894 = vand.u32 2147483647, %v3151
        %v3895 = vand.u32 %v3894, 8388607
        %v3896 = vor.u32 %v3895, 8388608
        %v3897 = vsub.s32 0, %v3896
        %v3898 = vadd.s32 %v3893, 1
        %vm3899 = vcmp.gt.s32.totalorder %v3898, 0
        %v3900 = vsel %vm3899, %v3898, 0
        %v3901 = vshrl.u32 %v3900, 5
        %v3902 = vand.u32 %v3900, 31
        %v3903 = vsub.s32 32, %v3902
        %v3904 = vshrl.u32 683565275, %v3903
        %v3905 = vshll.u32 683565275, %v3902
        %v3906 = vshrl.u32 2475754826, %v3903
        %v3907 = vor.u32 %v3905, %v3906
        %v3908 = vshll.u32 2475754826, %v3902
        %v3909 = vshrl.u32 2131351028, %v3903
        %v3910 = vor.u32 %v3908, %v3909
        %v3911 = vshll.u32 2131351028, %v3902
        %v3912 = vshrl.u32 2102212464, %v3903
        %v3913 = vor.u32 %v3911, %v3912
        %v3914 = vshll.u32 2102212464, %v3902
        %v3915 = vshrl.u32 920167782, %v3903
        %v3916 = vor.u32 %v3914, %v3915
        %v3917 = vshll.u32 920167782, %v3902
        %v3918 = vshrl.u32 1326507024, %v3903
        %v3919 = vor.u32 %v3917, %v3918
        %vm3920 = vcmp.lt.s32.totalorder %v3901, 1
        %vm3921 = vcmp.lt.s32.totalorder %v3901, 2
        %vm3922 = vcmp.lt.s32.totalorder %v3901, 3
        %vm3923 = vcmp.lt.s32.totalorder %v3901, 4
        %v3924 = vsel %vm3920, %v3904, %v3907
        %v3925 = vsel %vm3923, %v3913, 2102212464
        %v3926 = vsel %vm3922, %v3910, %v3925
        %v3927 = vsel %vm3921, %v3924, %v3926
        %v3928 = vsel %vm3920, %v3907, %v3910
        %v3929 = vsel %vm3923, %v3916, 920167782
        %v3930 = vsel %vm3922, %v3913, %v3929
        %v3931 = vsel %vm3921, %v3928, %v3930
        %v3932 = vsel %vm3920, %v3910, %v3913
        %v3933 = vsel %vm3923, %v3919, 1326507024
        %v3934 = vsel %vm3922, %v3916, %v3933
        %v3935 = vsel %vm3921, %v3932, %v3934
        %v3936 = vshll.u32 %v3896, 8
        %v3937 = vmul.u32.u64.compose %v3936, %v3935
        %v3938 = vextract.low.u32 %v3937
        %v3939 = vextract.high.u32 %v3937
        %v3940 = vmul.u32.u64.compose %v3936, %v3931
        %v3941 = vextract.low.u32 %v3940
        %v3942 = vextract.high.u32 %v3940
        %v3943 = vmul.u32 %v3936, %v3927
        %v3944 = vadd.s32 %v3939, %v3941
        %vm3945 = vc.u32 %v3939, %v3941
        %v3946 = vadd.s32 %v3942, 1
        %v3947 = vsel %vm3945, %v3946, %v3942
        %v3948 = vadd.s32 %v3943, %v3947
        %v3949 = vadd.s32 %v3948, 536870912
        %v3950 = vshrl.u32 %v3949, 30
        %v3951 = vshll.u32 %v3950, 30
        %v3952 = vsub.s32 %v3948, %v3951
        %vm3953 = vcmp.lt.s32.totalorder %v3952, 0
        %v3954 = vsub.s32 0, %v3952
        %v3955 = vsel %vm3953, %v3954, %v3952
        %v3956 = vclz %v3955
        %v3957 = vsub.s32 %v3956, 2
        %vm3958 = vcmp.gt.s32.totalorder 0, %v3957
        %v3959 = vsel %vm3958, 0, %v3957
        %v3960 = vsub.s32 32, %v3959
        %v3961 = vshll.u32 %v3952, %v3959
        %v3962 = vshrl.u32 %v3944, %v3960
        %v3963 = vor.u32 %v3961, %v3962
        %v3964 = vsub.s32 4294967266, %v3959
        %v3965 = vadd.s32 %v3964, 127
        %v3966 = vshll.u32 %v3965, 23
        %v3967 = vor.u32 4788187, %v3966
        %v3968 = vand.u32 2147483647, %v3967
        %v3970 = vcvt.s32.f32 %v3963
        %v3971 = vmul.f32 %v3970, %v3968
        %v3972 = vxor.u32 %v3971, 2147483648
        %v3973 = vsel %vm3890, %v3972, %v3971
        %v3974 = vsub.s32 4, %v3950
        %v3975 = vsel %vm3890, %v3974, %v3950
        %v3976 = vsel %vm3889, %v3151, %v3973
        %v3977 = vsel %vm3889, 0, %v3975
        %v3978 = vcosq.f32.pop %v3976
        %v3979 = vsinq.f32.pop %v3976
        %vm3980 = vweird.f32 %v3151
        %v3981 = vadd.s32 %v3977, 3
        %v3982 = vand.u32 %v3981, 3
        %vm3983 = vcmp.lt.s32.totalorder %v3982, 2
        %vm3984 = vcmp.eq.s32.totalorder %v3982, 0
        %v3985 = vxor.u32 %v3979, 2147483648
        %v3986 = vsel %vm3984, %v3978, %v3985
        %vm3987 = vcmp.eq.s32.totalorder %v3982, 2
        %v3988 = vxor.u32 %v3978, 2147483648
        %v3989 = vsel %vm3987, %v3988, %v3979
        %v3990 = vsel %vm3983, %v3986, %v3989
        %v3991 = vsel %vm3980, nan, %v3990
        %v3992 = vand.u32 2147483647, %v3152
        %vm3993 = vcmp.le.f32.partialorder %v3992, 0.7853982
        %vm3994 = vcmp.lt.s32.totalorder %v3152, 0
        %v3995 = vand.u32 %v3152, 2139095040
        %v3996 = vshrl.u32 %v3995, 23
        %v3997 = vsub.s32 %v3996, 127
        %v3998 = vand.u32 2147483647, %v3152
        %v3999 = vand.u32 %v3998, 8388607
        %v4000 = vor.u32 %v3999, 8388608
        %v4001 = vsub.s32 0, %v4000
        %v4002 = vadd.s32 %v3997, 1
        %vm4003 = vcmp.gt.s32.totalorder %v4002, 0
        %v4004 = vsel %vm4003, %v4002, 0
        %v4005 = vshrl.u32 %v4004, 5
        %v4006 = vand.u32 %v4004, 31
        %v4007 = vsub.s32 32, %v4006
        %v4008 = vshrl.u32 683565275, %v4007
        %v4009 = vshll.u32 683565275, %v4006
        %v4010 = vshrl.u32 2475754826, %v4007
        %v4011 = vor.u32 %v4009, %v4010
        %v4012 = vshll.u32 2475754826, %v4006
        %v4013 = vshrl.u32 2131351028, %v4007
        %v4014 = vor.u32 %v4012, %v4013
        %v4015 = vshll.u32 2131351028, %v4006
        %v4016 = vshrl.u32 2102212464, %v4007
        %v4017 = vor.u32 %v4015, %v4016
        %v4018 = vshll.u32 2102212464, %v4006
        %v4019 = vshrl.u32 920167782, %v4007
        %v4020 = vor.u32 %v4018, %v4019
        %v4021 = vshll.u32 920167782, %v4006
        %v4022 = vshrl.u32 1326507024, %v4007
        %v4023 = vor.u32 %v4021, %v4022
        %vm4024 = vcmp.lt.s32.totalorder %v4005, 1
        %vm4025 = vcmp.lt.s32.totalorder %v4005, 2
        %vm4026 = vcmp.lt.s32.totalorder %v4005, 3
        %vm4027 = vcmp.lt.s32.totalorder %v4005, 4
        %v4028 = vsel %vm4024, %v4008, %v4011
        %v4029 = vsel %vm4027, %v4017, 2102212464
        %v4030 = vsel %vm4026, %v4014, %v4029
        %v4031 = vsel %vm4025, %v4028, %v4030
        %v4032 = vsel %vm4024, %v4011, %v4014
        %v4033 = vsel %vm4027, %v4020, 920167782
        %v4034 = vsel %vm4026, %v4017, %v4033
        %v4035 = vsel %vm4025, %v4032, %v4034
        %v4036 = vsel %vm4024, %v4014, %v4017
        %v4037 = vsel %vm4027, %v4023, 1326507024
        %v4038 = vsel %vm4026, %v4020, %v4037
        %v4039 = vsel %vm4025, %v4036, %v4038
        %v4040 = vshll.u32 %v4000, 8
        %v4041 = vmul.u32.u64.compose %v4040, %v4039
        %v4042 = vextract.low.u32 %v4041
        %v4043 = vextract.high.u32 %v4041
        %v4044 = vmul.u32.u64.compose %v4040, %v4035
        %v4045 = vextract.low.u32 %v4044
        %v4046 = vextract.high.u32 %v4044
        %v4047 = vmul.u32 %v4040, %v4031
        %v4048 = vadd.s32 %v4043, %v4045
        %vm4049 = vc.u32 %v4043, %v4045
        %v4050 = vadd.s32 %v4046, 1
        %v4051 = vsel %vm4049, %v4050, %v4046
        %v4052 = vadd.s32 %v4047, %v4051
        %v4053 = vadd.s32 %v4052, 536870912
        %v4054 = vshrl.u32 %v4053, 30
        %v4055 = vshll.u32 %v4054, 30
        %v4056 = vsub.s32 %v4052, %v4055
        %vm4057 = vcmp.lt.s32.totalorder %v4056, 0
        %v4058 = vsub.s32 0, %v4056
        %v4059 = vsel %vm4057, %v4058, %v4056
        %v4060 = vclz %v4059
        %v4061 = vsub.s32 %v4060, 2
        %vm4062 = vcmp.gt.s32.totalorder 0, %v4061
        %v4063 = vsel %vm4062, 0, %v4061
        %v4064 = vsub.s32 32, %v4063
        %v4065 = vshll.u32 %v4056, %v4063
        %v4066 = vshrl.u32 %v4048, %v4064
        %v4067 = vor.u32 %v4065, %v4066
        %v4068 = vsub.s32 4294967266, %v4063
        %v4069 = vadd.s32 %v4068, 127
        %v4070 = vshll.u32 %v4069, 23
        %v4071 = vor.u32 4788187, %v4070
        %v4072 = vand.u32 2147483647, %v4071
        %v4074 = vcvt.s32.f32 %v4067
        %v4075 = vmul.f32 %v4074, %v4072
        %v4076 = vxor.u32 %v4075, 2147483648
        %v4077 = vsel %vm3994, %v4076, %v4075
        %v4078 = vsub.s32 4, %v4054
        %v4079 = vsel %vm3994, %v4078, %v4054
        %v4080 = vsel %vm3993, %v3152, %v4077
        %v4081 = vsel %vm3993, 0, %v4079
        %v4082 = vcosq.f32.pop %v4080
        %v4083 = vsinq.f32.pop %v4080
        %vm4084 = vweird.f32 %v3152
        %v4085 = vadd.s32 %v4081, 3
        %v4086 = vand.u32 %v4085, 3
        %vm4087 = vcmp.lt.s32.totalorder %v4086, 2
        %vm4088 = vcmp.eq.s32.totalorder %v4086, 0
        %v4089 = vxor.u32 %v4083, 2147483648
        %v4090 = vsel %vm4088, %v4082, %v4089
        %vm4091 = vcmp.eq.s32.totalorder %v4086, 2
        %v4092 = vxor.u32 %v4082, 2147483648
        %v4093 = vsel %vm4091, %v4092, %v4083
        %v4094 = vsel %vm4087, %v4090, %v4093
        %v4095 = vsel %vm4084, nan, %v4094
        %v4096 = vand.u32 2147483647, %v3153
        %vm4097 = vcmp.le.f32.partialorder %v4096, 0.7853982
        %vm4098 = vcmp.lt.s32.totalorder %v3153, 0
        %v4099 = vand.u32 %v3153, 2139095040
        %v4100 = vshrl.u32 %v4099, 23
        %v4101 = vsub.s32 %v4100, 127
        %v4102 = vand.u32 2147483647, %v3153
        %v4103 = vand.u32 %v4102, 8388607
        %v4104 = vor.u32 %v4103, 8388608
        %v4105 = vsub.s32 0, %v4104
        %v4106 = vadd.s32 %v4101, 1
        %vm4107 = vcmp.gt.s32.totalorder %v4106, 0
        %v4108 = vsel %vm4107, %v4106, 0
        %v4109 = vshrl.u32 %v4108, 5
        %v4110 = vand.u32 %v4108, 31
        %v4111 = vsub.s32 32, %v4110
        %v4112 = vshrl.u32 683565275, %v4111
        %v4113 = vshll.u32 683565275, %v4110
        %v4114 = vshrl.u32 2475754826, %v4111
        %v4115 = vor.u32 %v4113, %v4114
        %v4116 = vshll.u32 2475754826, %v4110
        %v4117 = vshrl.u32 2131351028, %v4111
        %v4118 = vor.u32 %v4116, %v4117
        %v4119 = vshll.u32 2131351028, %v4110
        %v4120 = vshrl.u32 2102212464, %v4111
        %v4121 = vor.u32 %v4119, %v4120
        %v4122 = vshll.u32 2102212464, %v4110
        %v4123 = vshrl.u32 920167782, %v4111
        %v4124 = vor.u32 %v4122, %v4123
        %v4125 = vshll.u32 920167782, %v4110
        %v4126 = vshrl.u32 1326507024, %v4111
        %v4127 = vor.u32 %v4125, %v4126
        %vm4128 = vcmp.lt.s32.totalorder %v4109, 1
        %vm4129 = vcmp.lt.s32.totalorder %v4109, 2
        %vm4130 = vcmp.lt.s32.totalorder %v4109, 3
        %vm4131 = vcmp.lt.s32.totalorder %v4109, 4
        %v4132 = vsel %vm4128, %v4112, %v4115
        %v4133 = vsel %vm4131, %v4121, 2102212464
        %v4134 = vsel %vm4130, %v4118, %v4133
        %v4135 = vsel %vm4129, %v4132, %v4134
        %v4136 = vsel %vm4128, %v4115, %v4118
        %v4137 = vsel %vm4131, %v4124, 920167782
        %v4138 = vsel %vm4130, %v4121, %v4137
        %v4139 = vsel %vm4129, %v4136, %v4138
        %v4140 = vsel %vm4128, %v4118, %v4121
        %v4141 = vsel %vm4131, %v4127, 1326507024
        %v4142 = vsel %vm4130, %v4124, %v4141
        %v4143 = vsel %vm4129, %v4140, %v4142
        %v4144 = vshll.u32 %v4104, 8
        %v4145 = vmul.u32.u64.compose %v4144, %v4143
        %v4146 = vextract.low.u32 %v4145
        %v4147 = vextract.high.u32 %v4145
        %v4148 = vmul.u32.u64.compose %v4144, %v4139
        %v4149 = vextract.low.u32 %v4148
        %v4150 = vextract.high.u32 %v4148
        %v4151 = vmul.u32 %v4144, %v4135
        %v4152 = vadd.s32 %v4147, %v4149
        %vm4153 = vc.u32 %v4147, %v4149
        %v4154 = vadd.s32 %v4150, 1
        %v4155 = vsel %vm4153, %v4154, %v4150
        %v4156 = vadd.s32 %v4151, %v4155
        %v4157 = vadd.s32 %v4156, 536870912
        %v4158 = vshrl.u32 %v4157, 30
        %v4159 = vshll.u32 %v4158, 30
        %v4160 = vsub.s32 %v4156, %v4159
        %vm4161 = vcmp.lt.s32.totalorder %v4160, 0
        %v4162 = vsub.s32 0, %v4160
        %v4163 = vsel %vm4161, %v4162, %v4160
        %v4164 = vclz %v4163
        %v4165 = vsub.s32 %v4164, 2
        %vm4166 = vcmp.gt.s32.totalorder 0, %v4165
        %v4167 = vsel %vm4166, 0, %v4165
        %v4168 = vsub.s32 32, %v4167
        %v4169 = vshll.u32 %v4160, %v4167
        %v4170 = vshrl.u32 %v4152, %v4168
        %v4171 = vor.u32 %v4169, %v4170
        %v4172 = vsub.s32 4294967266, %v4167
        %v4173 = vadd.s32 %v4172, 127
        %v4174 = vshll.u32 %v4173, 23
        %v4175 = vor.u32 4788187, %v4174
        %v4176 = vand.u32 2147483647, %v4175
        %v4178 = vcvt.s32.f32 %v4171
        %v4179 = vmul.f32 %v4178, %v4176
        %v4180 = vxor.u32 %v4179, 2147483648
        %v4181 = vsel %vm4098, %v4180, %v4179
        %v4182 = vsub.s32 4, %v4158
        %v4183 = vsel %vm4098, %v4182, %v4158
        %v4184 = vsel %vm4097, %v3153, %v4181
        %v4185 = vsel %vm4097, 0, %v4183
        %v4186 = vcosq.f32.pop %v4184
        %v4187 = vsinq.f32.pop %v4184
        %vm4188 = vweird.f32 %v3153
        %v4189 = vadd.s32 %v4185, 3
        %v4190 = vand.u32 %v4189, 3
        %vm4191 = vcmp.lt.s32.totalorder %v4190, 2
        %vm4192 = vcmp.eq.s32.totalorder %v4190, 0
        %v4193 = vxor.u32 %v4187, 2147483648
        %v4194 = vsel %vm4192, %v4186, %v4193
        %vm4195 = vcmp.eq.s32.totalorder %v4190, 2
        %v4196 = vxor.u32 %v4186, 2147483648
        %v4197 = vsel %vm4195, %v4196, %v4187
        %v4198 = vsel %vm4191, %v4194, %v4197
        %v4199 = vsel %vm4188, nan, %v4198
        %v4200 = vand.u32 2147483647, %v3154
        %vm4201 = vcmp.le.f32.partialorder %v4200, 0.7853982
        %vm4202 = vcmp.lt.s32.totalorder %v3154, 0
        %v4203 = vand.u32 %v3154, 2139095040
        %v4204 = vshrl.u32 %v4203, 23
        %v4205 = vsub.s32 %v4204, 127
        %v4206 = vand.u32 2147483647, %v3154
        %v4207 = vand.u32 %v4206, 8388607
        %v4208 = vor.u32 %v4207, 8388608
        %v4209 = vsub.s32 0, %v4208
        %v4210 = vadd.s32 %v4205, 1
        %vm4211 = vcmp.gt.s32.totalorder %v4210, 0
        %v4212 = vsel %vm4211, %v4210, 0
        %v4213 = vshrl.u32 %v4212, 5
        %v4214 = vand.u32 %v4212, 31
        %v4215 = vsub.s32 32, %v4214
        %v4216 = vshrl.u32 683565275, %v4215
        %v4217 = vshll.u32 683565275, %v4214
        %v4218 = vshrl.u32 2475754826, %v4215
        %v4219 = vor.u32 %v4217, %v4218
        %v4220 = vshll.u32 2475754826, %v4214
        %v4221 = vshrl.u32 2131351028, %v4215
        %v4222 = vor.u32 %v4220, %v4221
        %v4223 = vshll.u32 2131351028, %v4214
        %v4224 = vshrl.u32 2102212464, %v4215
        %v4225 = vor.u32 %v4223, %v4224
        %v4226 = vshll.u32 2102212464, %v4214
        %v4227 = vshrl.u32 920167782, %v4215
        %v4228 = vor.u32 %v4226, %v4227
        %v4229 = vshll.u32 920167782, %v4214
        %v4230 = vshrl.u32 1326507024, %v4215
        %v4231 = vor.u32 %v4229, %v4230
        %vm4232 = vcmp.lt.s32.totalorder %v4213, 1
        %vm4233 = vcmp.lt.s32.totalorder %v4213, 2
        %vm4234 = vcmp.lt.s32.totalorder %v4213, 3
        %vm4235 = vcmp.lt.s32.totalorder %v4213, 4
        %v4236 = vsel %vm4232, %v4216, %v4219
        %v4237 = vsel %vm4235, %v4225, 2102212464
        %v4238 = vsel %vm4234, %v4222, %v4237
        %v4239 = vsel %vm4233, %v4236, %v4238
        %v4240 = vsel %vm4232, %v4219, %v4222
        %v4241 = vsel %vm4235, %v4228, 920167782
        %v4242 = vsel %vm4234, %v4225, %v4241
        %v4243 = vsel %vm4233, %v4240, %v4242
        %v4244 = vsel %vm4232, %v4222, %v4225
        %v4245 = vsel %vm4235, %v4231, 1326507024
        %v4246 = vsel %vm4234, %v4228, %v4245
        %v4247 = vsel %vm4233, %v4244, %v4246
        %v4248 = vshll.u32 %v4208, 8
        %v4249 = vmul.u32.u64.compose %v4248, %v4247
        %v4250 = vextract.low.u32 %v4249
        %v4251 = vextract.high.u32 %v4249
        %v4252 = vmul.u32.u64.compose %v4248, %v4243
        %v4253 = vextract.low.u32 %v4252
        %v4254 = vextract.high.u32 %v4252
        %v4255 = vmul.u32 %v4248, %v4239
        %v4256 = vadd.s32 %v4251, %v4253
        %vm4257 = vc.u32 %v4251, %v4253
        %v4258 = vadd.s32 %v4254, 1
        %v4259 = vsel %vm4257, %v4258, %v4254
        %v4260 = vadd.s32 %v4255, %v4259
        %v4261 = vadd.s32 %v4260, 536870912
        %v4262 = vshrl.u32 %v4261, 30
        %v4263 = vshll.u32 %v4262, 30
        %v4264 = vsub.s32 %v4260, %v4263
        %vm4265 = vcmp.lt.s32.totalorder %v4264, 0
        %v4266 = vsub.s32 0, %v4264
        %v4267 = vsel %vm4265, %v4266, %v4264
        %v4268 = vclz %v4267
        %v4269 = vsub.s32 %v4268, 2
        %vm4270 = vcmp.gt.s32.totalorder 0, %v4269
        %v4271 = vsel %vm4270, 0, %v4269
        %v4272 = vsub.s32 32, %v4271
        %v4273 = vshll.u32 %v4264, %v4271
        %v4274 = vshrl.u32 %v4256, %v4272
        %v4275 = vor.u32 %v4273, %v4274
        %v4276 = vsub.s32 4294967266, %v4271
        %v4277 = vadd.s32 %v4276, 127
        %v4278 = vshll.u32 %v4277, 23
        %v4279 = vor.u32 4788187, %v4278
        %v4280 = vand.u32 2147483647, %v4279
        %v4282 = vcvt.s32.f32 %v4275
        %v4283 = vmul.f32 %v4282, %v4280
        %v4284 = vxor.u32 %v4283, 2147483648
        %v4285 = vsel %vm4202, %v4284, %v4283
        %v4286 = vsub.s32 4, %v4262
        %v4287 = vsel %vm4202, %v4286, %v4262
        %v4288 = vsel %vm4201, %v3154, %v4285
        %v4289 = vsel %vm4201, 0, %v4287
        %v4290 = vcosq.f32.pop %v4288
        %v4291 = vsinq.f32.pop %v4288
        %vm4292 = vweird.f32 %v3154
        %v4293 = vadd.s32 %v4289, 3
        %v4294 = vand.u32 %v4293, 3
        %vm4295 = vcmp.lt.s32.totalorder %v4294, 2
        %vm4296 = vcmp.eq.s32.totalorder %v4294, 0
        %v4297 = vxor.u32 %v4291, 2147483648
        %v4298 = vsel %vm4296, %v4290, %v4297
        %vm4299 = vcmp.eq.s32.totalorder %v4294, 2
        %v4300 = vxor.u32 %v4290, 2147483648
        %v4301 = vsel %vm4299, %v4300, %v4291
        %v4302 = vsel %vm4295, %v4298, %v4301
        %v4303 = vsel %vm4292, nan, %v4302
        %v4304 = vand.u32 2147483647, %v3155
        %vm4305 = vcmp.le.f32.partialorder %v4304, 0.7853982
        %vm4306 = vcmp.lt.s32.totalorder %v3155, 0
        %v4307 = vand.u32 %v3155, 2139095040
        %v4308 = vshrl.u32 %v4307, 23
        %v4309 = vsub.s32 %v4308, 127
        %v4310 = vand.u32 2147483647, %v3155
        %v4311 = vand.u32 %v4310, 8388607
        %v4312 = vor.u32 %v4311, 8388608
        %v4313 = vsub.s32 0, %v4312
        %v4314 = vadd.s32 %v4309, 1
        %vm4315 = vcmp.gt.s32.totalorder %v4314, 0
        %v4316 = vsel %vm4315, %v4314, 0
        %v4317 = vshrl.u32 %v4316, 5
        %v4318 = vand.u32 %v4316, 31
        %v4319 = vsub.s32 32, %v4318
        %v4320 = vshrl.u32 683565275, %v4319
        %v4321 = vshll.u32 683565275, %v4318
        %v4322 = vshrl.u32 2475754826, %v4319
        %v4323 = vor.u32 %v4321, %v4322
        %v4324 = vshll.u32 2475754826, %v4318
        %v4325 = vshrl.u32 2131351028, %v4319
        %v4326 = vor.u32 %v4324, %v4325
        %v4327 = vshll.u32 2131351028, %v4318
        %v4328 = vshrl.u32 2102212464, %v4319
        %v4329 = vor.u32 %v4327, %v4328
        %v4330 = vshll.u32 2102212464, %v4318
        %v4331 = vshrl.u32 920167782, %v4319
        %v4332 = vor.u32 %v4330, %v4331
        %v4333 = vshll.u32 920167782, %v4318
        %v4334 = vshrl.u32 1326507024, %v4319
        %v4335 = vor.u32 %v4333, %v4334
        %vm4336 = vcmp.lt.s32.totalorder %v4317, 1
        %vm4337 = vcmp.lt.s32.totalorder %v4317, 2
        %vm4338 = vcmp.lt.s32.totalorder %v4317, 3
        %vm4339 = vcmp.lt.s32.totalorder %v4317, 4
        %v4340 = vsel %vm4336, %v4320, %v4323
        %v4341 = vsel %vm4339, %v4329, 2102212464
        %v4342 = vsel %vm4338, %v4326, %v4341
        %v4343 = vsel %vm4337, %v4340, %v4342
        %v4344 = vsel %vm4336, %v4323, %v4326
        %v4345 = vsel %vm4339, %v4332, 920167782
        %v4346 = vsel %vm4338, %v4329, %v4345
        %v4347 = vsel %vm4337, %v4344, %v4346
        %v4348 = vsel %vm4336, %v4326, %v4329
        %v4349 = vsel %vm4339, %v4335, 1326507024
        %v4350 = vsel %vm4338, %v4332, %v4349
        %v4351 = vsel %vm4337, %v4348, %v4350
        %v4352 = vshll.u32 %v4312, 8
        %v4353 = vmul.u32.u64.compose %v4352, %v4351
        %v4354 = vextract.low.u32 %v4353
        %v4355 = vextract.high.u32 %v4353
        %v4356 = vmul.u32.u64.compose %v4352, %v4347
        %v4357 = vextract.low.u32 %v4356
        %v4358 = vextract.high.u32 %v4356
        %v4359 = vmul.u32 %v4352, %v4343
        %v4360 = vadd.s32 %v4355, %v4357
        %vm4361 = vc.u32 %v4355, %v4357
        %v4362 = vadd.s32 %v4358, 1
        %v4363 = vsel %vm4361, %v4362, %v4358
        %v4364 = vadd.s32 %v4359, %v4363
        %v4365 = vadd.s32 %v4364, 536870912
        %v4366 = vshrl.u32 %v4365, 30
        %v4367 = vshll.u32 %v4366, 30
        %v4368 = vsub.s32 %v4364, %v4367
        %vm4369 = vcmp.lt.s32.totalorder %v4368, 0
        %v4370 = vsub.s32 0, %v4368
        %v4371 = vsel %vm4369, %v4370, %v4368
        %v4372 = vclz %v4371
        %v4373 = vsub.s32 %v4372, 2
        %vm4374 = vcmp.gt.s32.totalorder 0, %v4373
        %v4375 = vsel %vm4374, 0, %v4373
        %v4376 = vsub.s32 32, %v4375
        %v4377 = vshll.u32 %v4368, %v4375
        %v4378 = vshrl.u32 %v4360, %v4376
        %v4379 = vor.u32 %v4377, %v4378
        %v4380 = vsub.s32 4294967266, %v4375
        %v4381 = vadd.s32 %v4380, 127
        %v4382 = vshll.u32 %v4381, 23
        %v4383 = vor.u32 4788187, %v4382
        %v4384 = vand.u32 2147483647, %v4383
        %v4386 = vcvt.s32.f32 %v4379
        %v4387 = vmul.f32 %v4386, %v4384
        %v4388 = vxor.u32 %v4387, 2147483648
        %v4389 = vsel %vm4306, %v4388, %v4387
        %v4390 = vsub.s32 4, %v4366
        %v4391 = vsel %vm4306, %v4390, %v4366
        %v4392 = vsel %vm4305, %v3155, %v4389
        %v4393 = vsel %vm4305, 0, %v4391
        %v4394 = vcosq.f32.pop %v4392
        %v4395 = vsinq.f32.pop %v4392
        %vm4396 = vweird.f32 %v3155
        %v4397 = vadd.s32 %v4393, 3
        %v4398 = vand.u32 %v4397, 3
        %vm4399 = vcmp.lt.s32.totalorder %v4398, 2
        %vm4400 = vcmp.eq.s32.totalorder %v4398, 0
        %v4401 = vxor.u32 %v4395, 2147483648
        %v4402 = vsel %vm4400, %v4394, %v4401
        %vm4403 = vcmp.eq.s32.totalorder %v4398, 2
        %v4404 = vxor.u32 %v4394, 2147483648
        %v4405 = vsel %vm4403, %v4404, %v4395
        %v4406 = vsel %vm4399, %v4402, %v4405
        %v4407 = vsel %vm4396, nan, %v4406
        %v4408 = vand.u32 2147483647, %v3156
        %vm4409 = vcmp.le.f32.partialorder %v4408, 0.7853982
        %vm4410 = vcmp.lt.s32.totalorder %v3156, 0
        %v4411 = vand.u32 %v3156, 2139095040
        %v4412 = vshrl.u32 %v4411, 23
        %v4413 = vsub.s32 %v4412, 127
        %v4414 = vand.u32 2147483647, %v3156
        %v4415 = vand.u32 %v4414, 8388607
        %v4416 = vor.u32 %v4415, 8388608
        %v4417 = vsub.s32 0, %v4416
        %v4418 = vadd.s32 %v4413, 1
        %vm4419 = vcmp.gt.s32.totalorder %v4418, 0
        %v4420 = vsel %vm4419, %v4418, 0
        %v4421 = vshrl.u32 %v4420, 5
        %v4422 = vand.u32 %v4420, 31
        %v4423 = vsub.s32 32, %v4422
        %v4424 = vshrl.u32 683565275, %v4423
        %v4425 = vshll.u32 683565275, %v4422
        %v4426 = vshrl.u32 2475754826, %v4423
        %v4427 = vor.u32 %v4425, %v4426
        %v4428 = vshll.u32 2475754826, %v4422
        %v4429 = vshrl.u32 2131351028, %v4423
        %v4430 = vor.u32 %v4428, %v4429
        %v4431 = vshll.u32 2131351028, %v4422
        %v4432 = vshrl.u32 2102212464, %v4423
        %v4433 = vor.u32 %v4431, %v4432
        %v4434 = vshll.u32 2102212464, %v4422
        %v4435 = vshrl.u32 920167782, %v4423
        %v4436 = vor.u32 %v4434, %v4435
        %v4437 = vshll.u32 920167782, %v4422
        %v4438 = vshrl.u32 1326507024, %v4423
        %v4439 = vor.u32 %v4437, %v4438
        %vm4440 = vcmp.lt.s32.totalorder %v4421, 1
        %vm4441 = vcmp.lt.s32.totalorder %v4421, 2
        %vm4442 = vcmp.lt.s32.totalorder %v4421, 3
        %vm4443 = vcmp.lt.s32.totalorder %v4421, 4
        %v4444 = vsel %vm4440, %v4424, %v4427
        %v4445 = vsel %vm4443, %v4433, 2102212464
        %v4446 = vsel %vm4442, %v4430, %v4445
        %v4447 = vsel %vm4441, %v4444, %v4446
        %v4448 = vsel %vm4440, %v4427, %v4430
        %v4449 = vsel %vm4443, %v4436, 920167782
        %v4450 = vsel %vm4442, %v4433, %v4449
        %v4451 = vsel %vm4441, %v4448, %v4450
        %v4452 = vsel %vm4440, %v4430, %v4433
        %v4453 = vsel %vm4443, %v4439, 1326507024
        %v4454 = vsel %vm4442, %v4436, %v4453
        %v4455 = vsel %vm4441, %v4452, %v4454
        %v4456 = vshll.u32 %v4416, 8
        %v4457 = vmul.u32.u64.compose %v4456, %v4455
        %v4458 = vextract.low.u32 %v4457
        %v4459 = vextract.high.u32 %v4457
        %v4460 = vmul.u32.u64.compose %v4456, %v4451
        %v4461 = vextract.low.u32 %v4460
        %v4462 = vextract.high.u32 %v4460
        %v4463 = vmul.u32 %v4456, %v4447
        %v4464 = vadd.s32 %v4459, %v4461
        %vm4465 = vc.u32 %v4459, %v4461
        %v4466 = vadd.s32 %v4462, 1
        %v4467 = vsel %vm4465, %v4466, %v4462
        %v4468 = vadd.s32 %v4463, %v4467
        %v4469 = vadd.s32 %v4468, 536870912
        %v4470 = vshrl.u32 %v4469, 30
        %v4471 = vshll.u32 %v4470, 30
        %v4472 = vsub.s32 %v4468, %v4471
        %vm4473 = vcmp.lt.s32.totalorder %v4472, 0
        %v4474 = vsub.s32 0, %v4472
        %v4475 = vsel %vm4473, %v4474, %v4472
        %v4476 = vclz %v4475
        %v4477 = vsub.s32 %v4476, 2
        %vm4478 = vcmp.gt.s32.totalorder 0, %v4477
        %v4479 = vsel %vm4478, 0, %v4477
        %v4480 = vsub.s32 32, %v4479
        %v4481 = vshll.u32 %v4472, %v4479
        %v4482 = vshrl.u32 %v4464, %v4480
        %v4483 = vor.u32 %v4481, %v4482
        %v4484 = vsub.s32 4294967266, %v4479
        %v4485 = vadd.s32 %v4484, 127
        %v4486 = vshll.u32 %v4485, 23
        %v4487 = vor.u32 4788187, %v4486
        %v4488 = vand.u32 2147483647, %v4487
        %v4490 = vcvt.s32.f32 %v4483
        %v4491 = vmul.f32 %v4490, %v4488
        %v4492 = vxor.u32 %v4491, 2147483648
        %v4493 = vsel %vm4410, %v4492, %v4491
        %v4494 = vsub.s32 4, %v4470
        %v4495 = vsel %vm4410, %v4494, %v4470
        %v4496 = vsel %vm4409, %v3156, %v4493
        %v4497 = vsel %vm4409, 0, %v4495
        %v4498 = vcosq.f32.pop %v4496
        %v4499 = vsinq.f32.pop %v4496
        %vm4500 = vweird.f32 %v3156
        %v4501 = vadd.s32 %v4497, 3
        %v4502 = vand.u32 %v4501, 3
        %vm4503 = vcmp.lt.s32.totalorder %v4502, 2
        %vm4504 = vcmp.eq.s32.totalorder %v4502, 0
        %v4505 = vxor.u32 %v4499, 2147483648
        %v4506 = vsel %vm4504, %v4498, %v4505
        %vm4507 = vcmp.eq.s32.totalorder %v4502, 2
        %v4508 = vxor.u32 %v4498, 2147483648
        %v4509 = vsel %vm4507, %v4508, %v4499
        %v4510 = vsel %vm4503, %v4506, %v4509
        %v4511 = vsel %vm4500, nan, %v4510
        %v4512 = vand.u32 2147483647, %v3157
        %vm4513 = vcmp.le.f32.partialorder %v4512, 0.7853982
        %vm4514 = vcmp.lt.s32.totalorder %v3157, 0
        %v4515 = vand.u32 %v3157, 2139095040
        %v4516 = vshrl.u32 %v4515, 23
        %v4517 = vsub.s32 %v4516, 127
        %v4518 = vand.u32 2147483647, %v3157
        %v4519 = vand.u32 %v4518, 8388607
        %v4520 = vor.u32 %v4519, 8388608
        %v4521 = vsub.s32 0, %v4520
        %v4522 = vadd.s32 %v4517, 1
        %vm4523 = vcmp.gt.s32.totalorder %v4522, 0
        %v4524 = vsel %vm4523, %v4522, 0
        %v4525 = vshrl.u32 %v4524, 5
        %v4526 = vand.u32 %v4524, 31
        %v4527 = vsub.s32 32, %v4526
        %v4528 = vshrl.u32 683565275, %v4527
        %v4529 = vshll.u32 683565275, %v4526
        %v4530 = vshrl.u32 2475754826, %v4527
        %v4531 = vor.u32 %v4529, %v4530
        %v4532 = vshll.u32 2475754826, %v4526
        %v4533 = vshrl.u32 2131351028, %v4527
        %v4534 = vor.u32 %v4532, %v4533
        %v4535 = vshll.u32 2131351028, %v4526
        %v4536 = vshrl.u32 2102212464, %v4527
        %v4537 = vor.u32 %v4535, %v4536
        %v4538 = vshll.u32 2102212464, %v4526
        %v4539 = vshrl.u32 920167782, %v4527
        %v4540 = vor.u32 %v4538, %v4539
        %v4541 = vshll.u32 920167782, %v4526
        %v4542 = vshrl.u32 1326507024, %v4527
        %v4543 = vor.u32 %v4541, %v4542
        %vm4544 = vcmp.lt.s32.totalorder %v4525, 1
        %vm4545 = vcmp.lt.s32.totalorder %v4525, 2
        %vm4546 = vcmp.lt.s32.totalorder %v4525, 3
        %vm4547 = vcmp.lt.s32.totalorder %v4525, 4
        %v4548 = vsel %vm4544, %v4528, %v4531
        %v4549 = vsel %vm4547, %v4537, 2102212464
        %v4550 = vsel %vm4546, %v4534, %v4549
        %v4551 = vsel %vm4545, %v4548, %v4550
        %v4552 = vsel %vm4544, %v4531, %v4534
        %v4553 = vsel %vm4547, %v4540, 920167782
        %v4554 = vsel %vm4546, %v4537, %v4553
        %v4555 = vsel %vm4545, %v4552, %v4554
        %v4556 = vsel %vm4544, %v4534, %v4537
        %v4557 = vsel %vm4547, %v4543, 1326507024
        %v4558 = vsel %vm4546, %v4540, %v4557
        %v4559 = vsel %vm4545, %v4556, %v4558
        %v4560 = vshll.u32 %v4520, 8
        %v4561 = vmul.u32.u64.compose %v4560, %v4559
        %v4562 = vextract.low.u32 %v4561
        %v4563 = vextract.high.u32 %v4561
        %v4564 = vmul.u32.u64.compose %v4560, %v4555
        %v4565 = vextract.low.u32 %v4564
        %v4566 = vextract.high.u32 %v4564
        %v4567 = vmul.u32 %v4560, %v4551
        %v4568 = vadd.s32 %v4563, %v4565
        %vm4569 = vc.u32 %v4563, %v4565
        %v4570 = vadd.s32 %v4566, 1
        %v4571 = vsel %vm4569, %v4570, %v4566
        %v4572 = vadd.s32 %v4567, %v4571
        %v4573 = vadd.s32 %v4572, 536870912
        %v4574 = vshrl.u32 %v4573, 30
        %v4575 = vshll.u32 %v4574, 30
        %v4576 = vsub.s32 %v4572, %v4575
        %vm4577 = vcmp.lt.s32.totalorder %v4576, 0
        %v4578 = vsub.s32 0, %v4576
        %v4579 = vsel %vm4577, %v4578, %v4576
        %v4580 = vclz %v4579
        %v4581 = vsub.s32 %v4580, 2
        %vm4582 = vcmp.gt.s32.totalorder 0, %v4581
        %v4583 = vsel %vm4582, 0, %v4581
        %v4584 = vsub.s32 32, %v4583
        %v4585 = vshll.u32 %v4576, %v4583
        %v4586 = vshrl.u32 %v4568, %v4584
        %v4587 = vor.u32 %v4585, %v4586
        %v4588 = vsub.s32 4294967266, %v4583
        %v4589 = vadd.s32 %v4588, 127
        %v4590 = vshll.u32 %v4589, 23
        %v4591 = vor.u32 4788187, %v4590
        %v4592 = vand.u32 2147483647, %v4591
        %v4594 = vcvt.s32.f32 %v4587
        %v4595 = vmul.f32 %v4594, %v4592
        %v4596 = vxor.u32 %v4595, 2147483648
        %v4597 = vsel %vm4514, %v4596, %v4595
        %v4598 = vsub.s32 4, %v4574
        %v4599 = vsel %vm4514, %v4598, %v4574
        %v4600 = vsel %vm4513, %v3157, %v4597
        %v4601 = vsel %vm4513, 0, %v4599
        %v4602 = vcosq.f32.pop %v4600
        %v4603 = vsinq.f32.pop %v4600
        %vm4604 = vweird.f32 %v3157
        %v4605 = vadd.s32 %v4601, 3
        %v4606 = vand.u32 %v4605, 3
        %vm4607 = vcmp.lt.s32.totalorder %v4606, 2
        %vm4608 = vcmp.eq.s32.totalorder %v4606, 0
        %v4609 = vxor.u32 %v4603, 2147483648
        %v4610 = vsel %vm4608, %v4602, %v4609
        %vm4611 = vcmp.eq.s32.totalorder %v4606, 2
        %v4612 = vxor.u32 %v4602, 2147483648
        %v4613 = vsel %vm4611, %v4612, %v4603
        %v4614 = vsel %vm4607, %v4610, %v4613
        %v4615 = vsel %vm4604, nan, %v4614
        %v4616 = vand.u32 2147483647, %v3158
        %vm4617 = vcmp.le.f32.partialorder %v4616, 0.7853982
        %vm4618 = vcmp.lt.s32.totalorder %v3158, 0
        %v4619 = vand.u32 %v3158, 2139095040
        %v4620 = vshrl.u32 %v4619, 23
        %v4621 = vsub.s32 %v4620, 127
        %v4622 = vand.u32 2147483647, %v3158
        %v4623 = vand.u32 %v4622, 8388607
        %v4624 = vor.u32 %v4623, 8388608
        %v4625 = vsub.s32 0, %v4624
        %v4626 = vadd.s32 %v4621, 1
        %vm4627 = vcmp.gt.s32.totalorder %v4626, 0
        %v4628 = vsel %vm4627, %v4626, 0
        %v4629 = vshrl.u32 %v4628, 5
        %v4630 = vand.u32 %v4628, 31
        %v4631 = vsub.s32 32, %v4630
        %v4632 = vshrl.u32 683565275, %v4631
        %v4633 = vshll.u32 683565275, %v4630
        %v4634 = vshrl.u32 2475754826, %v4631
        %v4635 = vor.u32 %v4633, %v4634
        %v4636 = vshll.u32 2475754826, %v4630
        %v4637 = vshrl.u32 2131351028, %v4631
        %v4638 = vor.u32 %v4636, %v4637
        %v4639 = vshll.u32 2131351028, %v4630
        %v4640 = vshrl.u32 2102212464, %v4631
        %v4641 = vor.u32 %v4639, %v4640
        %v4642 = vshll.u32 2102212464, %v4630
        %v4643 = vshrl.u32 920167782, %v4631
        %v4644 = vor.u32 %v4642, %v4643
        %v4645 = vshll.u32 920167782, %v4630
        %v4646 = vshrl.u32 1326507024, %v4631
        %v4647 = vor.u32 %v4645, %v4646
        %vm4648 = vcmp.lt.s32.totalorder %v4629, 1
        %vm4649 = vcmp.lt.s32.totalorder %v4629, 2
        %vm4650 = vcmp.lt.s32.totalorder %v4629, 3
        %vm4651 = vcmp.lt.s32.totalorder %v4629, 4
        %v4652 = vsel %vm4648, %v4632, %v4635
        %v4653 = vsel %vm4651, %v4641, 2102212464
        %v4654 = vsel %vm4650, %v4638, %v4653
        %v4655 = vsel %vm4649, %v4652, %v4654
        %v4656 = vsel %vm4648, %v4635, %v4638
        %v4657 = vsel %vm4651, %v4644, 920167782
        %v4658 = vsel %vm4650, %v4641, %v4657
        %v4659 = vsel %vm4649, %v4656, %v4658
        %v4660 = vsel %vm4648, %v4638, %v4641
        %v4661 = vsel %vm4651, %v4647, 1326507024
        %v4662 = vsel %vm4650, %v4644, %v4661
        %v4663 = vsel %vm4649, %v4660, %v4662
        %v4664 = vshll.u32 %v4624, 8
        %v4665 = vmul.u32.u64.compose %v4664, %v4663
        %v4666 = vextract.low.u32 %v4665
        %v4667 = vextract.high.u32 %v4665
        %v4668 = vmul.u32.u64.compose %v4664, %v4659
        %v4669 = vextract.low.u32 %v4668
        %v4670 = vextract.high.u32 %v4668
        %v4671 = vmul.u32 %v4664, %v4655
        %v4672 = vadd.s32 %v4667, %v4669
        %vm4673 = vc.u32 %v4667, %v4669
        %v4674 = vadd.s32 %v4670, 1
        %v4675 = vsel %vm4673, %v4674, %v4670
        %v4676 = vadd.s32 %v4671, %v4675
        %v4677 = vadd.s32 %v4676, 536870912
        %v4678 = vshrl.u32 %v4677, 30
        %v4679 = vshll.u32 %v4678, 30
        %v4680 = vsub.s32 %v4676, %v4679
        %vm4681 = vcmp.lt.s32.totalorder %v4680, 0
        %v4682 = vsub.s32 0, %v4680
        %v4683 = vsel %vm4681, %v4682, %v4680
        %v4684 = vclz %v4683
        %v4685 = vsub.s32 %v4684, 2
        %vm4686 = vcmp.gt.s32.totalorder 0, %v4685
        %v4687 = vsel %vm4686, 0, %v4685
        %v4688 = vsub.s32 32, %v4687
        %v4689 = vshll.u32 %v4680, %v4687
        %v4690 = vshrl.u32 %v4672, %v4688
        %v4691 = vor.u32 %v4689, %v4690
        %v4692 = vsub.s32 4294967266, %v4687
        %v4693 = vadd.s32 %v4692, 127
        %v4694 = vshll.u32 %v4693, 23
        %v4695 = vor.u32 4788187, %v4694
        %v4696 = vand.u32 2147483647, %v4695
        %v4698 = vcvt.s32.f32 %v4691
        %v4699 = vmul.f32 %v4698, %v4696
        %v4700 = vxor.u32 %v4699, 2147483648
        %v4701 = vsel %vm4618, %v4700, %v4699
        %v4702 = vsub.s32 4, %v4678
        %v4703 = vsel %vm4618, %v4702, %v4678
        %v4704 = vsel %vm4617, %v3158, %v4701
        %v4705 = vsel %vm4617, 0, %v4703
        %v4706 = vcosq.f32.pop %v4704
        %v4707 = vsinq.f32.pop %v4704
        %vm4708 = vweird.f32 %v3158
        %v4709 = vadd.s32 %v4705, 3
        %v4710 = vand.u32 %v4709, 3
        %vm4711 = vcmp.lt.s32.totalorder %v4710, 2
        %vm4712 = vcmp.eq.s32.totalorder %v4710, 0
        %v4713 = vxor.u32 %v4707, 2147483648
        %v4714 = vsel %vm4712, %v4706, %v4713
        %vm4715 = vcmp.eq.s32.totalorder %v4710, 2
        %v4716 = vxor.u32 %v4706, 2147483648
        %v4717 = vsel %vm4715, %v4716, %v4707
        %v4718 = vsel %vm4711, %v4714, %v4717
        %v4719 = vsel %vm4708, nan, %v4718
        %v4720 = vand.u32 2147483647, %v3159
        %vm4721 = vcmp.le.f32.partialorder %v4720, 0.7853982
        %vm4722 = vcmp.lt.s32.totalorder %v3159, 0
        %v4723 = vand.u32 %v3159, 2139095040
        %v4724 = vshrl.u32 %v4723, 23
        %v4725 = vsub.s32 %v4724, 127
        %v4726 = vand.u32 2147483647, %v3159
        %v4727 = vand.u32 %v4726, 8388607
        %v4728 = vor.u32 %v4727, 8388608
        %v4729 = vsub.s32 0, %v4728
        %v4730 = vadd.s32 %v4725, 1
        %vm4731 = vcmp.gt.s32.totalorder %v4730, 0
        %v4732 = vsel %vm4731, %v4730, 0
        %v4733 = vshrl.u32 %v4732, 5
        %v4734 = vand.u32 %v4732, 31
        %v4735 = vsub.s32 32, %v4734
        %v4736 = vshrl.u32 683565275, %v4735
        %v4737 = vshll.u32 683565275, %v4734
        %v4738 = vshrl.u32 2475754826, %v4735
        %v4739 = vor.u32 %v4737, %v4738
        %v4740 = vshll.u32 2475754826, %v4734
        %v4741 = vshrl.u32 2131351028, %v4735
        %v4742 = vor.u32 %v4740, %v4741
        %v4743 = vshll.u32 2131351028, %v4734
        %v4744 = vshrl.u32 2102212464, %v4735
        %v4745 = vor.u32 %v4743, %v4744
        %v4746 = vshll.u32 2102212464, %v4734
        %v4747 = vshrl.u32 920167782, %v4735
        %v4748 = vor.u32 %v4746, %v4747
        %v4749 = vshll.u32 920167782, %v4734
        %v4750 = vshrl.u32 1326507024, %v4735
        %v4751 = vor.u32 %v4749, %v4750
        %vm4752 = vcmp.lt.s32.totalorder %v4733, 1
        %vm4753 = vcmp.lt.s32.totalorder %v4733, 2
        %vm4754 = vcmp.lt.s32.totalorder %v4733, 3
        %vm4755 = vcmp.lt.s32.totalorder %v4733, 4
        %v4756 = vsel %vm4752, %v4736, %v4739
        %v4757 = vsel %vm4755, %v4745, 2102212464
        %v4758 = vsel %vm4754, %v4742, %v4757
        %v4759 = vsel %vm4753, %v4756, %v4758
        %v4760 = vsel %vm4752, %v4739, %v4742
        %v4761 = vsel %vm4755, %v4748, 920167782
        %v4762 = vsel %vm4754, %v4745, %v4761
        %v4763 = vsel %vm4753, %v4760, %v4762
        %v4764 = vsel %vm4752, %v4742, %v4745
        %v4765 = vsel %vm4755, %v4751, 1326507024
        %v4766 = vsel %vm4754, %v4748, %v4765
        %v4767 = vsel %vm4753, %v4764, %v4766
        %v4768 = vshll.u32 %v4728, 8
        %v4769 = vmul.u32.u64.compose %v4768, %v4767
        %v4770 = vextract.low.u32 %v4769
        %v4771 = vextract.high.u32 %v4769
        %v4772 = vmul.u32.u64.compose %v4768, %v4763
        %v4773 = vextract.low.u32 %v4772
        %v4774 = vextract.high.u32 %v4772
        %v4775 = vmul.u32 %v4768, %v4759
        %v4776 = vadd.s32 %v4771, %v4773
        %vm4777 = vc.u32 %v4771, %v4773
        %v4778 = vadd.s32 %v4774, 1
        %v4779 = vsel %vm4777, %v4778, %v4774
        %v4780 = vadd.s32 %v4775, %v4779
        %v4781 = vadd.s32 %v4780, 536870912
        %v4782 = vshrl.u32 %v4781, 30
        %v4783 = vshll.u32 %v4782, 30
        %v4784 = vsub.s32 %v4780, %v4783
        %vm4785 = vcmp.lt.s32.totalorder %v4784, 0
        %v4786 = vsub.s32 0, %v4784
        %v4787 = vsel %vm4785, %v4786, %v4784
        %v4788 = vclz %v4787
        %v4789 = vsub.s32 %v4788, 2
        %vm4790 = vcmp.gt.s32.totalorder 0, %v4789
        %v4791 = vsel %vm4790, 0, %v4789
        %v4792 = vsub.s32 32, %v4791
        %v4793 = vshll.u32 %v4784, %v4791
        %v4794 = vshrl.u32 %v4776, %v4792
        %v4795 = vor.u32 %v4793, %v4794
        %v4796 = vsub.s32 4294967266, %v4791
        %v4797 = vadd.s32 %v4796, 127
        %v4798 = vshll.u32 %v4797, 23
        %v4799 = vor.u32 4788187, %v4798
        %v4800 = vand.u32 2147483647, %v4799
        %v4802 = vcvt.s32.f32 %v4795
        %v4803 = vmul.f32 %v4802, %v4800
        %v4804 = vxor.u32 %v4803, 2147483648
        %v4805 = vsel %vm4722, %v4804, %v4803
        %v4806 = vsub.s32 4, %v4782
        %v4807 = vsel %vm4722, %v4806, %v4782
        %v4808 = vsel %vm4721, %v3159, %v4805
        %v4809 = vsel %vm4721, 0, %v4807
        %v4810 = vcosq.f32.pop %v4808
        %v4811 = vsinq.f32.pop %v4808
        %vm4812 = vweird.f32 %v3159
        %v4813 = vadd.s32 %v4809, 3
        %v4814 = vand.u32 %v4813, 3
        %vm4815 = vcmp.lt.s32.totalorder %v4814, 2
        %vm4816 = vcmp.eq.s32.totalorder %v4814, 0
        %v4817 = vxor.u32 %v4811, 2147483648
        %v4818 = vsel %vm4816, %v4810, %v4817
        %vm4819 = vcmp.eq.s32.totalorder %v4814, 2
        %v4820 = vxor.u32 %v4810, 2147483648
        %v4821 = vsel %vm4819, %v4820, %v4811
        %v4822 = vsel %vm4815, %v4818, %v4821
        %v4823 = vsel %vm4812, nan, %v4822
        %v4824 = vpack.c.bf16 %v3367, %v3263
        %v4825 = vpack.c.bf16 %v3575, %v3471
        %v4826 = vpack.c.bf16 %v3783, %v3679
        %v4827 = vpack.c.bf16 %v3991, %v3887
        %v4828 = vpack.c.bf16 %v4199, %v4095
        %v4829 = vpack.c.bf16 %v4407, %v4303
        %v4830 = vpack.c.bf16 %v4615, %v4511
        %v4831 = vpack.c.bf16 %v4823, %v4719
        %v4832 = vld [vmem:[%s4] sm:$0xf]
        %v4833 = vld [vmem:[%s4 + $0x4] sm:$0xf]
        %v4834 = vld [vmem:[%s4 + $0x8] sm:$0xf]
        %v4835 = vld [vmem:[%s4 + $0xc] sm:$0xf]
        %v4836 = vld [vmem:[%s4 + $0x10] sm:$0xf]
        %v4837 = vld [vmem:[%s4 + $0x14] sm:$0xf]
        %v4838 = vld [vmem:[%s4 + $0x18] sm:$0xf]
        %v4839 = vld [vmem:[%s4 + $0x1c] sm:$0xf]
        %v4840 = vld [vmem:[%s4 + $0x20] sm:$0xf]
        %v4841 = vld [vmem:[%s4 + $0x24] sm:$0xf]
        %v4842 = vld [vmem:[%s4 + $0x28] sm:$0xf]
        %v4843 = vld [vmem:[%s4 + $0x2c] sm:$0xf]
        %v4844 = vld [vmem:[%s4 + $0x30] sm:$0xf]
        %v4845 = vld [vmem:[%s4 + $0x34] sm:$0xf]
        %v4846 = vld [vmem:[%s4 + $0x38] sm:$0xf]
        %v4847 = vld [vmem:[%s4 + $0x3c] sm:$0xf]
        %v4848 = vld [vmem:[%s5] sm:$0x1]
        %v4850 = vlaneseq
        %v4851 = vshrl.u32 %v4850, 7
        %v4852 = vsub.s32 0, %v4851
        %v4853 = vrot.slane %v4848, %v4852
        %v4871 = vunpack.c.l.b16 %v4832
        %v4872 = vunpack.c.l.b16 %v4833
        %v4873 = vunpack.c.l.b16 %v4834
        %v4874 = vunpack.c.l.b16 %v4835
        %v4875 = vunpack.c.l.b16 %v4836
        %v4876 = vunpack.c.l.b16 %v4837
        %v4877 = vunpack.c.l.b16 %v4838
        %v4878 = vunpack.c.l.b16 %v4839
        %v4879 = vunpack.c.l.b16 %v4840
        %v4880 = vunpack.c.l.b16 %v4841
        %v4881 = vunpack.c.l.b16 %v4842
        %v4882 = vunpack.c.l.b16 %v4843
        %v4883 = vunpack.c.l.b16 %v4844
        %v4884 = vunpack.c.l.b16 %v4845
        %v4885 = vunpack.c.l.b16 %v4846
        %v4886 = vunpack.c.l.b16 %v4847
        %v4887 = vpack.c.b16 %v4872, %v4871
        %v4888 = vpack.c.b16 %v4874, %v4873
        %v4889 = vpack.c.b16 %v4876, %v4875
        %v4890 = vpack.c.b16 %v4878, %v4877
        %v4891 = vpack.c.b16 %v4880, %v4879
        %v4892 = vpack.c.b16 %v4882, %v4881
        %v4893 = vpack.c.b16 %v4884, %v4883
        %v4894 = vpack.c.b16 %v4886, %v4885
        %4903 = vmatprep.subr.bf16.mxu0 0
        %4904 = vmatpush1.bf16.msra.mxu0 %v4887
        %4905 = vmatprep.subr.bf16.mxu0 0
        %4906 = vmatpush1.bf16.msra.mxu0 %v4888
        %4907 = vmatprep.subr.bf16.mxu0 0
        %4908 = vmatpush1.bf16.msra.mxu0 %v4889
        %4909 = vmatprep.subr.bf16.mxu0 0
        %4910 = vmatpush1.bf16.msra.mxu0 %v4890
        %4911 = vmatprep.subr.bf16.mxu0 0
        %4912 = vmatpush1.bf16.msra.mxu0 %v4891
        %4913 = vmatprep.subr.bf16.mxu0 0
        %4914 = vmatpush1.bf16.msra.mxu0 %v4892
        %4915 = vmatprep.subr.bf16.mxu0 0
        %4916 = vmatpush1.bf16.msra.mxu0 %v4893
        %4917 = vmatprep.subr.bf16.mxu0 0
        %4918 = vmatpush1.bf16.msra.mxu0 %v4894
        %4919 = vmatprep.subr.bf16.mxu0 0
        %4920 = vmatpush1.bf16.msra.mxu0 0
        %4921 = vmatprep.subr.bf16.mxu0 0
        %4922 = vmatpush1.bf16.msra.mxu0 0
        %4923 = vmatprep.subr.bf16.mxu0 0
        %4924 = vmatpush1.bf16.msra.mxu0 0
        %4925 = vmatprep.subr.bf16.mxu0 0
        %4926 = vmatpush1.bf16.msra.mxu0 0
        %4927 = vmatprep.subr.bf16.mxu0 0
        %4928 = vmatpush1.bf16.msra.mxu0 0
        %4929 = vmatprep.subr.bf16.mxu0 0
        %4930 = vmatpush1.bf16.msra.mxu0 0
        %4931 = vmatprep.subr.bf16.mxu0 0
        %4932 = vmatpush1.bf16.msra.mxu0 0
        %4933 = vmatprep.subr.bf16.mxu0 0
        %4934 = vmatpush1.bf16.msra.mxu0 0
        %4935 = vmatprep.mubr.bf16.mxu0 0
        %4936 = vmatmul.mubr.bf16.gmra.mrb[0].mxu0 %v4824
        %v4937 = vpop.f32.mrb[0].mxu0
        %v4938 = vadd.f32 %v4853, %v4937
        %v4939 = vpop.f32.mrb[0].mxu0
        %v4940 = vpop.f32.mrb[0].mxu0
        %v4941 = vadd.f32 %v4853, %v4940
        %v4942 = vpop.f32.mrb[0].mxu0
        %4943 = vmatprep.mubr.bf16.mxu0 0
        %4944 = vmatmul.mubr.bf16.gmra.mrb[0].mxu0 %v4825
        %v4945 = vpop.f32.mrb[0].mxu0
        %v4946 = vadd.f32 %v4853, %v4945
        %v4947 = vpop.f32.mrb[0].mxu0
        %v4948 = vpop.f32.mrb[0].mxu0
        %v4949 = vadd.f32 %v4853, %v4948
        %v4950 = vpop.f32.mrb[0].mxu0
        %4951 = vmatprep.mubr.bf16.mxu0 0
        %4952 = vmatmul.mubr.bf16.gmra.mrb[0].mxu0 %v4826
        %v4953 = vpop.f32.mrb[0].mxu0
        %v4954 = vadd.f32 %v4853, %v4953
        %v4955 = vpop.f32.mrb[0].mxu0
        %v4956 = vpop.f32.mrb[0].mxu0
        %v4957 = vadd.f32 %v4853, %v4956
        %v4958 = vpop.f32.mrb[0].mxu0
        %4959 = vmatprep.mubr.bf16.mxu0 0
        %4960 = vmatmul.mubr.bf16.gmra.mrb[0].mxu0 %v4827
        %v4961 = vpop.f32.mrb[0].mxu0
        %v4962 = vadd.f32 %v4853, %v4961
        %v4963 = vpop.f32.mrb[0].mxu0
        %v4964 = vpop.f32.mrb[0].mxu0
        %v4965 = vadd.f32 %v4853, %v4964
        %v4966 = vpop.f32.mrb[0].mxu0
        %4967 = vmatprep.mubr.bf16.mxu0 0
        %4968 = vmatmul.mubr.bf16.gmra.mrb[0].mxu0 %v4828
        %v4969 = vpop.f32.mrb[0].mxu0
        %v4970 = vadd.f32 %v4853, %v4969
        %v4971 = vpop.f32.mrb[0].mxu0
        %v4972 = vpop.f32.mrb[0].mxu0
        %v4973 = vadd.f32 %v4853, %v4972
        %v4974 = vpop.f32.mrb[0].mxu0
        %4975 = vmatprep.mubr.bf16.mxu0 0
        %4976 = vmatmul.mubr.bf16.gmra.mrb[0].mxu0 %v4829
        %v4977 = vpop.f32.mrb[0].mxu0
        %v4978 = vadd.f32 %v4853, %v4977
        %v4979 = vpop.f32.mrb[0].mxu0
        %v4980 = vpop.f32.mrb[0].mxu0
        %v4981 = vadd.f32 %v4853, %v4980
        %v4982 = vpop.f32.mrb[0].mxu0
        %4983 = vmatprep.mubr.bf16.mxu0 0
        %4984 = vmatmul.mubr.bf16.gmra.mrb[0].mxu0 %v4830
        %v4985 = vpop.f32.mrb[0].mxu0
        %v4986 = vadd.f32 %v4853, %v4985
        %v4987 = vpop.f32.mrb[0].mxu0
        %v4988 = vpop.f32.mrb[0].mxu0
        %v4989 = vadd.f32 %v4853, %v4988
        %v4990 = vpop.f32.mrb[0].mxu0
        %4991 = vmatprep.mubr.bf16.mxu0 0
        %4992 = vmatmul.mubr.bf16.gmra.mrb[0].mxu0 %v4831
        %v4993 = vpop.f32.mrb[0].mxu0
        %v4994 = vadd.f32 %v4853, %v4993
        %v4995 = vpop.f32.mrb[0].mxu0
        %v4996 = vpop.f32.mrb[0].mxu0
        %v4997 = vadd.f32 %v4853, %v4996
        %v4998 = vpop.f32.mrb[0].mxu0
        %4999 = vdwg.mxu0
        %5000 = vst [vmem:[%s245] sm:$0xff] %v4938
        %5001 = vst [vmem:[%s245 + $0x8] sm:$0xff] %v4941
        %5002 = vst [vmem:[%s245 + $0x10] sm:$0xff] %v4946
        %5003 = vst [vmem:[%s245 + $0x18] sm:$0xff] %v4949
        %5004 = vst [vmem:[%s245 + $0x20] sm:$0xff] %v4954
        %5005 = vst [vmem:[%s245 + $0x28] sm:$0xff] %v4957
        %5006 = vst [vmem:[%s245 + $0x30] sm:$0xff] %v4962
        %5007 = vst [vmem:[%s245 + $0x38] sm:$0xff] %v4965
        %5008 = vst [vmem:[%s245 + $0x40] sm:$0xff] %v4970
        %5009 = vst [vmem:[%s245 + $0x48] sm:$0xff] %v4973
        %5010 = vst [vmem:[%s245 + $0x50] sm:$0xff] %v4978
        %5011 = vst [vmem:[%s245 + $0x58] sm:$0xff] %v4981
        %5012 = vst [vmem:[%s245 + $0x60] sm:$0xff] %v4986
        %5013 = vst [vmem:[%s245 + $0x68] sm:$0xff] %v4989
        %5014 = vst [vmem:[%s245 + $0x70] sm:$0xff] %v4994
        %5015 = vst [vmem:[%s245 + $0x78] sm:$0xff] %v4997
        %s5016 = sand.u32 %s159, 1
        %s5017 = scalar_lea.sflag [#allocation3], %s5016
        %s5018 = sand.u32 %s159, 1
        %s5019 = smul.addr %s5018, 128
        %s5020 = scalar_lea.vmem [#allocation2], %s5019
        // Predicated region
        $region45: #{next_char_forward.1} parent=43 // pred_check
          %p5021 = pneg %p169
        $region46: #{next_char_forward.1} parent=43 // pred_check_branch
          %5023 = sbr.rel (%p5021) target = $region48
        $region47: #{next_char_forward.1} parent=43 // pred_region
          %s5024 = smul.u32 16, %s20
          %s5026 = ssub.s32 2048, 2048
          %5027 = vsyncadd %s5017, %s5026
          %s5028 = smul.addr %s5024, 128
          %s5029 = scalar_lea.hbm %s6, %s5028
          %s5030 = sshll.u32 %s5020, 4
          %s5031 = int_to_ptr.vmem [resolvable:$true] %s5030
          %5036 = dma.vmem_to_hbm [thread:$0]  %s5031, 2048, %s5029, %s5017, 128, 128, 8
        $region48: #{next_char_forward.1} parent=43 // pred_fallthru
          _
      $region44: #{next_char_forward.1} parent=5 // pred_fallthru
        _
      %p5037 = scmp.le.s32.totalorder 2, %s15
      // Predicated region
      $region49: #{next_char_forward.1} parent=5 // pred_check
        %p5038 = pneg %p5037
      $region50: #{next_char_forward.1} parent=5 // pred_check_branch
        %5040 = sbr.rel (%p5038) target = $region52
      $region51: #{next_char_forward.1} parent=5 // pred_region
        %s5041 = ssub.s32 %s15, 2
        // Predicated region
        $region53: #{next_char_forward.1} parent=51 // pred_check
          %p5042 = pneg %p175
        $region54: #{next_char_forward.1} parent=51 // pred_check_branch
          %5044 = sbr.rel (%p5042) target = $region56
        $region55: #{next_char_forward.1} parent=51 // pred_region
          %s5045 = sand.u32 %s160, 1
          %s5046 = scalar_lea.sflag [#allocation3], %s5045
          %s5047 = sand.u32 %s160, 1
          %s5048 = smul.addr %s5047, 128
          %s5049 = scalar_lea.vmem [#allocation2], %s5048
          %5050 = dma.done %s5046, 2048
        $region56: #{next_char_forward.1} parent=51 // pred_fallthru
          _
      $region52: #{next_char_forward.1} parent=5 // pred_fallthru
        _
    $region6: #{next_char_forward.1} parent=1 // loop_footer
      %s19 = sadd.s32 1, %s15
    $region7: #{next_char_forward.1} parent=1 // loop_footer_branch
      %14 = sbr.rel target = $region3
    $region8: #{next_char_forward.1} parent=1 // loop_exit
      _
    %5051 = vsyncpa [#allocation3], 1
    %s5052 = scalar_lea.sflag [#allocation3], 1
    %5053 = vsyncpa %s5052, 1

</llo_original>
